<compile_context>
chip_gen: v5e
topology: v5e:2x2
jax: 0.10.0
libtpu: 0.0.40
codegen_flags: <defaults>
</compile_context>

<pallas_src>
import math

import jax
import jax.numpy as jnp
from jax import lax
from jax.experimental import pallas as pl
from jax.experimental.pallas import tpu as pltpu

EPS = 1e-5
BN_S = 1.0 / math.sqrt(1.0 + EPS)   # eval-mode BatchNorm1d scale (default stats)
PRELU_ALPHA = 0.25                  # nn.PReLU() default
# TODO(synk): a trained PReLU alpha / real BN statistics would be fed as SMEM
# scalars + folded per-channel scale/shift; only module defaults are handled.


# ----------------------------------------------------------------------------
# kernel
# ----------------------------------------------------------------------------
def _block_body(h_f32, h_bf, masks, w1_ref, t1_ref, wst_ref, cfg):
    """One DilatedParllelResidualBlockB applied to a (Cin, TILE) slab."""
    # c1: 1x1 conv (+bias) with BN folded into w1/t1, then PReLU (f32 VPU math,
    # v5e-safe).  h_bf is the bf16 copy emitted once by the previous block.
    z = jnp.dot(w1_ref[...], h_bf, preferred_element_type=jnp.float32)
    z = z + t1_ref[...]
    y1 = jnp.where(z > 0, z, PRELU_ALPHA * z)                # (n, TILE) f32
    y1_bf = y1.astype(jnp.bfloat16)

    W = y1.shape[-1]
    # Stacked-K input: one shifted+masked bf16 copy of y1 per DISTINCT offset.
    # Rolls use the XLU; masks are precomputed (1, TILE) compares on the
    # within-sample position, so cross-sample wraparound is zeroed exactly like
    # the conv's zero padding.  Each block is cast to bf16 before the concat so
    # the (9n, TILE) staging slab is bf16, not f32.
    blocks = []
    for o in cfg["offsets"]:
        if o == 0:
            blocks.append(y1_bf)
        else:
            rolled = pltpu.roll(y1, shift=(-o) % W, axis=1)
            blocks.append(jnp.where(masks[o], rolled, 0.0).astype(jnp.bfloat16))
    xs = jnp.concatenate(blocks, axis=0)                     # (9n, TILE) bf16

    # Dilated convs + cumulative sums + channel concat + BN scale all folded
    # into wst (nOut, 9n): one MXU pass.
    # TODO(synk): for large nOut split into per-dilation matmuls + VPU
    # cumulative adds (honest MACs); fused form kept for tiny channel counts.
    comb = jnp.dot(wst_ref[...], xs, preferred_element_type=jnp.float32)

    if cfg["add"]:                       # residual (only when Cin == nOut)
        comb = comb + BN_S * h_f32

    out = jnp.where(comb > 0, comb, PRELU_ALPHA * comb)      # (nOut, TILE) f32
    return out, out.astype(jnp.bfloat16)


def make_chain_kernel(cfgs, L):
    """Fused kernel: a chain of blocks, activations resident in VMEM per tile."""
    all_offsets = sorted({o for c in cfgs for o in c["offsets"] if o != 0})

    def kernel(x_ref, *args):
        out_ref = args[-1]
        wargs = args[:-1]
        W = x_ref.shape[-1]

        # Within-sample position + one (1, TILE) validity mask per distinct
        # offset, computed once per tile and reused by every block.
        pos = lax.broadcasted_iota(jnp.int32, (1, W), 1) % L
        masks = {o: (pos < (L - o)) if o > 0 else (pos >= (-o))
                 for o in all_offsets}

        h_f32 = x_ref[...]                                   # (Cin0, TILE) f32
        h_bf = h_f32.astype(jnp.bfloat16)
        idx = 0
        for cfg in cfgs:
            w1, t1, wst = wargs[idx:idx + 3]
            idx += 3
            h_f32, h_bf = _block_body(h_f32, h_bf, masks, w1, t1, wst, cfg)
        out_ref[...] = h_f32

    return kernel


# ----------------------------------------------------------------------------
# pallas_call wrapper
# ----------------------------------------------------------------------------
def _pick_samples_per_tile(B, L, target_lanes=512):
    """Largest-enough sample-aligned tile whose lane width is a 128 multiple."""
    valid = [s for s in range(1, B + 1)
             if B % s == 0 and ((s * L) % 128 == 0 or s == B)]
    for s in valid:
        if s * L >= target_lanes:
            return s
    return valid[-1]


def dilated_blocks_forward(x, blocks, samples_per_tile=None):
    """x: (B, Cin, L) float32; blocks: list of dicts from init_block_params."""
    B, Cin, L = x.shape
    N = B * L
    max_off = max(abs(o) for p in blocks for o in p["offsets"])
    assert max_off < L, "dilation padding must be < L for the roll+mask scheme"

    if samples_per_tile is None:
        samples_per_tile = _pick_samples_per_tile(B, L)
    assert B % samples_per_tile == 0
    TILE = samples_per_tile * L
    grid = (N // TILE,)

    # Fold the batch into the lane axis (host-side layout plumbing).
    xf = jnp.transpose(x, (1, 0, 2)).reshape(Cin, N)
    # TODO(synk): on v5e stream xf/out as bf16 to halve exposed HBM traffic.

    cfgs = [dict(offsets=p["offsets"], add=p["add"]) for p in blocks]
    wargs = []
    for p in blocks:
        wargs += [p["w1"], p["t1"], p["wstack"]]
    nOut = blocks[-1]["nOut"]

    act_spec = pl.BlockSpec((Cin, TILE), lambda i: (0, i))      # streamed per tile
    w_specs = [pl.BlockSpec(a.shape, lambda i: (0, 0)) for a in wargs]  # resident

    out = pl.pallas_call(
        make_chain_kernel(cfgs, L),
        out_shape=jax.ShapeDtypeStruct((nOut, N), jnp.float32),
        grid=grid,
        in_specs=[act_spec] + w_specs,
        out_specs=pl.BlockSpec((nOut, TILE), lambda i: (0, i)),
        compiler_params=pltpu.CompilerParams(
            dimension_semantics=("parallel",),          # megacore-shardable tiles
            vmem_limit_bytes=48 * 1024 * 1024),         # safe on v7x's 64 MiB
    )(xf, *wargs)

    return jnp.transpose(out.reshape(nOut, B, L), (1, 0, 2))


# ----------------------------------------------------------------------------
# parameter construction (PyTorch module -> folded kernel weights)
# ----------------------------------------------------------------------------
def _norm(key, shape, scale=0.05):
    return scale * jax.random.normal(key, shape, dtype=jnp.float32)


def init_block_params(key, nIn, nOut, add=True):
    dilations = (1, 2, 4, 8)
    nd = len(dilations)
    n = nOut // 4
    n1 = nOut - 3 * n
    if nIn != nOut:
        add = False
    assert n % 16 == 0, "n must be a multiple of 16 for bf16 sublane packing"

    keys = jax.random.split(key, 2 + nd)
    wc1 = _norm(keys[0], (n, nIn))               # Conv1d(nIn, n, 1) weight
    bc1 = _norm(keys[1], (n,))                   # its bias
    couts = [n1] + [n] * (nd - 1)
    wds = [_norm(keys[2 + i], (couts[i], n, 3)) for i in range(nd)]  # (Cout,Cin,k)

    # Distinct tap offsets {(k-1)*d} = {0, ±1, ±2, ±4, ±8} -> 9 K-blocks.
    offsets = tuple(sorted({(k - 1) * d for d in dilations for k in range(3)}))
    K = len(offsets) * n

    # Fold the cumulative-sum + concat structure and the BN scale into one
    # stacked weight matrix.
    row_start = [0] + [n1 + (j - 1) * n for j in range(1, nd)]
    row_size = [n1] + [n] * (nd - 1)
    wstack = jnp.zeros((nOut, K), jnp.float32)
    for i, d in enumerate(dilations):
        slots = [0] if i == 0 else list(range(i, nd))   # d1 -> 0; d2 -> 1,2,3; ...
        for k in range(3):
            c0 = offsets.index((k - 1) * d) * n
            wk = wds[i][:, :, k]                        # (couts[i], n)
            for j in slots:
                wstack = wstack.at[row_start[j]:row_start[j] + row_size[j],
                                   c0:c0 + n].add(wk)

    # TODO(synk): BatchNorm folded assuming PyTorch eval-mode defaults
    # (running_mean=0, running_var=1, gamma=1, beta=0); training-mode batch
    # statistics are not implemented.
    bn_s = jnp.float32(BN_S)
    return dict(
        # folded / kernel-ready parameters
        w1=(bn_s * wc1).astype(jnp.bfloat16),
        t1=(bn_s * bc1).reshape(n, 1).astype(jnp.float32),
        wstack=(bn_s * wstack).astype(jnp.bfloat16),
        # static config
        offsets=offsets, add=add, nOut=nOut, dilations=dilations,
        # raw parameters for the pure-JAX reference
        raw_wc1=wc1, raw_bc1=bc1, raw_wds=wds,
    )


# ----------------------------------------------------------------------------
# pure-JAX reference (f32) for correctness checking
# ----------------------------------------------------------------------------
def ref_block(x, p):
    wc1, bc1, wds = p["raw_wc1"], p["raw_bc1"], p["raw_wds"]
    z = jnp.einsum("oc,bcl->bol", wc1, x, precision="highest") + bc1[None, :, None]
    z = BN_S * z
    y1 = jnp.where(z > 0, z, PRELU_ALPHA * z)
    L = x.shape[-1]

    def dconv(w, d):
        yp = jnp.pad(y1, ((0, 0), (0, 0), (d, d)))
        out = 0.0
        for k in range(3):
            out = out + jnp.einsum("oc,bcl->bol", w[:, :, k],
                                   yp[:, :, k * d:k * d + L], precision="highest")
        return out

    d_outs = [dconv(wds[i], d) for i, d in enumerate(p["dilations"])]
    add1 = d_outs[1]
    add2 = add1 + d_outs[2]
    add3 = add2 + d_outs[3]
    combine = jnp.concatenate([d_outs[0], add1, add2, add3], axis=1)
    if p["add"]:
        combine = combine + x
    z2 = BN_S * combine
    return jnp.where(z2 > 0, z2, PRELU_ALPHA * z2)


# ----------------------------------------------------------------------------
# main
# ----------------------------------------------------------------------------
if __name__ == "__main__":
    key = jax.random.PRNGKey(0)
    kx, kb1, kb2 = jax.random.split(key, 3)

    # 8 samples of length 128 -> 1024 folded lanes, tiled as 2 x (512-lane)
    # sample-aligned tiles streamed through the fused two-block kernel.
    B, L, C0 = 8, 128, 64
    x = jax.random.normal(kx, (B, C0, L), jnp.float32)

    # Two chained blocks: one exercising the residual path (nIn == nOut) and
    # one without it (nIn != nOut -> add forced False), fused in ONE kernel.
    p1 = init_block_params(kb1, nIn=C0, nOut=64, add=True)
    p2 = init_block_params(kb2, nIn=64, nOut=128, add=True)

    out = jax.block_until_ready(dilated_blocks_forward(x, [p1, p2]))

    ref = ref_block(ref_block(x, p1), p2)
    assert out.shape == (B, 128, L) and out.dtype == jnp.float32
    err = float(jnp.max(jnp.abs(out - ref)))
    assert err < 5e-2, f"max abs error vs f32 reference: {err}"
    print("KERNEL_OK")
</pallas_src>

<mosaic_0001>
module attributes {stable_mosaic.version = 11 : i64} {
  func.func @kernel(%arg0: i32, %arg1: memref<64x512xf32, #tpu.memory_space<vmem>>, %arg2: memref<16x64xbf16, #tpu.memory_space<vmem>>, %arg3: memref<16x1xf32, #tpu.memory_space<vmem>>, %arg4: memref<64x144xbf16, #tpu.memory_space<vmem>>, %arg5: memref<32x64xbf16, #tpu.memory_space<vmem>>, %arg6: memref<32x1xf32, #tpu.memory_space<vmem>>, %arg7: memref<128x288xbf16, #tpu.memory_space<vmem>>, %arg8: memref<128x512xf32, #tpu.memory_space<vmem>>) attributes {dimension_semantics = [#tpu.dimension_semantics<parallel>], iteration_bounds = array<i64: 2>, scalar_prefetch = 0 : i64, scratch_operands = 0 : i64, tpu.core_type = #tpu.core_type<tc>, window_params = [{transform_indices = @transform_0, window_bounds = array<i64: 64, 512>}, {pipeline_mode = #tpu.pipeline_mode<synchronous>, transform_indices = @transform_1, window_bounds = array<i64: 16, 64>}, {pipeline_mode = #tpu.pipeline_mode<synchronous>, transform_indices = @transform_2, window_bounds = array<i64: 16, 1>}, {pipeline_mode = #tpu.pipeline_mode<synchronous>, transform_indices = @transform_3, window_bounds = array<i64: 64, 144>}, {pipeline_mode = #tpu.pipeline_mode<synchronous>, transform_indices = @transform_4, window_bounds = array<i64: 32, 64>}, {pipeline_mode = #tpu.pipeline_mode<synchronous>, transform_indices = @transform_5, window_bounds = array<i64: 32, 1>}, {pipeline_mode = #tpu.pipeline_mode<synchronous>, transform_indices = @transform_6, window_bounds = array<i64: 128, 288>}, {transform_indices = @transform_7, window_bounds = array<i64: 128, 512>}]} {
    %0 = tpu.iota {dimensions = array<i32: 1>} : vector<1x512xi32>
    %c128_i32 = arith.constant 128 : i32
    %c0_i32 = arith.constant 0 : i32
    %1 = arith.cmpi eq, %c128_i32, %c0_i32 : i32
    %c1_i32 = arith.constant 1 : i32
    %2 = arith.select %1, %c1_i32, %c128_i32 : i32
    %3 = vector.broadcast %2 : i32 to vector<1x512xi32>
    %4 = arith.remsi %0, %3 : vector<1x512xi32>
    %c0_i32_0 = arith.constant 0 : i32
    %5 = vector.broadcast %c0_i32_0 : i32 to vector<1x512xi32>
    %6 = arith.cmpi ne, %4, %5 : vector<1x512xi32>
    %c0_i32_1 = arith.constant 0 : i32
    %7 = vector.broadcast %c0_i32_1 : i32 to vector<1x512xi32>
    %8 = arith.cmpi slt, %4, %7 : vector<1x512xi32>
    %c0_i32_2 = arith.constant 0 : i32
    %9 = arith.cmpi slt, %2, %c0_i32_2 : i32
    %10 = vector.broadcast %9 : i1 to vector<1x512xi1>
    %11 = vector.broadcast %10 : vector<1x512xi1> to vector<1x512xi1>
    %12 = arith.xori %8, %11 : vector<1x512xi1>
    %13 = arith.andi %12, %6 : vector<1x512xi1>
    %14 = vector.broadcast %2 : i32 to vector<1x512xi32>
    %15 = arith.addi %4, %14 : vector<1x512xi32>
    %16 = arith.select %13, %15, %4 : vector<1x512xi1>, vector<1x512xi32>
    %c8_i32 = arith.constant 8 : i32
    %17 = vector.broadcast %c8_i32 : i32 to vector<1x512xi32>
    %18 = arith.cmpi sge, %16, %17 : vector<1x512xi32>
    %c4_i32 = arith.constant 4 : i32
    %19 = vector.broadcast %c4_i32 : i32 to vector<1x512xi32>
    %20 = arith.cmpi sge, %16, %19 : vector<1x512xi32>
    %c2_i32 = arith.constant 2 : i32
    %21 = vector.broadcast %c2_i32 : i32 to vector<1x512xi32>
    %22 = arith.cmpi sge, %16, %21 : vector<1x512xi32>
    %c1_i32_3 = arith.constant 1 : i32
    %23 = vector.broadcast %c1_i32_3 : i32 to vector<1x512xi32>
    %24 = arith.cmpi sge, %16, %23 : vector<1x512xi32>
    %c127_i32 = arith.constant 127 : i32
    %25 = vector.broadcast %c127_i32 : i32 to vector<1x512xi32>
    %26 = arith.cmpi slt, %16, %25 : vector<1x512xi32>
    %c126_i32 = arith.constant 126 : i32
    %27 = vector.broadcast %c126_i32 : i32 to vector<1x512xi32>
    %28 = arith.cmpi slt, %16, %27 : vector<1x512xi32>
    %c124_i32 = arith.constant 124 : i32
    %29 = vector.broadcast %c124_i32 : i32 to vector<1x512xi32>
    %30 = arith.cmpi slt, %16, %29 : vector<1x512xi32>
    %c120_i32 = arith.constant 120 : i32
    %31 = vector.broadcast %c120_i32 : i32 to vector<1x512xi32>
    %32 = arith.cmpi slt, %16, %31 : vector<1x512xi32>
    %c0 = arith.constant 0 : index
    %c0_4 = arith.constant 0 : index
    %33 = vector.load %arg1[%c0, %c0_4] : memref<64x512xf32, #tpu.memory_space<vmem>>, vector<64x512xf32>
    %34 = arith.truncf %33 : vector<64x512xf32> to vector<64x512xbf16>
    %c0_5 = arith.constant 0 : index
    %c0_6 = arith.constant 0 : index
    %35 = vector.load %arg2[%c0_5, %c0_6] : memref<16x64xbf16, #tpu.memory_space<vmem>>, vector<16x64xbf16>
    %cst = arith.constant dense<0.000000e+00> : vector<16x512xf32>
    %36 = tpu.matmul %35, %34, %cst {dimension_numbers = #tpu.dot_dimension_numbers<[1], [0], [0], [1], [0, 0, 1, 1], [], []>} : vector<16x64xbf16>, vector<64x512xbf16>, vector<16x512xf32> -> vector<16x512xf32>
    %c0_7 = arith.constant 0 : index
    %c0_8 = arith.constant 0 : index
    %37 = vector.load %arg3[%c0_7, %c0_8] : memref<16x1xf32, #tpu.memory_space<vmem>>, vector<16x1xf32>
    %38 = vector.broadcast %37 : vector<16x1xf32> to vector<16x512xf32>
    %39 = arith.addf %36, %38 : vector<16x512xf32>
    %cst_9 = arith.constant 0.000000e+00 : f32
    %40 = vector.broadcast %cst_9 : f32 to vector<16x512xf32>
    %41 = arith.cmpf ogt, %39, %40 : vector<16x512xf32>
    %cst_10 = arith.constant 2.500000e-01 : f32
    %42 = vector.broadcast %cst_10 : f32 to vector<16x512xf32>
    %43 = arith.mulf %42, %39 : vector<16x512xf32>
    %44 = arith.select %41, %39, %43 : vector<16x512xi1>, vector<16x512xf32>
    %45 = arith.truncf %44 : vector<16x512xf32> to vector<16x512xbf16>
    %c8_i32_11 = arith.constant 8 : i32
    %46 = tpu.dynamic_rotate %44 by %c8_i32_11 dim 1 : vector<16x512xf32>, i32 -> vector<16x512xf32>
    %cst_12 = arith.constant 0.000000e+00 : f32
    %47 = vector.shape_cast %18 : vector<1x512xi1> to vector<1x512xi1>
    %48 = vector.broadcast %47 : vector<1x512xi1> to vector<16x512xi1>
    %49 = vector.broadcast %cst_12 : f32 to vector<16x512xf32>
    %50 = arith.select %48, %46, %49 : vector<16x512xi1>, vector<16x512xf32>
    %51 = arith.truncf %50 : vector<16x512xf32> to vector<16x512xbf16>
    %c4_i32_13 = arith.constant 4 : i32
    %52 = tpu.dynamic_rotate %44 by %c4_i32_13 dim 1 : vector<16x512xf32>, i32 -> vector<16x512xf32>
    %cst_14 = arith.constant 0.000000e+00 : f32
    %53 = vector.shape_cast %20 : vector<1x512xi1> to vector<1x512xi1>
    %54 = vector.broadcast %53 : vector<1x512xi1> to vector<16x512xi1>
    %55 = vector.broadcast %cst_14 : f32 to vector<16x512xf32>
    %56 = arith.select %54, %52, %55 : vector<16x512xi1>, vector<16x512xf32>
    %57 = arith.truncf %56 : vector<16x512xf32> to vector<16x512xbf16>
    %c2_i32_15 = arith.constant 2 : i32
    %58 = tpu.dynamic_rotate %44 by %c2_i32_15 dim 1 : vector<16x512xf32>, i32 -> vector<16x512xf32>
    %cst_16 = arith.constant 0.000000e+00 : f32
    %59 = vector.shape_cast %22 : vector<1x512xi1> to vector<1x512xi1>
    %60 = vector.broadcast %59 : vector<1x512xi1> to vector<16x512xi1>
    %61 = vector.broadcast %cst_16 : f32 to vector<16x512xf32>
    %62 = arith.select %60, %58, %61 : vector<16x512xi1>, vector<16x512xf32>
    %63 = arith.truncf %62 : vector<16x512xf32> to vector<16x512xbf16>
    %c1_i32_17 = arith.constant 1 : i32
    %64 = tpu.dynamic_rotate %44 by %c1_i32_17 dim 1 : vector<16x512xf32>, i32 -> vector<16x512xf32>
    %cst_18 = arith.constant 0.000000e+00 : f32
    %65 = vector.shape_cast %24 : vector<1x512xi1> to vector<1x512xi1>
    %66 = vector.broadcast %65 : vector<1x512xi1> to vector<16x512xi1>
    %67 = vector.broadcast %cst_18 : f32 to vector<16x512xf32>
    %68 = arith.select %66, %64, %67 : vector<16x512xi1>, vector<16x512xf32>
    %69 = arith.truncf %68 : vector<16x512xf32> to vector<16x512xbf16>
    %c511_i32 = arith.constant 511 : i32
    %70 = tpu.dynamic_rotate %44 by %c511_i32 dim 1 : vector<16x512xf32>, i32 -> vector<16x512xf32>
    %cst_19 = arith.constant 0.000000e+00 : f32
    %71 = vector.shape_cast %26 : vector<1x512xi1> to vector<1x512xi1>
    %72 = vector.broadcast %71 : vector<1x512xi1> to vector<16x512xi1>
    %73 = vector.broadcast %cst_19 : f32 to vector<16x512xf32>
    %74 = arith.select %72, %70, %73 : vector<16x512xi1>, vector<16x512xf32>
    %75 = arith.truncf %74 : vector<16x512xf32> to vector<16x512xbf16>
    %c510_i32 = arith.constant 510 : i32
    %76 = tpu.dynamic_rotate %44 by %c510_i32 dim 1 : vector<16x512xf32>, i32 -> vector<16x512xf32>
    %cst_20 = arith.constant 0.000000e+00 : f32
    %77 = vector.shape_cast %28 : vector<1x512xi1> to vector<1x512xi1>
    %78 = vector.broadcast %77 : vector<1x512xi1> to vector<16x512xi1>
    %79 = vector.broadcast %cst_20 : f32 to vector<16x512xf32>
    %80 = arith.select %78, %76, %79 : vector<16x512xi1>, vector<16x512xf32>
    %81 = arith.truncf %80 : vector<16x512xf32> to vector<16x512xbf16>
    %c508_i32 = arith.constant 508 : i32
    %82 = tpu.dynamic_rotate %44 by %c508_i32 dim 1 : vector<16x512xf32>, i32 -> vector<16x512xf32>
    %cst_21 = arith.constant 0.000000e+00 : f32
    %83 = vector.shape_cast %30 : vector<1x512xi1> to vector<1x512xi1>
    %84 = vector.broadcast %83 : vector<1x512xi1> to vector<16x512xi1>
    %85 = vector.broadcast %cst_21 : f32 to vector<16x512xf32>
    %86 = arith.select %84, %82, %85 : vector<16x512xi1>, vector<16x512xf32>
    %87 = arith.truncf %86 : vector<16x512xf32> to vector<16x512xbf16>
    %c504_i32 = arith.constant 504 : i32
    %88 = tpu.dynamic_rotate %44 by %c504_i32 dim 1 : vector<16x512xf32>, i32 -> vector<16x512xf32>
    %cst_22 = arith.constant 0.000000e+00 : f32
    %89 = vector.shape_cast %32 : vector<1x512xi1> to vector<1x512xi1>
    %90 = vector.broadcast %89 : vector<1x512xi1> to vector<16x512xi1>
    %91 = vector.broadcast %cst_22 : f32 to vector<16x512xf32>
    %92 = arith.select %90, %88, %91 : vector<16x512xi1>, vector<16x512xf32>
    %93 = arith.truncf %92 : vector<16x512xf32> to vector<16x512xbf16>
    %94 = tpu.concatenate %51, %57, %63, %69, %45, %75, %81, %87, %93 in 0 : vector<16x512xbf16>, vector<16x512xbf16>, vector<16x512xbf16>, vector<16x512xbf16>, vector<16x512xbf16>, vector<16x512xbf16>, vector<16x512xbf16>, vector<16x512xbf16>, vector<16x512xbf16> -> vector<144x512xbf16>
    %c0_23 = arith.constant 0 : index
    %c0_24 = arith.constant 0 : index
    %95 = vector.load %arg4[%c0_23, %c0_24] : memref<64x144xbf16, #tpu.memory_space<vmem>>, vector<64x144xbf16>
    %cst_25 = arith.constant dense<0.000000e+00> : vector<64x512xf32>
    %96 = tpu.matmul %95, %94, %cst_25 {dimension_numbers = #tpu.dot_dimension_numbers<[1], [0], [0], [1], [0, 0, 1, 1], [], []>} : vector<64x144xbf16>, vector<144x512xbf16>, vector<64x512xf32> -> vector<64x512xf32>
    %cst_26 = arith.constant 0.999994993 : f32
    %97 = vector.broadcast %cst_26 : f32 to vector<64x512xf32>
    %98 = arith.mulf %97, %33 : vector<64x512xf32>
    %99 = arith.addf %96, %98 : vector<64x512xf32>
    %cst_27 = arith.constant 0.000000e+00 : f32
    %100 = vector.broadcast %cst_27 : f32 to vector<64x512xf32>
    %101 = arith.cmpf ogt, %99, %100 : vector<64x512xf32>
    %cst_28 = arith.constant 2.500000e-01 : f32
    %102 = vector.broadcast %cst_28 : f32 to vector<64x512xf32>
    %103 = arith.mulf %102, %99 : vector<64x512xf32>
    %104 = arith.select %101, %99, %103 : vector<64x512xi1>, vector<64x512xf32>
    %105 = arith.truncf %104 : vector<64x512xf32> to vector<64x512xbf16>
    %c0_29 = arith.constant 0 : index
    %c0_30 = arith.constant 0 : index
    %106 = vector.load %arg5[%c0_29, %c0_30] : memref<32x64xbf16, #tpu.memory_space<vmem>>, vector<32x64xbf16>
    %cst_31 = arith.constant dense<0.000000e+00> : vector<32x512xf32>
    %107 = tpu.matmul %106, %105, %cst_31 {dimension_numbers = #tpu.dot_dimension_numbers<[1], [0], [0], [1], [0, 0, 1, 1], [], []>} : vector<32x64xbf16>, vector<64x512xbf16>, vector<32x512xf32> -> vector<32x512xf32>
    %c0_32 = arith.constant 0 : index
    %c0_33 = arith.constant 0 : index
    %108 = vector.load %arg6[%c0_32, %c0_33] : memref<32x1xf32, #tpu.memory_space<vmem>>, vector<32x1xf32>
    %109 = vector.broadcast %108 : vector<32x1xf32> to vector<32x512xf32>
    %110 = arith.addf %107, %109 : vector<32x512xf32>
    %cst_34 = arith.constant 0.000000e+00 : f32
    %111 = vector.broadcast %cst_34 : f32 to vector<32x512xf32>
    %112 = arith.cmpf ogt, %110, %111 : vector<32x512xf32>
    %cst_35 = arith.constant 2.500000e-01 : f32
    %113 = vector.broadcast %cst_35 : f32 to vector<32x512xf32>
    %114 = arith.mulf %113, %110 : vector<32x512xf32>
    %115 = arith.select %112, %110, %114 : vector<32x512xi1>, vector<32x512xf32>
    %116 = arith.truncf %115 : vector<32x512xf32> to vector<32x512xbf16>
    %c8_i32_36 = arith.constant 8 : i32
    %117 = tpu.dynamic_rotate %115 by %c8_i32_36 dim 1 : vector<32x512xf32>, i32 -> vector<32x512xf32>
    %cst_37 = arith.constant 0.000000e+00 : f32
    %118 = vector.shape_cast %18 : vector<1x512xi1> to vector<1x512xi1>
    %119 = vector.broadcast %118 : vector<1x512xi1> to vector<32x512xi1>
    %120 = vector.broadcast %cst_37 : f32 to vector<32x512xf32>
    %121 = arith.select %119, %117, %120 : vector<32x512xi1>, vector<32x512xf32>
    %122 = arith.truncf %121 : vector<32x512xf32> to vector<32x512xbf16>
    %c4_i32_38 = arith.constant 4 : i32
    %123 = tpu.dynamic_rotate %115 by %c4_i32_38 dim 1 : vector<32x512xf32>, i32 -> vector<32x512xf32>
    %cst_39 = arith.constant 0.000000e+00 : f32
    %124 = vector.shape_cast %20 : vector<1x512xi1> to vector<1x512xi1>
    %125 = vector.broadcast %124 : vector<1x512xi1> to vector<32x512xi1>
    %126 = vector.broadcast %cst_39 : f32 to vector<32x512xf32>
    %127 = arith.select %125, %123, %126 : vector<32x512xi1>, vector<32x512xf32>
    %128 = arith.truncf %127 : vector<32x512xf32> to vector<32x512xbf16>
    %c2_i32_40 = arith.constant 2 : i32
    %129 = tpu.dynamic_rotate %115 by %c2_i32_40 dim 1 : vector<32x512xf32>, i32 -> vector<32x512xf32>
    %cst_41 = arith.constant 0.000000e+00 : f32
    %130 = vector.shape_cast %22 : vector<1x512xi1> to vector<1x512xi1>
    %131 = vector.broadcast %130 : vector<1x512xi1> to vector<32x512xi1>
    %132 = vector.broadcast %cst_41 : f32 to vector<32x512xf32>
    %133 = arith.select %131, %129, %132 : vector<32x512xi1>, vector<32x512xf32>
    %134 = arith.truncf %133 : vector<32x512xf32> to vector<32x512xbf16>
    %c1_i32_42 = arith.constant 1 : i32
    %135 = tpu.dynamic_rotate %115 by %c1_i32_42 dim 1 : vector<32x512xf32>, i32 -> vector<32x512xf32>
    %cst_43 = arith.constant 0.000000e+00 : f32
    %136 = vector.shape_cast %24 : vector<1x512xi1> to vector<1x512xi1>
    %137 = vector.broadcast %136 : vector<1x512xi1> to vector<32x512xi1>
    %138 = vector.broadcast %cst_43 : f32 to vector<32x512xf32>
    %139 = arith.select %137, %135, %138 : vector<32x512xi1>, vector<32x512xf32>
    %140 = arith.truncf %139 : vector<32x512xf32> to vector<32x512xbf16>
    %c511_i32_44 = arith.constant 511 : i32
    %141 = tpu.dynamic_rotate %115 by %c511_i32_44 dim 1 : vector<32x512xf32>, i32 -> vector<32x512xf32>
    %cst_45 = arith.constant 0.000000e+00 : f32
    %142 = vector.shape_cast %26 : vector<1x512xi1> to vector<1x512xi1>
    %143 = vector.broadcast %142 : vector<1x512xi1> to vector<32x512xi1>
    %144 = vector.broadcast %cst_45 : f32 to vector<32x512xf32>
    %145 = arith.select %143, %141, %144 : vector<32x512xi1>, vector<32x512xf32>
    %146 = arith.truncf %145 : vector<32x512xf32> to vector<32x512xbf16>
    %c510_i32_46 = arith.constant 510 : i32
    %147 = tpu.dynamic_rotate %115 by %c510_i32_46 dim 1 : vector<32x512xf32>, i32 -> vector<32x512xf32>
    %cst_47 = arith.constant 0.000000e+00 : f32
    %148 = vector.shape_cast %28 : vector<1x512xi1> to vector<1x512xi1>
    %149 = vector.broadcast %148 : vector<1x512xi1> to vector<32x512xi1>
    %150 = vector.broadcast %cst_47 : f32 to vector<32x512xf32>
    %151 = arith.select %149, %147, %150 : vector<32x512xi1>, vector<32x512xf32>
    %152 = arith.truncf %151 : vector<32x512xf32> to vector<32x512xbf16>
    %c508_i32_48 = arith.constant 508 : i32
    %153 = tpu.dynamic_rotate %115 by %c508_i32_48 dim 1 : vector<32x512xf32>, i32 -> vector<32x512xf32>
    %cst_49 = arith.constant 0.000000e+00 : f32
    %154 = vector.shape_cast %30 : vector<1x512xi1> to vector<1x512xi1>
    %155 = vector.broadcast %154 : vector<1x512xi1> to vector<32x512xi1>
    %156 = vector.broadcast %cst_49 : f32 to vector<32x512xf32>
    %157 = arith.select %155, %153, %156 : vector<32x512xi1>, vector<32x512xf32>
    %158 = arith.truncf %157 : vector<32x512xf32> to vector<32x512xbf16>
    %c504_i32_50 = arith.constant 504 : i32
    %159 = tpu.dynamic_rotate %115 by %c504_i32_50 dim 1 : vector<32x512xf32>, i32 -> vector<32x512xf32>
    %cst_51 = arith.constant 0.000000e+00 : f32
    %160 = vector.shape_cast %32 : vector<1x512xi1> to vector<1x512xi1>
    %161 = vector.broadcast %160 : vector<1x512xi1> to vector<32x512xi1>
    %162 = vector.broadcast %cst_51 : f32 to vector<32x512xf32>
    %163 = arith.select %161, %159, %162 : vector<32x512xi1>, vector<32x512xf32>
    %164 = arith.truncf %163 : vector<32x512xf32> to vector<32x512xbf16>
    %165 = tpu.concatenate %122, %128, %134, %140, %116, %146, %152, %158, %164 in 0 : vector<32x512xbf16>, vector<32x512xbf16>, vector<32x512xbf16>, vector<32x512xbf16>, vector<32x512xbf16>, vector<32x512xbf16>, vector<32x512xbf16>, vector<32x512xbf16>, vector<32x512xbf16> -> vector<288x512xbf16>
    %c0_52 = arith.constant 0 : index
    %c0_53 = arith.constant 0 : index
    %166 = vector.load %arg7[%c0_52, %c0_53] : memref<128x288xbf16, #tpu.memory_space<vmem>>, vector<128x288xbf16>
    %cst_54 = arith.constant dense<0.000000e+00> : vector<128x512xf32>
    %167 = tpu.matmul %166, %165, %cst_54 {dimension_numbers = #tpu.dot_dimension_numbers<[1], [0], [0], [1], [0, 0, 1, 1], [], []>} : vector<128x288xbf16>, vector<288x512xbf16>, vector<128x512xf32> -> vector<128x512xf32>
    %cst_55 = arith.constant 0.000000e+00 : f32
    %168 = vector.broadcast %cst_55 : f32 to vector<128x512xf32>
    %169 = arith.cmpf ogt, %167, %168 : vector<128x512xf32>
    %cst_56 = arith.constant 2.500000e-01 : f32
    %170 = vector.broadcast %cst_56 : f32 to vector<128x512xf32>
    %171 = arith.mulf %170, %167 : vector<128x512xf32>
    %172 = arith.select %169, %167, %171 : vector<128x512xi1>, vector<128x512xf32>
    %c0_57 = arith.constant 0 : index
    %c0_58 = arith.constant 0 : index
    %173 = vector.load %arg8[%c0_57, %c0_58] : memref<128x512xf32, #tpu.memory_space<vmem>>, vector<128x512xf32>
    tpu.vector_store %arg8[%c0_57, %c0_58], %172 {strides = array<i32>} : memref<128x512xf32, #tpu.memory_space<vmem>>, vector<128x512xf32>,
    return
  }
  func.func @transform_0(%arg0: i32) -> (i32, i32) {
    %c0_i32 = arith.constant 0 : i32
    %c0_i32_0 = arith.constant 0 : i32
    return %c0_i32, %arg0 : i32, i32
  }
  func.func @transform_1(%arg0: i32) -> (i32, i32) {
    %c0_i32 = arith.constant 0 : i32
    %c0_i32_0 = arith.constant 0 : i32
    %c0_i32_1 = arith.constant 0 : i32
    return %c0_i32, %c0_i32_0 : i32, i32
  }
  func.func @transform_2(%arg0: i32) -> (i32, i32) {
    %c0_i32 = arith.constant 0 : i32
    %c0_i32_0 = arith.constant 0 : i32
    %c0_i32_1 = arith.constant 0 : i32
    return %c0_i32, %c0_i32_0 : i32, i32
  }
  func.func @transform_3(%arg0: i32) -> (i32, i32) {
    %c0_i32 = arith.constant 0 : i32
    %c0_i32_0 = arith.constant 0 : i32
    %c0_i32_1 = arith.constant 0 : i32
    return %c0_i32, %c0_i32_0 : i32, i32
  }
  func.func @transform_4(%arg0: i32) -> (i32, i32) {
    %c0_i32 = arith.constant 0 : i32
    %c0_i32_0 = arith.constant 0 : i32
    %c0_i32_1 = arith.constant 0 : i32
    return %c0_i32, %c0_i32_0 : i32, i32
  }
  func.func @transform_5(%arg0: i32) -> (i32, i32) {
    %c0_i32 = arith.constant 0 : i32
    %c0_i32_0 = arith.constant 0 : i32
    %c0_i32_1 = arith.constant 0 : i32
    return %c0_i32, %c0_i32_0 : i32, i32
  }
  func.func @transform_6(%arg0: i32) -> (i32, i32) {
    %c0_i32 = arith.constant 0 : i32
    %c0_i32_0 = arith.constant 0 : i32
    %c0_i32_1 = arith.constant 0 : i32
    return %c0_i32, %c0_i32_0 : i32, i32
  }
  func.func @transform_7(%arg0: i32) -> (i32, i32) {
    %c0_i32 = arith.constant 0 : i32
    %c0_i32_0 = arith.constant 0 : i32
    return %c0_i32, %arg0 : i32, i32
  }
}

</mosaic_0001>

<llo_original>
// kernel: tpu_custom_call.1
$region0: #{tpu_custom_call.1}
  #allocation0 [shape = 'u32[]', space=smem, size = 0x4, offset = 0x4, fixed_abs, tag = 'smem constant byte address 0x4 - core index']
  #allocation1 [shape = 'u32[72,128]{1,0:T(1,128)}', space=vmem, size = 0x9000, scoped, tag = 'internal scratch']
  %s0 = inlined_call_operand.hbm [shape: f32[64,1024], index: 0, kind: input, shape index: {}]
  %s1 = inlined_call_operand.vmem [shape: bf16[16,64], index: 1, kind: input, shape index: {}]
  %s2 = inlined_call_operand.vmem [shape: f32[16,1], index: 2, kind: input, shape index: {}]
  %s3 = inlined_call_operand.vmem [shape: bf16[64,144], index: 3, kind: input, shape index: {}]
  %s4 = inlined_call_operand.vmem [shape: bf16[32,64], index: 4, kind: input, shape index: {}]
  %s5 = inlined_call_operand.vmem [shape: f32[32,1], index: 5, kind: input, shape index: {}]
  %s6 = inlined_call_operand.vmem [shape: bf16[128,288], index: 6, kind: input, shape index: {}]
  %s7 = inlined_call_operand.hbm [shape: f32[128,1024], index: 7, kind: output, shape index: {}]
  %s8 = sld [smem:[#allocation0]]
  $region65: #{tpu_custom_call.1} parent=0
    _
  %s10 = ssub.s32 1, %s8
  %s11 = scalar_select 0, %s10, %s8
  $region1: #{tpu_custom_call.1} parent=0
    #allocation2 [shape = 'u8[262144]{0}', space=vmem, size = 0x40000, scoped, tag = 'input window, operand 0']
    #allocation3 [shape = 's32[2]{0}', space=sflag, size = 0x8, scoped, tag = 'scoped memory for tpu_custom_call.1']
    #allocation4 [shape = 's32[2]{0}', space=sflag, size = 0x8, scoped, tag = 'scoped memory for tpu_custom_call.1']
    #allocation5 [shape = 'u8[524288]{0}', space=vmem, size = 0x80000, scoped, tag = 'output window, operand 0']
    %12 = vsyncpa [#allocation3], 0
    %s13 = scalar_lea.sflag [#allocation3], 1
    %14 = vsyncpa %s13, 0
    %15 = vsyncpa [#allocation4], 0
    %s16 = scalar_lea.sflag [#allocation4], 1
    %17 = vsyncpa %s16, 0
    loop: start=0, step=1, limit=4
    $region2: #{tpu_custom_call.1} parent=1 // loop_pre_header
      _
    $region3: #{tpu_custom_call.1} parent=1 // loop_header
      %s19 = sphi 0, %s23
      %p20 = scmp.ge.s32.totalorder %s19, 4
      %s29 = sphi 0, %s31
      %s32 = sphi 0, %s29
      %s33 = sphi 0, %s32
      %s49 = sphi 0, %s33
      %s53 = sphi 0, %s53
      %s55 = sphi 0, %s53
      %s56 = sphi 0, %s55
      %s70 = sphi 0, %s56
      %s74 = sphi 0, %s74
      %s76 = sphi 0, %s74
      %s77 = sphi 0, %s76
      %s91 = sphi 0, %s77
      %s95 = sphi 0, %s95
      %s97 = sphi 0, %s95
      %s98 = sphi 0, %s97
      %s112 = sphi 0, %s98
      %s116 = sphi 0, %s116
      %s118 = sphi 0, %s116
      %s119 = sphi 0, %s118
      %s133 = sphi 0, %s119
      %s137 = sphi 0, %s137
      %s139 = sphi 0, %s137
      %s140 = sphi 0, %s139
      %s154 = sphi 0, %s140
      %s158 = sphi 0, %s158
      %s160 = sphi 0, %s158
      %s161 = sphi 0, %s160
      %s175 = sphi 0, %s161
      %s181 = sphi 0, %s183
      %s184 = sphi 0, %s181
      %s185 = sphi 0, %s184
      %s201 = sphi 0, %s185
    $region4: #{tpu_custom_call.1} parent=1 // loop_header_branch
      %22 = sbr.rel (%p20) target = $region8
    $region5: #{tpu_custom_call.1} parent=1 // loop_body
      %s24 = ssub.s32 %s19, 1
      %s25 = ssub.s32 %s19, 2
      %s26 = sadd.s32 %s19, 1
      %s27 = ssub.s32 %s19, %s26
      %p28 = scmp.eq.s32.totalorder %s27, 0
      %s30 = sadd.s32 %s29, 1
      %s31 = scalar_select %p28, %s29, %s30
      %p34 = pneg %p28
      %p35 = scmp.eq.s32.totalorder %s19, 1
      %p36 = por %p34, %p35
      %p37 = scmp.ne.s32.totalorder %s29, %s32
      %p38 = scmp.eq.s32.totalorder %s19, 0
      %p39 = por %p37, %p38
      %p40 = scmp.ne.s32.totalorder %s29, %s32
      %p41 = scmp.eq.s32.totalorder %s24, 1
      %p42 = por %p40, %p41
      %p43 = scmp.ne.s32.totalorder %s32, %s33
      %p44 = scmp.eq.s32.totalorder %s24, 0
      %p45 = por %p43, %p44
      %p46 = scmp.ne.s32.totalorder %s32, %s33
      %p47 = scmp.eq.s32.totalorder %s25, 1
      %p48 = por %p46, %p47
      %p50 = scmp.ne.s32.totalorder %s33, %s49
      %p51 = scmp.eq.s32.totalorder %s25, 0
      %p52 = por %p50, %p51
      %s54 = sadd.s32 %s53, 1
      %p57 = scmp.eq.s32.totalorder %s19, 1
      %p58 = scmp.ne.s32.totalorder %s53, %s55
      %p59 = scmp.eq.s32.totalorder %s19, 0
      %p60 = por %p58, %p59
      %p61 = scmp.ne.s32.totalorder %s53, %s55
      %p62 = scmp.eq.s32.totalorder %s24, 1
      %p63 = por %p61, %p62
      %p64 = scmp.ne.s32.totalorder %s55, %s56
      %p65 = scmp.eq.s32.totalorder %s24, 0
      %p66 = por %p64, %p65
      %p67 = scmp.ne.s32.totalorder %s55, %s56
      %p68 = scmp.eq.s32.totalorder %s25, 1
      %p69 = por %p67, %p68
      %p71 = scmp.ne.s32.totalorder %s56, %s70
      %p72 = scmp.eq.s32.totalorder %s25, 0
      %p73 = por %p71, %p72
      %s75 = sadd.s32 %s74, 1
      %p78 = scmp.eq.s32.totalorder %s19, 1
      %p79 = scmp.ne.s32.totalorder %s74, %s76
      %p80 = scmp.eq.s32.totalorder %s19, 0
      %p81 = por %p79, %p80
      %p82 = scmp.ne.s32.totalorder %s74, %s76
      %p83 = scmp.eq.s32.totalorder %s24, 1
      %p84 = por %p82, %p83
      %p85 = scmp.ne.s32.totalorder %s76, %s77
      %p86 = scmp.eq.s32.totalorder %s24, 0
      %p87 = por %p85, %p86
      %p88 = scmp.ne.s32.totalorder %s76, %s77
      %p89 = scmp.eq.s32.totalorder %s25, 1
      %p90 = por %p88, %p89
      %p92 = scmp.ne.s32.totalorder %s77, %s91
      %p93 = scmp.eq.s32.totalorder %s25, 0
      %p94 = por %p92, %p93
      %s96 = sadd.s32 %s95, 1
      %p99 = scmp.eq.s32.totalorder %s19, 1
      %p100 = scmp.ne.s32.totalorder %s95, %s97
      %p101 = scmp.eq.s32.totalorder %s19, 0
      %p102 = por %p100, %p101
      %p103 = scmp.ne.s32.totalorder %s95, %s97
      %p104 = scmp.eq.s32.totalorder %s24, 1
      %p105 = por %p103, %p104
      %p106 = scmp.ne.s32.totalorder %s97, %s98
      %p107 = scmp.eq.s32.totalorder %s24, 0
      %p108 = por %p106, %p107
      %p109 = scmp.ne.s32.totalorder %s97, %s98
      %p110 = scmp.eq.s32.totalorder %s25, 1
      %p111 = por %p109, %p110
      %p113 = scmp.ne.s32.totalorder %s98, %s112
      %p114 = scmp.eq.s32.totalorder %s25, 0
      %p115 = por %p113, %p114
      %s117 = sadd.s32 %s116, 1
      %p120 = scmp.eq.s32.totalorder %s19, 1
      %p121 = scmp.ne.s32.totalorder %s116, %s118
      %p122 = scmp.eq.s32.totalorder %s19, 0
      %p123 = por %p121, %p122
      %p124 = scmp.ne.s32.totalorder %s116, %s118
      %p125 = scmp.eq.s32.totalorder %s24, 1
      %p126 = por %p124, %p125
      %p127 = scmp.ne.s32.totalorder %s118, %s119
      %p128 = scmp.eq.s32.totalorder %s24, 0
      %p129 = por %p127, %p128
      %p130 = scmp.ne.s32.totalorder %s118, %s119
      %p131 = scmp.eq.s32.totalorder %s25, 1
      %p132 = por %p130, %p131
      %p134 = scmp.ne.s32.totalorder %s119, %s133
      %p135 = scmp.eq.s32.totalorder %s25, 0
      %p136 = por %p134, %p135
      %s138 = sadd.s32 %s137, 1
      %p141 = scmp.eq.s32.totalorder %s19, 1
      %p142 = scmp.ne.s32.totalorder %s137, %s139
      %p143 = scmp.eq.s32.totalorder %s19, 0
      %p144 = por %p142, %p143
      %p145 = scmp.ne.s32.totalorder %s137, %s139
      %p146 = scmp.eq.s32.totalorder %s24, 1
      %p147 = por %p145, %p146
      %p148 = scmp.ne.s32.totalorder %s139, %s140
      %p149 = scmp.eq.s32.totalorder %s24, 0
      %p150 = por %p148, %p149
      %p151 = scmp.ne.s32.totalorder %s139, %s140
      %p152 = scmp.eq.s32.totalorder %s25, 1
      %p153 = por %p151, %p152
      %p155 = scmp.ne.s32.totalorder %s140, %s154
      %p156 = scmp.eq.s32.totalorder %s25, 0
      %p157 = por %p155, %p156
      %s159 = sadd.s32 %s158, 1
      %p162 = scmp.eq.s32.totalorder %s19, 1
      %p163 = scmp.ne.s32.totalorder %s158, %s160
      %p164 = scmp.eq.s32.totalorder %s19, 0
      %p165 = por %p163, %p164
      %p166 = scmp.ne.s32.totalorder %s158, %s160
      %p167 = scmp.eq.s32.totalorder %s24, 1
      %p168 = por %p166, %p167
      %p169 = scmp.ne.s32.totalorder %s160, %s161
      %p170 = scmp.eq.s32.totalorder %s24, 0
      %p171 = por %p169, %p170
      %p172 = scmp.ne.s32.totalorder %s160, %s161
      %p173 = scmp.eq.s32.totalorder %s25, 1
      %p174 = por %p172, %p173
      %p176 = scmp.ne.s32.totalorder %s161, %s175
      %p177 = scmp.eq.s32.totalorder %s25, 0
      %p178 = por %p176, %p177
      %s179 = ssub.s32 %s19, %s26
      %p180 = scmp.eq.s32.totalorder %s179, 0
      %s182 = sadd.s32 %s181, 1
      %s183 = scalar_select %p180, %s181, %s182
      %p186 = pneg %p180
      %p187 = scmp.eq.s32.totalorder %s19, 1
      %p188 = por %p186, %p187
      %p189 = scmp.ne.s32.totalorder %s181, %s184
      %p190 = scmp.eq.s32.totalorder %s19, 0
      %p191 = por %p189, %p190
      %p192 = scmp.ne.s32.totalorder %s181, %s184
      %p193 = scmp.eq.s32.totalorder %s24, 1
      %p194 = por %p192, %p193
      %p195 = scmp.ne.s32.totalorder %s184, %s185
      %p196 = scmp.eq.s32.totalorder %s24, 0
      %p197 = por %p195, %p196
      %p198 = scmp.ne.s32.totalorder %s184, %s185
      %p199 = scmp.eq.s32.totalorder %s25, 1
      %p200 = por %p198, %p199
      %p202 = scmp.ne.s32.totalorder %s185, %s201
      %p203 = scmp.eq.s32.totalorder %s25, 0
      %p204 = por %p202, %p203
      %p205 = scmp.le.s32.totalorder 1, %s19
      %p206 = scmp.lt.s32.totalorder %s19, 3
      %p207 = pnand %p205, %p206
      %p208 = pneg %p207
      // Predicated region
      $region9: #{tpu_custom_call.1} parent=5 // pred_check
        _
      $region10: #{tpu_custom_call.1} parent=5 // pred_check_branch
        %210 = sbr.rel (%p207) target = $region12
      $region11: #{tpu_custom_call.1} parent=5 // pred_region
        %s211 = ssub.s32 %s19, 1
        // Predicated region
        $region13: #{tpu_custom_call.1} parent=11 // pred_check
          %p212 = pneg %p66
        $region14: #{tpu_custom_call.1} parent=11 // pred_check_branch
          %214 = sbr.rel (%p212) target = $region16
        $region15: #{tpu_custom_call.1} parent=11 // pred_region
          _
        $region16: #{tpu_custom_call.1} parent=11 // pred_fallthru
          _
        // Predicated region
        $region17: #{tpu_custom_call.1} parent=11 // pred_check
          %p215 = pneg %p87
        $region18: #{tpu_custom_call.1} parent=11 // pred_check_branch
          %217 = sbr.rel (%p215) target = $region20
        $region19: #{tpu_custom_call.1} parent=11 // pred_region
          _
        $region20: #{tpu_custom_call.1} parent=11 // pred_fallthru
          _
        // Predicated region
        $region21: #{tpu_custom_call.1} parent=11 // pred_check
          %p218 = pneg %p108
        $region22: #{tpu_custom_call.1} parent=11 // pred_check_branch
          %220 = sbr.rel (%p218) target = $region24
        $region23: #{tpu_custom_call.1} parent=11 // pred_region
          _
        $region24: #{tpu_custom_call.1} parent=11 // pred_fallthru
          _
        // Predicated region
        $region25: #{tpu_custom_call.1} parent=11 // pred_check
          %p221 = pneg %p129
        $region26: #{tpu_custom_call.1} parent=11 // pred_check_branch
          %223 = sbr.rel (%p221) target = $region28
        $region27: #{tpu_custom_call.1} parent=11 // pred_region
          _
        $region28: #{tpu_custom_call.1} parent=11 // pred_fallthru
          _
        // Predicated region
        $region29: #{tpu_custom_call.1} parent=11 // pred_check
          %p224 = pneg %p150
        $region30: #{tpu_custom_call.1} parent=11 // pred_check_branch
          %226 = sbr.rel (%p224) target = $region32
        $region31: #{tpu_custom_call.1} parent=11 // pred_region
          _
        $region32: #{tpu_custom_call.1} parent=11 // pred_fallthru
          _
        // Predicated region
        $region33: #{tpu_custom_call.1} parent=11 // pred_check
          %p227 = pneg %p171
        $region34: #{tpu_custom_call.1} parent=11 // pred_check_branch
          %229 = sbr.rel (%p227) target = $region36
        $region35: #{tpu_custom_call.1} parent=11 // pred_region
          _
        $region36: #{tpu_custom_call.1} parent=11 // pred_fallthru
          _
      $region12: #{tpu_custom_call.1} parent=5 // pred_fallthru
        _
      %p230 = scmp.lt.s32.totalorder %s19, 2
      // Predicated region
      $region37: #{tpu_custom_call.1} parent=5 // pred_check
        %p231 = pneg %p230
      $region38: #{tpu_custom_call.1} parent=5 // pred_check_branch
        %233 = sbr.rel (%p231) target = $region40
      $region39: #{tpu_custom_call.1} parent=5 // pred_region
        // Predicated region
        $region41: #{tpu_custom_call.1} parent=39 // pred_check
          %p234 = pneg %p39
        $region42: #{tpu_custom_call.1} parent=39 // pred_check_branch
          %236 = sbr.rel (%p234) target = $region44
        $region43: #{tpu_custom_call.1} parent=39 // pred_region
          %s237 = sand.u32 %s29, 1
          %s238 = scalar_lea.sflag [#allocation3], %s237
          %s239 = sand.u32 %s29, 1
          %s240 = smul.addr %s239, 256
          %s241 = scalar_lea.vmem [#allocation2], %s240
          %s242 = smul.u32 4, %s19
          %244 = vsyncadd %s238, 0
          %s245 = smul.addr %s242, 8
          %s246 = scalar_lea.hbm %s0, %s245
          %s247 = sshll.u32 %s246, 4
          %s248 = int_to_ptr.hbm [resolvable:$true] %s247
          %s249 = sshll.u32 %s241, 4
          %s250 = int_to_ptr.vmem [resolvable:$true] %s249
          %255 = dma.hbm_to_vmem [thread:$0]  %s248, 4096, %s250, %s238, 1024, 512, 32
        $region44: #{tpu_custom_call.1} parent=39 // pred_fallthru
          _
      $region40: #{tpu_custom_call.1} parent=5 // pred_fallthru
        _
      %p256 = scmp.le.s32.totalorder 1, %s19
      %p257 = scmp.lt.s32.totalorder %s19, 3
      %p258 = pnand %p256, %p257
      %p259 = pneg %p258
      // Predicated region
      $region45: #{tpu_custom_call.1} parent=5 // pred_check
        _
      $region46: #{tpu_custom_call.1} parent=5 // pred_check_branch
        %261 = sbr.rel (%p258) target = $region48
      $region47: #{tpu_custom_call.1} parent=5 // pred_region
        %s262 = ssub.s32 %s19, 1
        %s263 = sand.u32 %s32, 1
        %s264 = scalar_lea.sflag [#allocation3], %s263
        %s265 = sand.u32 %s32, 1
        %s266 = smul.addr %s265, 256
        %s267 = scalar_lea.vmem [#allocation2], %s266
        // Predicated region
        $region49: #{tpu_custom_call.1} parent=47 // pred_check
          %p268 = pneg %p45
        $region50: #{tpu_custom_call.1} parent=47 // pred_check_branch
          %270 = sbr.rel (%p268) target = $region52
        $region51: #{tpu_custom_call.1} parent=47 // pred_region
          %272 = dma.done %s264, 4096
        $region52: #{tpu_custom_call.1} parent=47 // pred_fallthru
          _
        %s273 = sand.u32 %s32, 1
        %s274 = scalar_lea.sflag [#allocation3], %s273
        %s275 = sand.u32 %s32, 1
        %s276 = smul.addr %s275, 256
        %s277 = scalar_lea.vmem [#allocation2], %s276
        %p278 = pneg %p45
        %p279 = pneg %p42
        %p280 = pneg %p66
        %p281 = pneg %p63
        %p282 = pneg %p87
        %p283 = pneg %p84
        %p284 = pneg %p108
        %p285 = pneg %p105
        %p286 = pneg %p129
        %p287 = pneg %p126
        %p288 = pneg %p150
        %p289 = pneg %p147
        %p290 = pneg %p171
        %p291 = pneg %p168
        %p292 = pneg %p197
        %p293 = pneg %p194
        %s294 = sand.u32 %s184, 1
        %s295 = scalar_lea.sflag [#allocation4], %s294
        %s296 = sand.u32 %s184, 1
        %s297 = smul.addr %s296, 512
        %s298 = scalar_lea.vmem [#allocation5], %s297
        %s299 = smul.u32 4, %s24
        %s300 = smul.u32 4, %s24
        %v302 = vlaneseq
        %v303 = vand.u32 %v302, 127
        %v304 = vadd.s32 %v303, 128
        %v305 = vadd.s32 %v303, 256
        %v306 = vadd.s32 %v303, 384
        %vm307 = vcmp.lt.s32.totalorder %v303, 0
        %v308 = vsub.s32 0, %v303
        %v309 = vsel %vm307, %v308, %v303
        %v310 = vshrl.u32 %v309, 7
        %v311 = vand.u32 %v309, 127
        %v312 = vsub.s32 0, %v311
        %v313 = vsel %vm307, %v312, %v311
        %vm314 = vcmp.lt.s32.totalorder %v304, 0
        %v315 = vsub.s32 0, %v304
        %v316 = vsel %vm314, %v315, %v304
        %v317 = vshrl.u32 %v316, 7
        %v318 = vand.u32 %v316, 127
        %v319 = vsub.s32 0, %v318
        %v320 = vsel %vm314, %v319, %v318
        %vm321 = vcmp.lt.s32.totalorder %v305, 0
        %v322 = vsub.s32 0, %v305
        %v323 = vsel %vm321, %v322, %v305
        %v324 = vshrl.u32 %v323, 7
        %v325 = vand.u32 %v323, 127
        %v326 = vsub.s32 0, %v325
        %v327 = vsel %vm321, %v326, %v325
        %vm328 = vcmp.lt.s32.totalorder %v306, 0
        %v329 = vsub.s32 0, %v306
        %v330 = vsel %vm328, %v329, %v306
        %v331 = vshrl.u32 %v330, 7
        %v332 = vand.u32 %v330, 127
        %v333 = vsub.s32 0, %v332
        %v334 = vsel %vm328, %v333, %v332
        %vm335 = vcmp.ne.s32.totalorder %v313, 0
        %vm336 = vcmp.ne.s32.totalorder %v320, 0
        %vm337 = vcmp.ne.s32.totalorder %v327, 0
        %vm338 = vcmp.ne.s32.totalorder %v334, 0
        %vm339 = vcmp.lt.s32.totalorder %v313, 0
        %vm340 = vcmp.lt.s32.totalorder %v320, 0
        %vm341 = vcmp.lt.s32.totalorder %v327, 0
        %vm342 = vcmp.lt.s32.totalorder %v334, 0
        %vm343 = vmand %vm339, %vm335
        %vm344 = vmand %vm340, %vm336
        %vm345 = vmand %vm341, %vm337
        %vm346 = vmand %vm342, %vm338
        %v347 = vadd.s32 %v313, 128
        %v348 = vadd.s32 %v320, 128
        %v349 = vadd.s32 %v327, 128
        %v350 = vadd.s32 %v334, 128
        %v351 = vsel %vm343, %v347, %v313
        %v352 = vsel %vm344, %v348, %v320
        %v353 = vsel %vm345, %v349, %v327
        %v354 = vsel %vm346, %v350, %v334
        %vm355 = vcmp.ge.s32.totalorder %v351, 8
        %vm356 = vcmp.ge.s32.totalorder %v352, 8
        %vm357 = vcmp.ge.s32.totalorder %v353, 8
        %vm358 = vcmp.ge.s32.totalorder %v354, 8
        %vm359 = vcmp.ge.s32.totalorder %v351, 4
        %vm360 = vcmp.ge.s32.totalorder %v352, 4
        %vm361 = vcmp.ge.s32.totalorder %v353, 4
        %vm362 = vcmp.ge.s32.totalorder %v354, 4
        %vm363 = vcmp.ge.s32.totalorder %v351, 2
        %vm364 = vcmp.ge.s32.totalorder %v352, 2
        %vm365 = vcmp.ge.s32.totalorder %v353, 2
        %vm366 = vcmp.ge.s32.totalorder %v354, 2
        %vm367 = vcmp.ge.s32.totalorder %v351, 1
        %vm368 = vcmp.ge.s32.totalorder %v352, 1
        %vm369 = vcmp.ge.s32.totalorder %v353, 1
        %vm370 = vcmp.ge.s32.totalorder %v354, 1
        %vm371 = vcmp.lt.s32.totalorder %v351, 127
        %vm372 = vcmp.lt.s32.totalorder %v352, 127
        %vm373 = vcmp.lt.s32.totalorder %v353, 127
        %vm374 = vcmp.lt.s32.totalorder %v354, 127
        %vm375 = vcmp.lt.s32.totalorder %v351, 126
        %vm376 = vcmp.lt.s32.totalorder %v352, 126
        %vm377 = vcmp.lt.s32.totalorder %v353, 126
        %vm378 = vcmp.lt.s32.totalorder %v354, 126
        %vm379 = vcmp.lt.s32.totalorder %v351, 124
        %vm380 = vcmp.lt.s32.totalorder %v352, 124
        %vm381 = vcmp.lt.s32.totalorder %v353, 124
        %vm382 = vcmp.lt.s32.totalorder %v354, 124
        %vm383 = vcmp.lt.s32.totalorder %v351, 120
        %vm384 = vcmp.lt.s32.totalorder %v352, 120
        %vm385 = vcmp.lt.s32.totalorder %v353, 120
        %vm386 = vcmp.lt.s32.totalorder %v354, 120
        %v387 = vld [vmem:[%s267] sm:$0xff]
        %v388 = vld [vmem:[%s267 + $0x8] sm:$0xff]
        %v389 = vld [vmem:[%s267 + $0x10] sm:$0xff]
        %v390 = vld [vmem:[%s267 + $0x18] sm:$0xff]
        %v391 = vld [vmem:[%s267 + $0x20] sm:$0xff]
        %v392 = vld [vmem:[%s267 + $0x28] sm:$0xff]
        %v393 = vld [vmem:[%s267 + $0x30] sm:$0xff]
        %v394 = vld [vmem:[%s267 + $0x38] sm:$0xff]
        %v395 = vld [vmem:[%s267 + $0x40] sm:$0xff]
        %v396 = vld [vmem:[%s267 + $0x48] sm:$0xff]
        %v397 = vld [vmem:[%s267 + $0x50] sm:$0xff]
        %v398 = vld [vmem:[%s267 + $0x58] sm:$0xff]
        %v399 = vld [vmem:[%s267 + $0x60] sm:$0xff]
        %v400 = vld [vmem:[%s267 + $0x68] sm:$0xff]
        %v401 = vld [vmem:[%s267 + $0x70] sm:$0xff]
        %v402 = vld [vmem:[%s267 + $0x78] sm:$0xff]
        %v403 = vld [vmem:[%s267 + $0x80] sm:$0xff]
        %v404 = vld [vmem:[%s267 + $0x88] sm:$0xff]
        %v405 = vld [vmem:[%s267 + $0x90] sm:$0xff]
        %v406 = vld [vmem:[%s267 + $0x98] sm:$0xff]
        %v407 = vld [vmem:[%s267 + $0xa0] sm:$0xff]
        %v408 = vld [vmem:[%s267 + $0xa8] sm:$0xff]
        %v409 = vld [vmem:[%s267 + $0xb0] sm:$0xff]
        %v410 = vld [vmem:[%s267 + $0xb8] sm:$0xff]
        %v411 = vld [vmem:[%s267 + $0xc0] sm:$0xff]
        %v412 = vld [vmem:[%s267 + $0xc8] sm:$0xff]
        %v413 = vld [vmem:[%s267 + $0xd0] sm:$0xff]
        %v414 = vld [vmem:[%s267 + $0xd8] sm:$0xff]
        %v415 = vld [vmem:[%s267 + $0xe0] sm:$0xff]
        %v416 = vld [vmem:[%s267 + $0xe8] sm:$0xff]
        %v417 = vld [vmem:[%s267 + $0xf0] sm:$0xff]
        %v418 = vld [vmem:[%s267 + $0xf8] sm:$0xff]
        %v419 = vpack.c.bf16 %v391, %v387
        %v420 = vpack.c.bf16 %v392, %v388
        %v421 = vpack.c.bf16 %v393, %v389
        %v422 = vpack.c.bf16 %v394, %v390
        %v423 = vpack.c.bf16 %v399, %v395
        %v424 = vpack.c.bf16 %v400, %v396
        %v425 = vpack.c.bf16 %v401, %v397
        %v426 = vpack.c.bf16 %v402, %v398
        %v427 = vpack.c.bf16 %v407, %v403
        %v428 = vpack.c.bf16 %v408, %v404
        %v429 = vpack.c.bf16 %v409, %v405
        %v430 = vpack.c.bf16 %v410, %v406
        %v431 = vpack.c.bf16 %v415, %v411
        %v432 = vpack.c.bf16 %v416, %v412
        %v433 = vpack.c.bf16 %v417, %v413
        %v434 = vpack.c.bf16 %v418, %v414
        %v435 = vld [vmem:[%s1] sm:$0xf]
        %v436 = vld [vmem:[%s1 + $0x4] sm:$0xf]
        %v437 = vld [vmem:[%s2] sm:$0xff]
        %v438 = vld [vmem:[%s2 + $0x8] sm:$0xff]
        %440 = vset.pattern.permute.xlu0 0
        %441 = vperm.xlu0 %440, %v437
        %v442 = vpop.permute.xlu0 %441
        %445 = vset.pattern.permute.xlu0 0
        %446 = vperm.xlu0 %445, %v438
        %v447 = vpop.permute.xlu0 %446
        %v451 = vunpack.c.l.b16 %v435
        %v452 = vunpack.c.l.b16 %v436
        %v453 = vpack.c.b16 %v452, %v451
        %vm454 = vcmask 523264
        %v456 = vsel %vm454, %v453, 0
        %458 = vmatpush.bf16.msra.mxu0 0
        %459 = vmatpush.bf16.msra.mxu0 0
        %460 = vmatpush.bf16.msra.mxu0 0
        %461 = vmatpush.bf16.msra.mxu0 0
        %462 = vmatpush.bf16.msra.mxu0 %v431
        %463 = vmatpush.bf16.msra.mxu0 %v427
        %464 = vmatpush.bf16.msra.mxu0 %v423
        %465 = vmatpush.bf16.msra.mxu0 %v419
        %466 = vmatmul.bf16.gmra.mxu0 %v456
        %v467 = vpop.f32.mrf.mxu0
        %v468 = vadd.f32 %v442, %v467
        %v469 = vpop.f32.mrf.mxu0
        %v470 = vadd.f32 %v447, %v469
        %471 = vdwg.mxu0
        %472 = vmatpush.bf16.msra.mxu0 0
        %473 = vmatpush.bf16.msra.mxu0 0
        %474 = vmatpush.bf16.msra.mxu0 0
        %475 = vmatpush.bf16.msra.mxu0 0
        %476 = vmatpush.bf16.msra.mxu0 %v432
        %477 = vmatpush.bf16.msra.mxu0 %v428
        %478 = vmatpush.bf16.msra.mxu0 %v424
        %479 = vmatpush.bf16.msra.mxu0 %v420
        %480 = vmatmul.bf16.gmra.mxu0 %v456
        %v481 = vpop.f32.mrf.mxu0
        %v482 = vadd.f32 %v442, %v481
        %v483 = vpop.f32.mrf.mxu0
        %v484 = vadd.f32 %v447, %v483
        %485 = vdwg.mxu0
        %486 = vmatpush.bf16.msra.mxu0 0
        %487 = vmatpush.bf16.msra.mxu0 0
        %488 = vmatpush.bf16.msra.mxu0 0
        %489 = vmatpush.bf16.msra.mxu0 0
        %490 = vmatpush.bf16.msra.mxu0 %v433
        %491 = vmatpush.bf16.msra.mxu0 %v429
        %492 = vmatpush.bf16.msra.mxu0 %v425
        %493 = vmatpush.bf16.msra.mxu0 %v421
        %494 = vmatmul.bf16.gmra.mxu0 %v456
        %v495 = vpop.f32.mrf.mxu0
        %v496 = vadd.f32 %v442, %v495
        %v497 = vpop.f32.mrf.mxu0
        %v498 = vadd.f32 %v447, %v497
        %499 = vdwg.mxu0
        %500 = vmatpush.bf16.msra.mxu0 0
        %501 = vmatpush.bf16.msra.mxu0 0
        %502 = vmatpush.bf16.msra.mxu0 0
        %503 = vmatpush.bf16.msra.mxu0 0
        %504 = vmatpush.bf16.msra.mxu0 %v434
        %505 = vmatpush.bf16.msra.mxu0 %v430
        %506 = vmatpush.bf16.msra.mxu0 %v426
        %507 = vmatpush.bf16.msra.mxu0 %v422
        %508 = vmatmul.bf16.gmra.mxu0 %v456
        %v509 = vpop.f32.mrf.mxu0
        %v510 = vadd.f32 %v442, %v509
        %v511 = vpop.f32.mrf.mxu0
        %v512 = vadd.f32 %v447, %v511
        %513 = vdwg.mxu0
        %vm514 = vcmp.gt.f32.partialorder %v468, 0.0
        %vm515 = vcmp.gt.f32.partialorder %v482, 0.0
        %vm516 = vcmp.gt.f32.partialorder %v496, 0.0
        %vm517 = vcmp.gt.f32.partialorder %v510, 0.0
        %vm518 = vcmp.gt.f32.partialorder %v470, 0.0
        %vm519 = vcmp.gt.f32.partialorder %v484, 0.0
        %vm520 = vcmp.gt.f32.partialorder %v498, 0.0
        %vm521 = vcmp.gt.f32.partialorder %v512, 0.0
        %v522 = vmul.f32 %v468, 0.25
        %v523 = vmul.f32 %v482, 0.25
        %v524 = vmul.f32 %v496, 0.25
        %v525 = vmul.f32 %v510, 0.25
        %v526 = vmul.f32 %v470, 0.25
        %v527 = vmul.f32 %v484, 0.25
        %v528 = vmul.f32 %v498, 0.25
        %v529 = vmul.f32 %v512, 0.25
        %v530 = vsel %vm514, %v468, %v522
        %v531 = vsel %vm515, %v482, %v523
        %v532 = vsel %vm516, %v496, %v524
        %v533 = vsel %vm517, %v510, %v525
        %v534 = vsel %vm518, %v470, %v526
        %v535 = vsel %vm519, %v484, %v527
        %v536 = vsel %vm520, %v498, %v528
        %v537 = vsel %vm521, %v512, %v529
        %v538 = vpack.c.bf16 %v531, %v530
        %v539 = vpack.c.bf16 %v533, %v532
        %v540 = vpack.c.bf16 %v535, %v534
        %v541 = vpack.c.bf16 %v537, %v536
        %542 = vrot.lane.b32.xlu0 %v530, 8
        %v543 = vpop.permute.xlu0 %542
        %544 = vrot.lane.b32.xlu0 %v534, 8
        %v545 = vpop.permute.xlu0 %544
        %546 = vrot.lane.b32.xlu0 %v531, 8
        %v547 = vpop.permute.xlu0 %546
        %548 = vrot.lane.b32.xlu0 %v535, 8
        %v549 = vpop.permute.xlu0 %548
        %550 = vrot.lane.b32.xlu0 %v532, 8
        %v551 = vpop.permute.xlu0 %550
        %552 = vrot.lane.b32.xlu0 %v536, 8
        %v553 = vpop.permute.xlu0 %552
        %554 = vrot.lane.b32.xlu0 %v533, 8
        %v555 = vpop.permute.xlu0 %554
        %556 = vrot.lane.b32.xlu0 %v537, 8
        %v557 = vpop.permute.xlu0 %556
        %vm558 = vcmp.lt.s32.totalorder %v303, 8
        %v559 = vsel %vm558, %v551, %v555
        %v560 = vsel %vm558, %v553, %v557
        %v561 = vsel %vm558, %v547, %v551
        %v562 = vsel %vm558, %v549, %v553
        %v563 = vsel %vm558, %v543, %v547
        %v564 = vsel %vm558, %v545, %v549
        %v565 = vsel %vm558, %v555, %v543
        %v566 = vsel %vm558, %v557, %v545
        %v567 = vsel %vm355, 1, 0
        %v568 = vsel %vm356, 1, 0
        %v569 = vsel %vm357, 1, 0
        %v570 = vsel %vm358, 1, 0
        %vm571 = vcmp.eq.s32.totalorder %v567, 1
        %vm572 = vcmp.eq.s32.totalorder %v568, 1
        %vm573 = vcmp.eq.s32.totalorder %v569, 1
        %vm574 = vcmp.eq.s32.totalorder %v570, 1
        %v575 = vsel %vm571, %v565, 0.0
        %v576 = vsel %vm572, %v563, 0.0
        %v577 = vsel %vm573, %v561, 0.0
        %v578 = vsel %vm574, %v559, 0.0
        %v579 = vsel %vm571, %v566, 0.0
        %v580 = vsel %vm572, %v564, 0.0
        %v581 = vsel %vm573, %v562, 0.0
        %v582 = vsel %vm574, %v560, 0.0
        %v583 = vpack.c.bf16 %v576, %v575
        %v584 = vpack.c.bf16 %v578, %v577
        %v585 = vpack.c.bf16 %v580, %v579
        %v586 = vpack.c.bf16 %v582, %v581
        %587 = vrot.lane.b32.xlu0 %v530, 4
        %v588 = vpop.permute.xlu0 %587
        %589 = vrot.lane.b32.xlu0 %v534, 4
        %v590 = vpop.permute.xlu0 %589
        %591 = vrot.lane.b32.xlu0 %v531, 4
        %v592 = vpop.permute.xlu0 %591
        %593 = vrot.lane.b32.xlu0 %v535, 4
        %v594 = vpop.permute.xlu0 %593
        %595 = vrot.lane.b32.xlu0 %v532, 4
        %v596 = vpop.permute.xlu0 %595
        %597 = vrot.lane.b32.xlu0 %v536, 4
        %v598 = vpop.permute.xlu0 %597
        %599 = vrot.lane.b32.xlu0 %v533, 4
        %v600 = vpop.permute.xlu0 %599
        %601 = vrot.lane.b32.xlu0 %v537, 4
        %v602 = vpop.permute.xlu0 %601
        %vm603 = vcmp.lt.s32.totalorder %v303, 4
        %v604 = vsel %vm603, %v596, %v600
        %v605 = vsel %vm603, %v598, %v602
        %v606 = vsel %vm603, %v592, %v596
        %v607 = vsel %vm603, %v594, %v598
        %v608 = vsel %vm603, %v588, %v592
        %v609 = vsel %vm603, %v590, %v594
        %v610 = vsel %vm603, %v600, %v588
        %v611 = vsel %vm603, %v602, %v590
        %v612 = vsel %vm359, 1, 0
        %v613 = vsel %vm360, 1, 0
        %v614 = vsel %vm361, 1, 0
        %v615 = vsel %vm362, 1, 0
        %vm616 = vcmp.eq.s32.totalorder %v612, 1
        %vm617 = vcmp.eq.s32.totalorder %v613, 1
        %vm618 = vcmp.eq.s32.totalorder %v614, 1
        %vm619 = vcmp.eq.s32.totalorder %v615, 1
        %v620 = vsel %vm616, %v610, 0.0
        %v621 = vsel %vm617, %v608, 0.0
        %v622 = vsel %vm618, %v606, 0.0
        %v623 = vsel %vm619, %v604, 0.0
        %v624 = vsel %vm616, %v611, 0.0
        %v625 = vsel %vm617, %v609, 0.0
        %v626 = vsel %vm618, %v607, 0.0
        %v627 = vsel %vm619, %v605, 0.0
        %v628 = vpack.c.bf16 %v621, %v620
        %v629 = vpack.c.bf16 %v623, %v622
        %v630 = vpack.c.bf16 %v625, %v624
        %v631 = vpack.c.bf16 %v627, %v626
        %632 = vrot.lane.b32.xlu0 %v530, 2
        %v633 = vpop.permute.xlu0 %632
        %634 = vrot.lane.b32.xlu0 %v534, 2
        %v635 = vpop.permute.xlu0 %634
        %636 = vrot.lane.b32.xlu0 %v531, 2
        %v637 = vpop.permute.xlu0 %636
        %638 = vrot.lane.b32.xlu0 %v535, 2
        %v639 = vpop.permute.xlu0 %638
        %640 = vrot.lane.b32.xlu0 %v532, 2
        %v641 = vpop.permute.xlu0 %640
        %642 = vrot.lane.b32.xlu0 %v536, 2
        %v643 = vpop.permute.xlu0 %642
        %644 = vrot.lane.b32.xlu0 %v533, 2
        %v645 = vpop.permute.xlu0 %644
        %646 = vrot.lane.b32.xlu0 %v537, 2
        %v647 = vpop.permute.xlu0 %646
        %vm648 = vcmp.lt.s32.totalorder %v303, 2
        %v649 = vsel %vm648, %v641, %v645
        %v650 = vsel %vm648, %v643, %v647
        %v651 = vsel %vm648, %v637, %v641
        %v652 = vsel %vm648, %v639, %v643
        %v653 = vsel %vm648, %v633, %v637
        %v654 = vsel %vm648, %v635, %v639
        %v655 = vsel %vm648, %v645, %v633
        %v656 = vsel %vm648, %v647, %v635
        %v657 = vsel %vm363, 1, 0
        %v658 = vsel %vm364, 1, 0
        %v659 = vsel %vm365, 1, 0
        %v660 = vsel %vm366, 1, 0
        %vm661 = vcmp.eq.s32.totalorder %v657, 1
        %vm662 = vcmp.eq.s32.totalorder %v658, 1
        %vm663 = vcmp.eq.s32.totalorder %v659, 1
        %vm664 = vcmp.eq.s32.totalorder %v660, 1
        %v665 = vsel %vm661, %v655, 0.0
        %v666 = vsel %vm662, %v653, 0.0
        %v667 = vsel %vm663, %v651, 0.0
        %v668 = vsel %vm664, %v649, 0.0
        %v669 = vsel %vm661, %v656, 0.0
        %v670 = vsel %vm662, %v654, 0.0
        %v671 = vsel %vm663, %v652, 0.0
        %v672 = vsel %vm664, %v650, 0.0
        %v673 = vpack.c.bf16 %v666, %v665
        %v674 = vpack.c.bf16 %v668, %v667
        %v675 = vpack.c.bf16 %v670, %v669
        %v676 = vpack.c.bf16 %v672, %v671
        %677 = vrot.lane.b32.xlu0 %v530, 1
        %v678 = vpop.permute.xlu0 %677
        %679 = vrot.lane.b32.xlu0 %v534, 1
        %v680 = vpop.permute.xlu0 %679
        %681 = vrot.lane.b32.xlu0 %v531, 1
        %v682 = vpop.permute.xlu0 %681
        %683 = vrot.lane.b32.xlu0 %v535, 1
        %v684 = vpop.permute.xlu0 %683
        %685 = vrot.lane.b32.xlu0 %v532, 1
        %v686 = vpop.permute.xlu0 %685
        %687 = vrot.lane.b32.xlu0 %v536, 1
        %v688 = vpop.permute.xlu0 %687
        %689 = vrot.lane.b32.xlu0 %v533, 1
        %v690 = vpop.permute.xlu0 %689
        %691 = vrot.lane.b32.xlu0 %v537, 1
        %v692 = vpop.permute.xlu0 %691
        %vm693 = vcmp.lt.s32.totalorder %v303, 1
        %v694 = vsel %vm693, %v686, %v690
        %v695 = vsel %vm693, %v688, %v692
        %v696 = vsel %vm693, %v682, %v686
        %v697 = vsel %vm693, %v684, %v688
        %v698 = vsel %vm693, %v678, %v682
        %v699 = vsel %vm693, %v680, %v684
        %v700 = vsel %vm693, %v690, %v678
        %v701 = vsel %vm693, %v692, %v680
        %v702 = vsel %vm367, 1, 0
        %v703 = vsel %vm368, 1, 0
        %v704 = vsel %vm369, 1, 0
        %v705 = vsel %vm370, 1, 0
        %vm706 = vcmp.eq.s32.totalorder %v702, 1
        %vm707 = vcmp.eq.s32.totalorder %v703, 1
        %vm708 = vcmp.eq.s32.totalorder %v704, 1
        %vm709 = vcmp.eq.s32.totalorder %v705, 1
        %v710 = vsel %vm706, %v700, 0.0
        %v711 = vsel %vm707, %v698, 0.0
        %v712 = vsel %vm708, %v696, 0.0
        %v713 = vsel %vm709, %v694, 0.0
        %v714 = vsel %vm706, %v701, 0.0
        %v715 = vsel %vm707, %v699, 0.0
        %v716 = vsel %vm708, %v697, 0.0
        %v717 = vsel %vm709, %v695, 0.0
        %v718 = vpack.c.bf16 %v711, %v710
        %v719 = vpack.c.bf16 %v713, %v712
        %v720 = vpack.c.bf16 %v715, %v714
        %v721 = vpack.c.bf16 %v717, %v716
        %722 = vrot.lane.b32.xlu0 %v530, 127
        %v723 = vpop.permute.xlu0 %722
        %724 = vrot.lane.b32.xlu0 %v534, 127
        %v725 = vpop.permute.xlu0 %724
        %726 = vrot.lane.b32.xlu0 %v531, 127
        %v727 = vpop.permute.xlu0 %726
        %728 = vrot.lane.b32.xlu0 %v535, 127
        %v729 = vpop.permute.xlu0 %728
        %730 = vrot.lane.b32.xlu0 %v532, 127
        %v731 = vpop.permute.xlu0 %730
        %732 = vrot.lane.b32.xlu0 %v536, 127
        %v733 = vpop.permute.xlu0 %732
        %734 = vrot.lane.b32.xlu0 %v533, 127
        %v735 = vpop.permute.xlu0 %734
        %736 = vrot.lane.b32.xlu0 %v537, 127
        %v737 = vpop.permute.xlu0 %736
        %vm738 = vcmp.lt.s32.totalorder %v303, 127
        %v739 = vsel %vm738, %v731, %v735
        %v740 = vsel %vm738, %v733, %v737
        %v741 = vsel %vm738, %v727, %v731
        %v742 = vsel %vm738, %v729, %v733
        %v743 = vsel %vm738, %v723, %v727
        %v744 = vsel %vm738, %v725, %v729
        %v745 = vsel %vm738, %v735, %v723
        %v746 = vsel %vm738, %v737, %v725
        %v747 = vsel %vm371, 1, 0
        %v748 = vsel %vm372, 1, 0
        %v749 = vsel %vm373, 1, 0
        %v750 = vsel %vm374, 1, 0
        %vm751 = vcmp.eq.s32.totalorder %v747, 1
        %vm752 = vcmp.eq.s32.totalorder %v748, 1
        %vm753 = vcmp.eq.s32.totalorder %v749, 1
        %vm754 = vcmp.eq.s32.totalorder %v750, 1
        %v755 = vsel %vm751, %v743, 0.0
        %v756 = vsel %vm752, %v741, 0.0
        %v757 = vsel %vm753, %v739, 0.0
        %v758 = vsel %vm754, %v745, 0.0
        %v759 = vsel %vm751, %v744, 0.0
        %v760 = vsel %vm752, %v742, 0.0
        %v761 = vsel %vm753, %v740, 0.0
        %v762 = vsel %vm754, %v746, 0.0
        %v763 = vpack.c.bf16 %v756, %v755
        %v764 = vpack.c.bf16 %v758, %v757
        %v765 = vpack.c.bf16 %v760, %v759
        %v766 = vpack.c.bf16 %v762, %v761
        %767 = vrot.lane.b32.xlu0 %v530, 126
        %v768 = vpop.permute.xlu0 %767
        %769 = vrot.lane.b32.xlu0 %v534, 126
        %v770 = vpop.permute.xlu0 %769
        %771 = vrot.lane.b32.xlu0 %v531, 126
        %v772 = vpop.permute.xlu0 %771
        %773 = vrot.lane.b32.xlu0 %v535, 126
        %v774 = vpop.permute.xlu0 %773
        %775 = vrot.lane.b32.xlu0 %v532, 126
        %v776 = vpop.permute.xlu0 %775
        %777 = vrot.lane.b32.xlu0 %v536, 126
        %v778 = vpop.permute.xlu0 %777
        %779 = vrot.lane.b32.xlu0 %v533, 126
        %v780 = vpop.permute.xlu0 %779
        %781 = vrot.lane.b32.xlu0 %v537, 126
        %v782 = vpop.permute.xlu0 %781
        %vm783 = vcmp.lt.s32.totalorder %v303, 126
        %v784 = vsel %vm783, %v776, %v780
        %v785 = vsel %vm783, %v778, %v782
        %v786 = vsel %vm783, %v772, %v776
        %v787 = vsel %vm783, %v774, %v778
        %v788 = vsel %vm783, %v768, %v772
        %v789 = vsel %vm783, %v770, %v774
        %v790 = vsel %vm783, %v780, %v768
        %v791 = vsel %vm783, %v782, %v770
        %v792 = vsel %vm375, 1, 0
        %v793 = vsel %vm376, 1, 0
        %v794 = vsel %vm377, 1, 0
        %v795 = vsel %vm378, 1, 0
        %vm796 = vcmp.eq.s32.totalorder %v792, 1
        %vm797 = vcmp.eq.s32.totalorder %v793, 1
        %vm798 = vcmp.eq.s32.totalorder %v794, 1
        %vm799 = vcmp.eq.s32.totalorder %v795, 1
        %v800 = vsel %vm796, %v788, 0.0
        %v801 = vsel %vm797, %v786, 0.0
        %v802 = vsel %vm798, %v784, 0.0
        %v803 = vsel %vm799, %v790, 0.0
        %v804 = vsel %vm796, %v789, 0.0
        %v805 = vsel %vm797, %v787, 0.0
        %v806 = vsel %vm798, %v785, 0.0
        %v807 = vsel %vm799, %v791, 0.0
        %v808 = vpack.c.bf16 %v801, %v800
        %v809 = vpack.c.bf16 %v803, %v802
        %v810 = vpack.c.bf16 %v805, %v804
        %v811 = vpack.c.bf16 %v807, %v806
        %812 = vrot.lane.b32.xlu0 %v530, 124
        %v813 = vpop.permute.xlu0 %812
        %814 = vrot.lane.b32.xlu0 %v534, 124
        %v815 = vpop.permute.xlu0 %814
        %816 = vrot.lane.b32.xlu0 %v531, 124
        %v817 = vpop.permute.xlu0 %816
        %818 = vrot.lane.b32.xlu0 %v535, 124
        %v819 = vpop.permute.xlu0 %818
        %820 = vrot.lane.b32.xlu0 %v532, 124
        %v821 = vpop.permute.xlu0 %820
        %822 = vrot.lane.b32.xlu0 %v536, 124
        %v823 = vpop.permute.xlu0 %822
        %824 = vrot.lane.b32.xlu0 %v533, 124
        %v825 = vpop.permute.xlu0 %824
        %826 = vrot.lane.b32.xlu0 %v537, 124
        %v827 = vpop.permute.xlu0 %826
        %vm828 = vcmp.lt.s32.totalorder %v303, 124
        %v829 = vsel %vm828, %v821, %v825
        %v830 = vsel %vm828, %v823, %v827
        %v831 = vsel %vm828, %v817, %v821
        %v832 = vsel %vm828, %v819, %v823
        %v833 = vsel %vm828, %v813, %v817
        %v834 = vsel %vm828, %v815, %v819
        %v835 = vsel %vm828, %v825, %v813
        %v836 = vsel %vm828, %v827, %v815
        %v837 = vsel %vm379, 1, 0
        %v838 = vsel %vm380, 1, 0
        %v839 = vsel %vm381, 1, 0
        %v840 = vsel %vm382, 1, 0
        %vm841 = vcmp.eq.s32.totalorder %v837, 1
        %vm842 = vcmp.eq.s32.totalorder %v838, 1
        %vm843 = vcmp.eq.s32.totalorder %v839, 1
        %vm844 = vcmp.eq.s32.totalorder %v840, 1
        %v845 = vsel %vm841, %v833, 0.0
        %v846 = vsel %vm842, %v831, 0.0
        %v847 = vsel %vm843, %v829, 0.0
        %v848 = vsel %vm844, %v835, 0.0
        %v849 = vsel %vm841, %v834, 0.0
        %v850 = vsel %vm842, %v832, 0.0
        %v851 = vsel %vm843, %v830, 0.0
        %v852 = vsel %vm844, %v836, 0.0
        %v853 = vpack.c.bf16 %v846, %v845
        %v854 = vpack.c.bf16 %v848, %v847
        %v855 = vpack.c.bf16 %v850, %v849
        %v856 = vpack.c.bf16 %v852, %v851
        %857 = vrot.lane.b32.xlu0 %v530, 120
        %v858 = vpop.permute.xlu0 %857
        %859 = vrot.lane.b32.xlu0 %v534, 120
        %v860 = vpop.permute.xlu0 %859
        %861 = vrot.lane.b32.xlu0 %v531, 120
        %v862 = vpop.permute.xlu0 %861
        %863 = vrot.lane.b32.xlu0 %v535, 120
        %v864 = vpop.permute.xlu0 %863
        %865 = vrot.lane.b32.xlu0 %v532, 120
        %v866 = vpop.permute.xlu0 %865
        %867 = vrot.lane.b32.xlu0 %v536, 120
        %v868 = vpop.permute.xlu0 %867
        %869 = vrot.lane.b32.xlu0 %v533, 120
        %v870 = vpop.permute.xlu0 %869
        %871 = vrot.lane.b32.xlu0 %v537, 120
        %v872 = vpop.permute.xlu0 %871
        %vm873 = vcmp.lt.s32.totalorder %v303, 120
        %v874 = vsel %vm873, %v866, %v870
        %v875 = vsel %vm873, %v868, %v872
        %v876 = vsel %vm873, %v862, %v866
        %v877 = vsel %vm873, %v864, %v868
        %v878 = vsel %vm873, %v858, %v862
        %v879 = vsel %vm873, %v860, %v864
        %v880 = vsel %vm873, %v870, %v858
        %v881 = vsel %vm873, %v872, %v860
        %v882 = vsel %vm383, 1, 0
        %v883 = vsel %vm384, 1, 0
        %v884 = vsel %vm385, 1, 0
        %v885 = vsel %vm386, 1, 0
        %vm886 = vcmp.eq.s32.totalorder %v882, 1
        %vm887 = vcmp.eq.s32.totalorder %v883, 1
        %vm888 = vcmp.eq.s32.totalorder %v884, 1
        %vm889 = vcmp.eq.s32.totalorder %v885, 1
        %v890 = vsel %vm886, %v878, 0.0
        %v891 = vsel %vm887, %v876, 0.0
        %v892 = vsel %vm888, %v874, 0.0
        %v893 = vsel %vm889, %v880, 0.0
        %v894 = vsel %vm886, %v879, 0.0
        %v895 = vsel %vm887, %v877, 0.0
        %v896 = vsel %vm888, %v875, 0.0
        %v897 = vsel %vm889, %v881, 0.0
        %v898 = vpack.c.bf16 %v891, %v890
        %v899 = vpack.c.bf16 %v893, %v892
        %v900 = vpack.c.bf16 %v895, %v894
        %v901 = vpack.c.bf16 %v897, %v896
        %v906 = vunpack.c.l.b16 %v583
        %v907 = vunpack.c.h.b16 %v583
        %v908 = vunpack.c.l.b16 %v584
        %v909 = vunpack.c.h.b16 %v584
        %v910 = vunpack.c.l.b16 %v585
        %v911 = vunpack.c.h.b16 %v585
        %v912 = vunpack.c.l.b16 %v586
        %v913 = vunpack.c.h.b16 %v586
        %v914 = vpack.c.b16 %v910, %v906
        %v915 = vpack.c.b16 %v911, %v907
        %v916 = vpack.c.b16 %v912, %v908
        %v917 = vpack.c.b16 %v913, %v909
        %v926 = vunpack.c.l.b16 %v628
        %v927 = vunpack.c.h.b16 %v628
        %v928 = vunpack.c.l.b16 %v629
        %v929 = vunpack.c.h.b16 %v629
        %v930 = vunpack.c.l.b16 %v630
        %v931 = vunpack.c.h.b16 %v630
        %v932 = vunpack.c.l.b16 %v631
        %v933 = vunpack.c.h.b16 %v631
        %v934 = vpack.c.b16 %v930, %v926
        %v935 = vpack.c.b16 %v931, %v927
        %v936 = vpack.c.b16 %v932, %v928
        %v937 = vpack.c.b16 %v933, %v929
        %v946 = vunpack.c.l.b16 %v673
        %v947 = vunpack.c.h.b16 %v673
        %v948 = vunpack.c.l.b16 %v674
        %v949 = vunpack.c.h.b16 %v674
        %v950 = vunpack.c.l.b16 %v675
        %v951 = vunpack.c.h.b16 %v675
        %v952 = vunpack.c.l.b16 %v676
        %v953 = vunpack.c.h.b16 %v676
        %v954 = vpack.c.b16 %v950, %v946
        %v955 = vpack.c.b16 %v951, %v947
        %v956 = vpack.c.b16 %v952, %v948
        %v957 = vpack.c.b16 %v953, %v949
        %v966 = vunpack.c.l.b16 %v718
        %v967 = vunpack.c.h.b16 %v718
        %v968 = vunpack.c.l.b16 %v719
        %v969 = vunpack.c.h.b16 %v719
        %v970 = vunpack.c.l.b16 %v720
        %v971 = vunpack.c.h.b16 %v720
        %v972 = vunpack.c.l.b16 %v721
        %v973 = vunpack.c.h.b16 %v721
        %v974 = vpack.c.b16 %v970, %v966
        %v975 = vpack.c.b16 %v971, %v967
        %v976 = vpack.c.b16 %v972, %v968
        %v977 = vpack.c.b16 %v973, %v969
        %v986 = vunpack.c.l.b16 %v538
        %v987 = vunpack.c.h.b16 %v538
        %v988 = vunpack.c.l.b16 %v539
        %v989 = vunpack.c.h.b16 %v539
        %v990 = vunpack.c.l.b16 %v540
        %v991 = vunpack.c.h.b16 %v540
        %v992 = vunpack.c.l.b16 %v541
        %v993 = vunpack.c.h.b16 %v541
        %v994 = vpack.c.b16 %v990, %v986
        %v995 = vpack.c.b16 %v991, %v987
        %v996 = vpack.c.b16 %v992, %v988
        %v997 = vpack.c.b16 %v993, %v989
        %v1006 = vunpack.c.l.b16 %v763
        %v1007 = vunpack.c.h.b16 %v763
        %v1008 = vunpack.c.l.b16 %v764
        %v1009 = vunpack.c.h.b16 %v764
        %v1010 = vunpack.c.l.b16 %v765
        %v1011 = vunpack.c.h.b16 %v765
        %v1012 = vunpack.c.l.b16 %v766
        %v1013 = vunpack.c.h.b16 %v766
        %v1014 = vpack.c.b16 %v1010, %v1006
        %v1015 = vpack.c.b16 %v1011, %v1007
        %v1016 = vpack.c.b16 %v1012, %v1008
        %v1017 = vpack.c.b16 %v1013, %v1009
        %v1026 = vunpack.c.l.b16 %v808
        %v1027 = vunpack.c.h.b16 %v808
        %v1028 = vunpack.c.l.b16 %v809
        %v1029 = vunpack.c.h.b16 %v809
        %v1030 = vunpack.c.l.b16 %v810
        %v1031 = vunpack.c.h.b16 %v810
        %v1032 = vunpack.c.l.b16 %v811
        %v1033 = vunpack.c.h.b16 %v811
        %v1034 = vpack.c.b16 %v1030, %v1026
        %v1035 = vpack.c.b16 %v1031, %v1027
        %v1036 = vpack.c.b16 %v1032, %v1028
        %v1037 = vpack.c.b16 %v1033, %v1029
        %v1046 = vunpack.c.l.b16 %v853
        %v1047 = vunpack.c.h.b16 %v853
        %v1048 = vunpack.c.l.b16 %v854
        %v1049 = vunpack.c.h.b16 %v854
        %v1050 = vunpack.c.l.b16 %v855
        %v1051 = vunpack.c.h.b16 %v855
        %v1052 = vunpack.c.l.b16 %v856
        %v1053 = vunpack.c.h.b16 %v856
        %v1054 = vpack.c.b16 %v1050, %v1046
        %v1055 = vpack.c.b16 %v1051, %v1047
        %v1056 = vpack.c.b16 %v1052, %v1048
        %v1057 = vpack.c.b16 %v1053, %v1049
        %v1066 = vunpack.c.l.b16 %v898
        %v1067 = vunpack.c.h.b16 %v898
        %v1068 = vunpack.c.l.b16 %v899
        %v1069 = vunpack.c.h.b16 %v899
        %v1070 = vunpack.c.l.b16 %v900
        %v1071 = vunpack.c.h.b16 %v900
        %v1072 = vunpack.c.l.b16 %v901
        %v1073 = vunpack.c.h.b16 %v901
        %v1074 = vpack.c.b16 %v1070, %v1066
        %v1075 = vpack.c.b16 %v1071, %v1067
        %v1076 = vpack.c.b16 %v1072, %v1068
        %v1077 = vpack.c.b16 %v1073, %v1069
        %v1082 = vld [vmem:[%s3] sm:$0xff]
        %v1083 = vld [vmem:[%s3 + $0x8] sm:$0xff]
        %v1084 = vld [vmem:[%s3 + $0x10] sm:$0xff]
        %v1085 = vld [vmem:[%s3 + $0x18] sm:$0xff]
        %v1086 = vld [vmem:[%s3 + $0x20] sm:$0xff]
        %v1087 = vld [vmem:[%s3 + $0x28] sm:$0xff]
        %v1088 = vld [vmem:[%s3 + $0x30] sm:$0xff]
        %v1089 = vld [vmem:[%s3 + $0x38] sm:$0xff]
        %v1090 = vmul.f32 %v387, 0.999995
        %v1091 = vmul.f32 %v388, 0.999995
        %v1092 = vmul.f32 %v389, 0.999995
        %v1093 = vmul.f32 %v390, 0.999995
        %v1094 = vmul.f32 %v391, 0.999995
        %v1095 = vmul.f32 %v392, 0.999995
        %v1096 = vmul.f32 %v393, 0.999995
        %v1097 = vmul.f32 %v394, 0.999995
        %v1098 = vmul.f32 %v395, 0.999995
        %v1099 = vmul.f32 %v396, 0.999995
        %v1100 = vmul.f32 %v397, 0.999995
        %v1101 = vmul.f32 %v398, 0.999995
        %v1102 = vmul.f32 %v399, 0.999995
        %v1103 = vmul.f32 %v400, 0.999995
        %v1104 = vmul.f32 %v401, 0.999995
        %v1105 = vmul.f32 %v402, 0.999995
        %v1106 = vmul.f32 %v403, 0.999995
        %v1107 = vmul.f32 %v404, 0.999995
        %v1108 = vmul.f32 %v405, 0.999995
        %v1109 = vmul.f32 %v406, 0.999995
        %v1110 = vmul.f32 %v407, 0.999995
        %v1111 = vmul.f32 %v408, 0.999995
        %v1112 = vmul.f32 %v409, 0.999995
        %v1113 = vmul.f32 %v410, 0.999995
        %v1114 = vmul.f32 %v411, 0.999995
        %v1115 = vmul.f32 %v412, 0.999995
        %v1116 = vmul.f32 %v413, 0.999995
        %v1117 = vmul.f32 %v414, 0.999995
        %v1118 = vmul.f32 %v415, 0.999995
        %v1119 = vmul.f32 %v416, 0.999995
        %v1120 = vmul.f32 %v417, 0.999995
        %v1121 = vmul.f32 %v418, 0.999995
        %v1130 = vunpack.c.l.b16 %v1082
        %v1131 = vunpack.c.h.b16 %v1082
        %v1132 = vunpack.c.l.b16 %v1083
        %v1133 = vunpack.c.h.b16 %v1083
        %v1134 = vunpack.c.l.b16 %v1084
        %v1135 = vunpack.c.h.b16 %v1084
        %v1136 = vunpack.c.l.b16 %v1085
        %v1137 = vunpack.c.h.b16 %v1085
        %v1138 = vunpack.c.l.b16 %v1086
        %v1139 = vunpack.c.h.b16 %v1086
        %v1140 = vunpack.c.l.b16 %v1087
        %v1141 = vunpack.c.h.b16 %v1087
        %v1142 = vunpack.c.l.b16 %v1088
        %v1143 = vunpack.c.h.b16 %v1088
        %v1144 = vunpack.c.l.b16 %v1089
        %v1145 = vunpack.c.h.b16 %v1089
        %v1146 = vpack.c.b16 %v1132, %v1130
        %v1147 = vpack.c.b16 %v1133, %v1131
        %v1148 = vpack.c.b16 %v1136, %v1134
        %v1149 = vpack.c.b16 %v1137, %v1135
        %v1150 = vpack.c.b16 %v1140, %v1138
        %v1151 = vpack.c.b16 %v1141, %v1139
        %v1152 = vpack.c.b16 %v1144, %v1142
        %v1153 = vpack.c.b16 %v1145, %v1143
        %vm1158 = vcmask 130048
        %v1160 = vsel %vm1158, %v1147, 0
        %v1163 = vsel %vm1158, %v1149, 0
        %v1166 = vsel %vm1158, %v1151, 0
        %v1169 = vsel %vm1158, %v1153, 0
        %1171 = vmatpush.bf16.msra.mxu0 %v1054
        %1172 = vmatpush.bf16.msra.mxu0 %v1034
        %1173 = vmatpush.bf16.msra.mxu0 %v1014
        %1174 = vmatpush.bf16.msra.mxu0 %v994
        %1175 = vmatpush.bf16.msra.mxu0 %v974
        %1176 = vmatpush.bf16.msra.mxu0 %v954
        %1177 = vmatpush.bf16.msra.mxu0 %v934
        %1178 = vmatpush.bf16.msra.mxu0 %v914
        %1179 = vmatmul.bf16.gmra.mxu0 %v1146
        %v1180 = vpop.f32.mrf.mxu0
        %v1181 = vadd.f32 %v1090, %v1180
        %v1182 = vpop.f32.mrf.mxu0
        %v1183 = vadd.f32 %v1094, %v1182
        %1184 = vmatmul.bf16.gmra.mxu0 %v1148
        %v1185 = vpop.f32.mrf.mxu0
        %v1186 = vadd.f32 %v1098, %v1185
        %v1187 = vpop.f32.mrf.mxu0
        %v1188 = vadd.f32 %v1102, %v1187
        %1189 = vmatmul.bf16.gmra.mxu0 %v1150
        %v1190 = vpop.f32.mrf.mxu0
        %v1191 = vadd.f32 %v1106, %v1190
        %v1192 = vpop.f32.mrf.mxu0
        %v1193 = vadd.f32 %v1110, %v1192
        %1194 = vmatmul.bf16.gmra.mxu0 %v1152
        %v1195 = vpop.f32.mrf.mxu0
        %v1196 = vadd.f32 %v1114, %v1195
        %v1197 = vpop.f32.mrf.mxu0
        %v1198 = vadd.f32 %v1118, %v1197
        %1199 = vdwg.mxu0
        %1200 = vmatpush.bf16.msra.mxu0 0
        %1201 = vmatpush.bf16.msra.mxu0 0
        %1202 = vmatpush.bf16.msra.mxu0 0
        %1203 = vmatpush.bf16.msra.mxu0 0
        %1204 = vmatpush.bf16.msra.mxu0 0
        %1205 = vmatpush.bf16.msra.mxu0 0
        %1206 = vmatpush.bf16.msra.mxu0 0
        %1207 = vmatpush.bf16.msra.mxu0 %v1074
        %1208 = vmatmul.bf16.gmra.mxu0 %v1160
        %v1209 = vpop.f32.mrf.mxu0
        %v1210 = vadd.f32 %v1181, %v1209
        %v1211 = vpop.f32.mrf.mxu0
        %v1212 = vadd.f32 %v1183, %v1211
        %1213 = vmatmul.bf16.gmra.mxu0 %v1163
        %v1214 = vpop.f32.mrf.mxu0
        %v1215 = vadd.f32 %v1186, %v1214
        %v1216 = vpop.f32.mrf.mxu0
        %v1217 = vadd.f32 %v1188, %v1216
        %1218 = vmatmul.bf16.gmra.mxu0 %v1166
        %v1219 = vpop.f32.mrf.mxu0
        %v1220 = vadd.f32 %v1191, %v1219
        %v1221 = vpop.f32.mrf.mxu0
        %v1222 = vadd.f32 %v1193, %v1221
        %1223 = vmatmul.bf16.gmra.mxu0 %v1169
        %v1224 = vpop.f32.mrf.mxu0
        %v1225 = vadd.f32 %v1196, %v1224
        %v1226 = vpop.f32.mrf.mxu0
        %v1227 = vadd.f32 %v1198, %v1226
        %1228 = vdwg.mxu0
        %1229 = vmatpush.bf16.msra.mxu0 %v1055
        %1230 = vmatpush.bf16.msra.mxu0 %v1035
        %1231 = vmatpush.bf16.msra.mxu0 %v1015
        %1232 = vmatpush.bf16.msra.mxu0 %v995
        %1233 = vmatpush.bf16.msra.mxu0 %v975
        %1234 = vmatpush.bf16.msra.mxu0 %v955
        %1235 = vmatpush.bf16.msra.mxu0 %v935
        %1236 = vmatpush.bf16.msra.mxu0 %v915
        %1237 = vmatmul.bf16.gmra.mxu0 %v1146
        %v1238 = vpop.f32.mrf.mxu0
        %v1239 = vadd.f32 %v1091, %v1238
        %v1240 = vpop.f32.mrf.mxu0
        %v1241 = vadd.f32 %v1095, %v1240
        %1242 = vmatmul.bf16.gmra.mxu0 %v1148
        %v1243 = vpop.f32.mrf.mxu0
        %v1244 = vadd.f32 %v1099, %v1243
        %v1245 = vpop.f32.mrf.mxu0
        %v1246 = vadd.f32 %v1103, %v1245
        %1247 = vmatmul.bf16.gmra.mxu0 %v1150
        %v1248 = vpop.f32.mrf.mxu0
        %v1249 = vadd.f32 %v1107, %v1248
        %v1250 = vpop.f32.mrf.mxu0
        %v1251 = vadd.f32 %v1111, %v1250
        %1252 = vmatmul.bf16.gmra.mxu0 %v1152
        %v1253 = vpop.f32.mrf.mxu0
        %v1254 = vadd.f32 %v1115, %v1253
        %v1255 = vpop.f32.mrf.mxu0
        %v1256 = vadd.f32 %v1119, %v1255
        %1257 = vdwg.mxu0
        %1258 = vmatpush.bf16.msra.mxu0 0
        %1259 = vmatpush.bf16.msra.mxu0 0
        %1260 = vmatpush.bf16.msra.mxu0 0
        %1261 = vmatpush.bf16.msra.mxu0 0
        %1262 = vmatpush.bf16.msra.mxu0 0
        %1263 = vmatpush.bf16.msra.mxu0 0
        %1264 = vmatpush.bf16.msra.mxu0 0
        %1265 = vmatpush.bf16.msra.mxu0 %v1075
        %1266 = vmatmul.bf16.gmra.mxu0 %v1160
        %v1267 = vpop.f32.mrf.mxu0
        %v1268 = vadd.f32 %v1239, %v1267
        %v1269 = vpop.f32.mrf.mxu0
        %v1270 = vadd.f32 %v1241, %v1269
        %1271 = vmatmul.bf16.gmra.mxu0 %v1163
        %v1272 = vpop.f32.mrf.mxu0
        %v1273 = vadd.f32 %v1244, %v1272
        %v1274 = vpop.f32.mrf.mxu0
        %v1275 = vadd.f32 %v1246, %v1274
        %1276 = vmatmul.bf16.gmra.mxu0 %v1166
        %v1277 = vpop.f32.mrf.mxu0
        %v1278 = vadd.f32 %v1249, %v1277
        %v1279 = vpop.f32.mrf.mxu0
        %v1280 = vadd.f32 %v1251, %v1279
        %1281 = vmatmul.bf16.gmra.mxu0 %v1169
        %v1282 = vpop.f32.mrf.mxu0
        %v1283 = vadd.f32 %v1254, %v1282
        %v1284 = vpop.f32.mrf.mxu0
        %v1285 = vadd.f32 %v1256, %v1284
        %1286 = vdwg.mxu0
        %1287 = vmatpush.bf16.msra.mxu0 %v1056
        %1288 = vmatpush.bf16.msra.mxu0 %v1036
        %1289 = vmatpush.bf16.msra.mxu0 %v1016
        %1290 = vmatpush.bf16.msra.mxu0 %v996
        %1291 = vmatpush.bf16.msra.mxu0 %v976
        %1292 = vmatpush.bf16.msra.mxu0 %v956
        %1293 = vmatpush.bf16.msra.mxu0 %v936
        %1294 = vmatpush.bf16.msra.mxu0 %v916
        %1295 = vmatmul.bf16.gmra.mxu0 %v1146
        %v1296 = vpop.f32.mrf.mxu0
        %v1297 = vadd.f32 %v1092, %v1296
        %v1298 = vpop.f32.mrf.mxu0
        %v1299 = vadd.f32 %v1096, %v1298
        %1300 = vmatmul.bf16.gmra.mxu0 %v1148
        %v1301 = vpop.f32.mrf.mxu0
        %v1302 = vadd.f32 %v1100, %v1301
        %v1303 = vpop.f32.mrf.mxu0
        %v1304 = vadd.f32 %v1104, %v1303
        %1305 = vmatmul.bf16.gmra.mxu0 %v1150
        %v1306 = vpop.f32.mrf.mxu0
        %v1307 = vadd.f32 %v1108, %v1306
        %v1308 = vpop.f32.mrf.mxu0
        %v1309 = vadd.f32 %v1112, %v1308
        %1310 = vmatmul.bf16.gmra.mxu0 %v1152
        %v1311 = vpop.f32.mrf.mxu0
        %v1312 = vadd.f32 %v1116, %v1311
        %v1313 = vpop.f32.mrf.mxu0
        %v1314 = vadd.f32 %v1120, %v1313
        %1315 = vdwg.mxu0
        %1316 = vmatpush.bf16.msra.mxu0 0
        %1317 = vmatpush.bf16.msra.mxu0 0
        %1318 = vmatpush.bf16.msra.mxu0 0
        %1319 = vmatpush.bf16.msra.mxu0 0
        %1320 = vmatpush.bf16.msra.mxu0 0
        %1321 = vmatpush.bf16.msra.mxu0 0
        %1322 = vmatpush.bf16.msra.mxu0 0
        %1323 = vmatpush.bf16.msra.mxu0 %v1076
        %1324 = vmatmul.bf16.gmra.mxu0 %v1160
        %v1325 = vpop.f32.mrf.mxu0
        %v1326 = vadd.f32 %v1297, %v1325
        %v1327 = vpop.f32.mrf.mxu0
        %v1328 = vadd.f32 %v1299, %v1327
        %1329 = vmatmul.bf16.gmra.mxu0 %v1163
        %v1330 = vpop.f32.mrf.mxu0
        %v1331 = vadd.f32 %v1302, %v1330
        %v1332 = vpop.f32.mrf.mxu0
        %v1333 = vadd.f32 %v1304, %v1332
        %1334 = vmatmul.bf16.gmra.mxu0 %v1166
        %v1335 = vpop.f32.mrf.mxu0
        %v1336 = vadd.f32 %v1307, %v1335
        %v1337 = vpop.f32.mrf.mxu0
        %v1338 = vadd.f32 %v1309, %v1337
        %1339 = vmatmul.bf16.gmra.mxu0 %v1169
        %v1340 = vpop.f32.mrf.mxu0
        %v1341 = vadd.f32 %v1312, %v1340
        %v1342 = vpop.f32.mrf.mxu0
        %v1343 = vadd.f32 %v1314, %v1342
        %1344 = vdwg.mxu0
        %1345 = vmatpush.bf16.msra.mxu0 %v1057
        %1346 = vmatpush.bf16.msra.mxu0 %v1037
        %1347 = vmatpush.bf16.msra.mxu0 %v1017
        %1348 = vmatpush.bf16.msra.mxu0 %v997
        %1349 = vmatpush.bf16.msra.mxu0 %v977
        %1350 = vmatpush.bf16.msra.mxu0 %v957
        %1351 = vmatpush.bf16.msra.mxu0 %v937
        %1352 = vmatpush.bf16.msra.mxu0 %v917
        %1353 = vmatmul.bf16.gmra.mxu0 %v1146
        %v1354 = vpop.f32.mrf.mxu0
        %v1355 = vadd.f32 %v1093, %v1354
        %v1356 = vpop.f32.mrf.mxu0
        %v1357 = vadd.f32 %v1097, %v1356
        %1358 = vmatmul.bf16.gmra.mxu0 %v1148
        %v1359 = vpop.f32.mrf.mxu0
        %v1360 = vadd.f32 %v1101, %v1359
        %v1361 = vpop.f32.mrf.mxu0
        %v1362 = vadd.f32 %v1105, %v1361
        %1363 = vmatmul.bf16.gmra.mxu0 %v1150
        %v1364 = vpop.f32.mrf.mxu0
        %v1365 = vadd.f32 %v1109, %v1364
        %v1366 = vpop.f32.mrf.mxu0
        %v1367 = vadd.f32 %v1113, %v1366
        %1368 = vmatmul.bf16.gmra.mxu0 %v1152
        %v1369 = vpop.f32.mrf.mxu0
        %v1370 = vadd.f32 %v1117, %v1369
        %v1371 = vpop.f32.mrf.mxu0
        %v1372 = vadd.f32 %v1121, %v1371
        %1373 = vdwg.mxu0
        %1374 = vmatpush.bf16.msra.mxu0 0
        %1375 = vmatpush.bf16.msra.mxu0 0
        %1376 = vmatpush.bf16.msra.mxu0 0
        %1377 = vmatpush.bf16.msra.mxu0 0
        %1378 = vmatpush.bf16.msra.mxu0 0
        %1379 = vmatpush.bf16.msra.mxu0 0
        %1380 = vmatpush.bf16.msra.mxu0 0
        %1381 = vmatpush.bf16.msra.mxu0 %v1077
        %1382 = vmatmul.bf16.gmra.mxu0 %v1160
        %v1383 = vpop.f32.mrf.mxu0
        %v1384 = vadd.f32 %v1355, %v1383
        %v1385 = vpop.f32.mrf.mxu0
        %v1386 = vadd.f32 %v1357, %v1385
        %1387 = vmatmul.bf16.gmra.mxu0 %v1163
        %v1388 = vpop.f32.mrf.mxu0
        %v1389 = vadd.f32 %v1360, %v1388
        %v1390 = vpop.f32.mrf.mxu0
        %v1391 = vadd.f32 %v1362, %v1390
        %1392 = vmatmul.bf16.gmra.mxu0 %v1166
        %v1393 = vpop.f32.mrf.mxu0
        %v1394 = vadd.f32 %v1365, %v1393
        %v1395 = vpop.f32.mrf.mxu0
        %v1396 = vadd.f32 %v1367, %v1395
        %1397 = vmatmul.bf16.gmra.mxu0 %v1169
        %v1398 = vpop.f32.mrf.mxu0
        %v1399 = vadd.f32 %v1370, %v1398
        %v1400 = vpop.f32.mrf.mxu0
        %v1401 = vadd.f32 %v1372, %v1400
        %1402 = vdwg.mxu0
        %vm1403 = vcmp.gt.f32.partialorder %v1210, 0.0
        %vm1404 = vcmp.gt.f32.partialorder %v1268, 0.0
        %vm1405 = vcmp.gt.f32.partialorder %v1326, 0.0
        %vm1406 = vcmp.gt.f32.partialorder %v1384, 0.0
        %vm1407 = vcmp.gt.f32.partialorder %v1212, 0.0
        %vm1408 = vcmp.gt.f32.partialorder %v1270, 0.0
        %vm1409 = vcmp.gt.f32.partialorder %v1328, 0.0
        %vm1410 = vcmp.gt.f32.partialorder %v1386, 0.0
        %vm1411 = vcmp.gt.f32.partialorder %v1215, 0.0
        %vm1412 = vcmp.gt.f32.partialorder %v1273, 0.0
        %vm1413 = vcmp.gt.f32.partialorder %v1331, 0.0
        %vm1414 = vcmp.gt.f32.partialorder %v1389, 0.0
        %vm1415 = vcmp.gt.f32.partialorder %v1217, 0.0
        %vm1416 = vcmp.gt.f32.partialorder %v1275, 0.0
        %vm1417 = vcmp.gt.f32.partialorder %v1333, 0.0
        %vm1418 = vcmp.gt.f32.partialorder %v1391, 0.0
        %vm1419 = vcmp.gt.f32.partialorder %v1220, 0.0
        %vm1420 = vcmp.gt.f32.partialorder %v1278, 0.0
        %vm1421 = vcmp.gt.f32.partialorder %v1336, 0.0
        %vm1422 = vcmp.gt.f32.partialorder %v1394, 0.0
        %vm1423 = vcmp.gt.f32.partialorder %v1222, 0.0
        %vm1424 = vcmp.gt.f32.partialorder %v1280, 0.0
        %vm1425 = vcmp.gt.f32.partialorder %v1338, 0.0
        %vm1426 = vcmp.gt.f32.partialorder %v1396, 0.0
        %vm1427 = vcmp.gt.f32.partialorder %v1225, 0.0
        %vm1428 = vcmp.gt.f32.partialorder %v1283, 0.0
        %vm1429 = vcmp.gt.f32.partialorder %v1341, 0.0
        %vm1430 = vcmp.gt.f32.partialorder %v1399, 0.0
        %vm1431 = vcmp.gt.f32.partialorder %v1227, 0.0
        %vm1432 = vcmp.gt.f32.partialorder %v1285, 0.0
        %vm1433 = vcmp.gt.f32.partialorder %v1343, 0.0
        %vm1434 = vcmp.gt.f32.partialorder %v1401, 0.0
        %v1435 = vmul.f32 %v1210, 0.25
        %v1436 = vmul.f32 %v1268, 0.25
        %v1437 = vmul.f32 %v1326, 0.25
        %v1438 = vmul.f32 %v1384, 0.25
        %v1439 = vmul.f32 %v1212, 0.25
        %v1440 = vmul.f32 %v1270, 0.25
        %v1441 = vmul.f32 %v1328, 0.25
        %v1442 = vmul.f32 %v1386, 0.25
        %v1443 = vmul.f32 %v1215, 0.25
        %v1444 = vmul.f32 %v1273, 0.25
        %v1445 = vmul.f32 %v1331, 0.25
        %v1446 = vmul.f32 %v1389, 0.25
        %v1447 = vmul.f32 %v1217, 0.25
        %v1448 = vmul.f32 %v1275, 0.25
        %v1449 = vmul.f32 %v1333, 0.25
        %v1450 = vmul.f32 %v1391, 0.25
        %v1451 = vmul.f32 %v1220, 0.25
        %v1452 = vmul.f32 %v1278, 0.25
        %v1453 = vmul.f32 %v1336, 0.25
        %v1454 = vmul.f32 %v1394, 0.25
        %v1455 = vmul.f32 %v1222, 0.25
        %v1456 = vmul.f32 %v1280, 0.25
        %v1457 = vmul.f32 %v1338, 0.25
        %v1458 = vmul.f32 %v1396, 0.25
        %v1459 = vmul.f32 %v1225, 0.25
        %v1460 = vmul.f32 %v1283, 0.25
        %v1461 = vmul.f32 %v1341, 0.25
        %v1462 = vmul.f32 %v1399, 0.25
        %v1463 = vmul.f32 %v1227, 0.25
        %v1464 = vmul.f32 %v1285, 0.25
        %v1465 = vmul.f32 %v1343, 0.25
        %v1466 = vmul.f32 %v1401, 0.25
        %v1467 = vsel %vm1403, %v1210, %v1435
        %v1468 = vsel %vm1404, %v1268, %v1436
        %v1469 = vsel %vm1405, %v1326, %v1437
        %v1470 = vsel %vm1406, %v1384, %v1438
        %v1471 = vsel %vm1407, %v1212, %v1439
        %v1472 = vsel %vm1408, %v1270, %v1440
        %v1473 = vsel %vm1409, %v1328, %v1441
        %v1474 = vsel %vm1410, %v1386, %v1442
        %v1475 = vsel %vm1411, %v1215, %v1443
        %v1476 = vsel %vm1412, %v1273, %v1444
        %v1477 = vsel %vm1413, %v1331, %v1445
        %v1478 = vsel %vm1414, %v1389, %v1446
        %v1479 = vsel %vm1415, %v1217, %v1447
        %v1480 = vsel %vm1416, %v1275, %v1448
        %v1481 = vsel %vm1417, %v1333, %v1449
        %v1482 = vsel %vm1418, %v1391, %v1450
        %v1483 = vsel %vm1419, %v1220, %v1451
        %v1484 = vsel %vm1420, %v1278, %v1452
        %v1485 = vsel %vm1421, %v1336, %v1453
        %v1486 = vsel %vm1422, %v1394, %v1454
        %v1487 = vsel %vm1423, %v1222, %v1455
        %v1488 = vsel %vm1424, %v1280, %v1456
        %v1489 = vsel %vm1425, %v1338, %v1457
        %v1490 = vsel %vm1426, %v1396, %v1458
        %v1491 = vsel %vm1427, %v1225, %v1459
        %v1492 = vsel %vm1428, %v1283, %v1460
        %v1493 = vsel %vm1429, %v1341, %v1461
        %v1494 = vsel %vm1430, %v1399, %v1462
        %v1495 = vsel %vm1431, %v1227, %v1463
        %v1496 = vsel %vm1432, %v1285, %v1464
        %v1497 = vsel %vm1433, %v1343, %v1465
        %v1498 = vsel %vm1434, %v1401, %v1466
        %v1499 = vpack.c.bf16 %v1471, %v1467
        %v1500 = vpack.c.bf16 %v1472, %v1468
        %v1501 = vpack.c.bf16 %v1473, %v1469
        %v1502 = vpack.c.bf16 %v1474, %v1470
        %v1503 = vpack.c.bf16 %v1479, %v1475
        %v1504 = vpack.c.bf16 %v1480, %v1476
        %v1505 = vpack.c.bf16 %v1481, %v1477
        %v1506 = vpack.c.bf16 %v1482, %v1478
        %v1507 = vpack.c.bf16 %v1487, %v1483
        %v1508 = vpack.c.bf16 %v1488, %v1484
        %v1509 = vpack.c.bf16 %v1489, %v1485
        %v1510 = vpack.c.bf16 %v1490, %v1486
        %v1511 = vpack.c.bf16 %v1495, %v1491
        %v1512 = vpack.c.bf16 %v1496, %v1492
        %v1513 = vpack.c.bf16 %v1497, %v1493
        %v1514 = vpack.c.bf16 %v1498, %v1494
        %v1515 = vld [vmem:[%s4] sm:$0xf]
        %v1516 = vld [vmem:[%s4 + $0x4] sm:$0xf]
        %v1517 = vld [vmem:[%s4 + $0x8] sm:$0xf]
        %v1518 = vld [vmem:[%s4 + $0xc] sm:$0xf]
        %v1519 = vld [vmem:[%s5] sm:$0xff]
        %v1520 = vld [vmem:[%s5 + $0x8] sm:$0xff]
        %v1521 = vld [vmem:[%s5 + $0x10] sm:$0xff]
        %v1522 = vld [vmem:[%s5 + $0x18] sm:$0xff]
        %1524 = vset.pattern.permute.xlu0 0
        %1525 = vperm.xlu0 %1524, %v1519
        %v1526 = vpop.permute.xlu0 %1525
        %1529 = vset.pattern.permute.xlu0 0
        %1530 = vperm.xlu0 %1529, %v1520
        %v1531 = vpop.permute.xlu0 %1530
        %1534 = vset.pattern.permute.xlu0 0
        %1535 = vperm.xlu0 %1534, %v1521
        %v1536 = vpop.permute.xlu0 %1535
        %1539 = vset.pattern.permute.xlu0 0
        %1540 = vperm.xlu0 %1539, %v1522
        %v1541 = vpop.permute.xlu0 %1540
        %v1547 = vunpack.c.l.b16 %v1515
        %v1548 = vunpack.c.l.b16 %v1516
        %v1549 = vunpack.c.l.b16 %v1517
        %v1550 = vunpack.c.l.b16 %v1518
        %v1551 = vpack.c.b16 %v1548, %v1547
        %v1552 = vpack.c.b16 %v1550, %v1549
        %v1554 = vsel %vm454, %v1551, 0
        %v1557 = vsel %vm454, %v1552, 0
        %1559 = vmatpush.bf16.msra.mxu0 0
        %1560 = vmatpush.bf16.msra.mxu0 0
        %1561 = vmatpush.bf16.msra.mxu0 0
        %1562 = vmatpush.bf16.msra.mxu0 0
        %1563 = vmatpush.bf16.msra.mxu0 %v1511
        %1564 = vmatpush.bf16.msra.mxu0 %v1507
        %1565 = vmatpush.bf16.msra.mxu0 %v1503
        %1566 = vmatpush.bf16.msra.mxu0 %v1499
        %1567 = vmatmul.bf16.gmra.mxu0 %v1554
        %v1568 = vpop.f32.mrf.mxu0
        %v1569 = vadd.f32 %v1526, %v1568
        %v1570 = vpop.f32.mrf.mxu0
        %v1571 = vadd.f32 %v1531, %v1570
        %1572 = vmatmul.bf16.gmra.mxu0 %v1557
        %v1573 = vpop.f32.mrf.mxu0
        %v1574 = vadd.f32 %v1536, %v1573
        %v1575 = vpop.f32.mrf.mxu0
        %v1576 = vadd.f32 %v1541, %v1575
        %1577 = vdwg.mxu0
        %1578 = vmatpush.bf16.msra.mxu0 0
        %1579 = vmatpush.bf16.msra.mxu0 0
        %1580 = vmatpush.bf16.msra.mxu0 0
        %1581 = vmatpush.bf16.msra.mxu0 0
        %1582 = vmatpush.bf16.msra.mxu0 %v1512
        %1583 = vmatpush.bf16.msra.mxu0 %v1508
        %1584 = vmatpush.bf16.msra.mxu0 %v1504
        %1585 = vmatpush.bf16.msra.mxu0 %v1500
        %1586 = vmatmul.bf16.gmra.mxu0 %v1554
        %v1587 = vpop.f32.mrf.mxu0
        %v1588 = vadd.f32 %v1526, %v1587
        %v1589 = vpop.f32.mrf.mxu0
        %v1590 = vadd.f32 %v1531, %v1589
        %1591 = vmatmul.bf16.gmra.mxu0 %v1557
        %v1592 = vpop.f32.mrf.mxu0
        %v1593 = vadd.f32 %v1536, %v1592
        %v1594 = vpop.f32.mrf.mxu0
        %v1595 = vadd.f32 %v1541, %v1594
        %1596 = vdwg.mxu0
        %1597 = vmatpush.bf16.msra.mxu0 0
        %1598 = vmatpush.bf16.msra.mxu0 0
        %1599 = vmatpush.bf16.msra.mxu0 0
        %1600 = vmatpush.bf16.msra.mxu0 0
        %1601 = vmatpush.bf16.msra.mxu0 %v1513
        %1602 = vmatpush.bf16.msra.mxu0 %v1509
        %1603 = vmatpush.bf16.msra.mxu0 %v1505
        %1604 = vmatpush.bf16.msra.mxu0 %v1501
        %1605 = vmatmul.bf16.gmra.mxu0 %v1554
        %v1606 = vpop.f32.mrf.mxu0
        %v1607 = vadd.f32 %v1526, %v1606
        %v1608 = vpop.f32.mrf.mxu0
        %v1609 = vadd.f32 %v1531, %v1608
        %1610 = vmatmul.bf16.gmra.mxu0 %v1557
        %v1611 = vpop.f32.mrf.mxu0
        %v1612 = vadd.f32 %v1536, %v1611
        %v1613 = vpop.f32.mrf.mxu0
        %v1614 = vadd.f32 %v1541, %v1613
        %1615 = vdwg.mxu0
        %1616 = vmatpush.bf16.msra.mxu0 0
        %1617 = vmatpush.bf16.msra.mxu0 0
        %1618 = vmatpush.bf16.msra.mxu0 0
        %1619 = vmatpush.bf16.msra.mxu0 0
        %1620 = vmatpush.bf16.msra.mxu0 %v1514
        %1621 = vmatpush.bf16.msra.mxu0 %v1510
        %1622 = vmatpush.bf16.msra.mxu0 %v1506
        %1623 = vmatpush.bf16.msra.mxu0 %v1502
        %1624 = vmatmul.bf16.gmra.mxu0 %v1554
        %v1625 = vpop.f32.mrf.mxu0
        %v1626 = vadd.f32 %v1526, %v1625
        %v1627 = vpop.f32.mrf.mxu0
        %v1628 = vadd.f32 %v1531, %v1627
        %1629 = vmatmul.bf16.gmra.mxu0 %v1557
        %v1630 = vpop.f32.mrf.mxu0
        %v1631 = vadd.f32 %v1536, %v1630
        %v1632 = vpop.f32.mrf.mxu0
        %v1633 = vadd.f32 %v1541, %v1632
        %1634 = vdwg.mxu0
        %vm1635 = vcmp.gt.f32.partialorder %v1569, 0.0
        %vm1636 = vcmp.gt.f32.partialorder %v1588, 0.0
        %vm1637 = vcmp.gt.f32.partialorder %v1607, 0.0
        %vm1638 = vcmp.gt.f32.partialorder %v1626, 0.0
        %vm1639 = vcmp.gt.f32.partialorder %v1571, 0.0
        %vm1640 = vcmp.gt.f32.partialorder %v1590, 0.0
        %vm1641 = vcmp.gt.f32.partialorder %v1609, 0.0
        %vm1642 = vcmp.gt.f32.partialorder %v1628, 0.0
        %vm1643 = vcmp.gt.f32.partialorder %v1574, 0.0
        %vm1644 = vcmp.gt.f32.partialorder %v1593, 0.0
        %vm1645 = vcmp.gt.f32.partialorder %v1612, 0.0
        %vm1646 = vcmp.gt.f32.partialorder %v1631, 0.0
        %vm1647 = vcmp.gt.f32.partialorder %v1576, 0.0
        %vm1648 = vcmp.gt.f32.partialorder %v1595, 0.0
        %vm1649 = vcmp.gt.f32.partialorder %v1614, 0.0
        %vm1650 = vcmp.gt.f32.partialorder %v1633, 0.0
        %v1651 = vmul.f32 %v1569, 0.25
        %v1652 = vmul.f32 %v1588, 0.25
        %v1653 = vmul.f32 %v1607, 0.25
        %v1654 = vmul.f32 %v1626, 0.25
        %v1655 = vmul.f32 %v1571, 0.25
        %v1656 = vmul.f32 %v1590, 0.25
        %v1657 = vmul.f32 %v1609, 0.25
        %v1658 = vmul.f32 %v1628, 0.25
        %v1659 = vmul.f32 %v1574, 0.25
        %v1660 = vmul.f32 %v1593, 0.25
        %v1661 = vmul.f32 %v1612, 0.25
        %v1662 = vmul.f32 %v1631, 0.25
        %v1663 = vmul.f32 %v1576, 0.25
        %v1664 = vmul.f32 %v1595, 0.25
        %v1665 = vmul.f32 %v1614, 0.25
        %v1666 = vmul.f32 %v1633, 0.25
        %v1667 = vsel %vm1635, %v1569, %v1651
        %v1668 = vsel %vm1636, %v1588, %v1652
        %v1669 = vsel %vm1637, %v1607, %v1653
        %v1670 = vsel %vm1638, %v1626, %v1654
        %v1671 = vsel %vm1639, %v1571, %v1655
        %v1672 = vsel %vm1640, %v1590, %v1656
        %v1673 = vsel %vm1641, %v1609, %v1657
        %v1674 = vsel %vm1642, %v1628, %v1658
        %v1675 = vsel %vm1643, %v1574, %v1659
        %v1676 = vsel %vm1644, %v1593, %v1660
        %v1677 = vsel %vm1645, %v1612, %v1661
        %v1678 = vsel %vm1646, %v1631, %v1662
        %v1679 = vsel %vm1647, %v1576, %v1663
        %v1680 = vsel %vm1648, %v1595, %v1664
        %v1681 = vsel %vm1649, %v1614, %v1665
        %v1682 = vsel %vm1650, %v1633, %v1666
        %v1683 = vpack.c.bf16 %v1668, %v1667
        %v1684 = vpack.c.bf16 %v1670, %v1669
        %v1685 = vpack.c.bf16 %v1672, %v1671
        %v1686 = vpack.c.bf16 %v1674, %v1673
        %v1687 = vpack.c.bf16 %v1676, %v1675
        %v1688 = vpack.c.bf16 %v1678, %v1677
        %v1689 = vpack.c.bf16 %v1680, %v1679
        %v1690 = vpack.c.bf16 %v1682, %v1681
        %1691 = vrot.lane.b32.xlu0 %v1667, 8
        %v1692 = vpop.permute.xlu0 %1691
        %1693 = vrot.lane.b32.xlu0 %v1671, 8
        %v1694 = vpop.permute.xlu0 %1693
        %1695 = vrot.lane.b32.xlu0 %v1675, 8
        %v1696 = vpop.permute.xlu0 %1695
        %1697 = vrot.lane.b32.xlu0 %v1679, 8
        %v1698 = vpop.permute.xlu0 %1697
        %1699 = vrot.lane.b32.xlu0 %v1668, 8
        %v1700 = vpop.permute.xlu0 %1699
        %1701 = vrot.lane.b32.xlu0 %v1672, 8
        %v1702 = vpop.permute.xlu0 %1701
        %1703 = vrot.lane.b32.xlu0 %v1676, 8
        %v1704 = vpop.permute.xlu0 %1703
        %1705 = vrot.lane.b32.xlu0 %v1680, 8
        %v1706 = vpop.permute.xlu0 %1705
        %1707 = vrot.lane.b32.xlu0 %v1669, 8
        %v1708 = vpop.permute.xlu0 %1707
        %1709 = vrot.lane.b32.xlu0 %v1673, 8
        %v1710 = vpop.permute.xlu0 %1709
        %1711 = vrot.lane.b32.xlu0 %v1677, 8
        %v1712 = vpop.permute.xlu0 %1711
        %1713 = vrot.lane.b32.xlu0 %v1681, 8
        %v1714 = vpop.permute.xlu0 %1713
        %1715 = vrot.lane.b32.xlu0 %v1670, 8
        %v1716 = vpop.permute.xlu0 %1715
        %1717 = vrot.lane.b32.xlu0 %v1674, 8
        %v1718 = vpop.permute.xlu0 %1717
        %1719 = vrot.lane.b32.xlu0 %v1678, 8
        %v1720 = vpop.permute.xlu0 %1719
        %1721 = vrot.lane.b32.xlu0 %v1682, 8
        %v1722 = vpop.permute.xlu0 %1721
        %v1723 = vsel %vm558, %v1708, %v1716
        %v1724 = vsel %vm558, %v1710, %v1718
        %v1725 = vsel %vm558, %v1712, %v1720
        %v1726 = vsel %vm558, %v1714, %v1722
        %v1727 = vsel %vm558, %v1700, %v1708
        %v1728 = vsel %vm558, %v1702, %v1710
        %v1729 = vsel %vm558, %v1704, %v1712
        %v1730 = vsel %vm558, %v1706, %v1714
        %v1731 = vsel %vm558, %v1692, %v1700
        %v1732 = vsel %vm558, %v1694, %v1702
        %v1733 = vsel %vm558, %v1696, %v1704
        %v1734 = vsel %vm558, %v1698, %v1706
        %v1735 = vsel %vm558, %v1716, %v1692
        %v1736 = vsel %vm558, %v1718, %v1694
        %v1737 = vsel %vm558, %v1720, %v1696
        %v1738 = vsel %vm558, %v1722, %v1698
        %v1739 = vsel %vm571, %v1735, 0.0
        %v1740 = vsel %vm572, %v1731, 0.0
        %v1741 = vsel %vm573, %v1727, 0.0
        %v1742 = vsel %vm574, %v1723, 0.0
        %v1743 = vsel %vm571, %v1736, 0.0
        %v1744 = vsel %vm572, %v1732, 0.0
        %v1745 = vsel %vm573, %v1728, 0.0
        %v1746 = vsel %vm574, %v1724, 0.0
        %v1747 = vsel %vm571, %v1737, 0.0
        %v1748 = vsel %vm572, %v1733, 0.0
        %v1749 = vsel %vm573, %v1729, 0.0
        %v1750 = vsel %vm574, %v1725, 0.0
        %v1751 = vsel %vm571, %v1738, 0.0
        %v1752 = vsel %vm572, %v1734, 0.0
        %v1753 = vsel %vm573, %v1730, 0.0
        %v1754 = vsel %vm574, %v1726, 0.0
        %v1755 = vpack.c.bf16 %v1740, %v1739
        %v1756 = vpack.c.bf16 %v1742, %v1741
        %v1757 = vpack.c.bf16 %v1744, %v1743
        %v1758 = vpack.c.bf16 %v1746, %v1745
        %v1759 = vpack.c.bf16 %v1748, %v1747
        %v1760 = vpack.c.bf16 %v1750, %v1749
        %v1761 = vpack.c.bf16 %v1752, %v1751
        %v1762 = vpack.c.bf16 %v1754, %v1753
        %1763 = vrot.lane.b32.xlu0 %v1667, 4
        %v1764 = vpop.permute.xlu0 %1763
        %1765 = vrot.lane.b32.xlu0 %v1671, 4
        %v1766 = vpop.permute.xlu0 %1765
        %1767 = vrot.lane.b32.xlu0 %v1675, 4
        %v1768 = vpop.permute.xlu0 %1767
        %1769 = vrot.lane.b32.xlu0 %v1679, 4
        %v1770 = vpop.permute.xlu0 %1769
        %1771 = vrot.lane.b32.xlu0 %v1668, 4
        %v1772 = vpop.permute.xlu0 %1771
        %1773 = vrot.lane.b32.xlu0 %v1672, 4
        %v1774 = vpop.permute.xlu0 %1773
        %1775 = vrot.lane.b32.xlu0 %v1676, 4
        %v1776 = vpop.permute.xlu0 %1775
        %1777 = vrot.lane.b32.xlu0 %v1680, 4
        %v1778 = vpop.permute.xlu0 %1777
        %1779 = vrot.lane.b32.xlu0 %v1669, 4
        %v1780 = vpop.permute.xlu0 %1779
        %1781 = vrot.lane.b32.xlu0 %v1673, 4
        %v1782 = vpop.permute.xlu0 %1781
        %1783 = vrot.lane.b32.xlu0 %v1677, 4
        %v1784 = vpop.permute.xlu0 %1783
        %1785 = vrot.lane.b32.xlu0 %v1681, 4
        %v1786 = vpop.permute.xlu0 %1785
        %1787 = vrot.lane.b32.xlu0 %v1670, 4
        %v1788 = vpop.permute.xlu0 %1787
        %1789 = vrot.lane.b32.xlu0 %v1674, 4
        %v1790 = vpop.permute.xlu0 %1789
        %1791 = vrot.lane.b32.xlu0 %v1678, 4
        %v1792 = vpop.permute.xlu0 %1791
        %1793 = vrot.lane.b32.xlu0 %v1682, 4
        %v1794 = vpop.permute.xlu0 %1793
        %v1795 = vsel %vm603, %v1780, %v1788
        %v1796 = vsel %vm603, %v1782, %v1790
        %v1797 = vsel %vm603, %v1784, %v1792
        %v1798 = vsel %vm603, %v1786, %v1794
        %v1799 = vsel %vm603, %v1772, %v1780
        %v1800 = vsel %vm603, %v1774, %v1782
        %v1801 = vsel %vm603, %v1776, %v1784
        %v1802 = vsel %vm603, %v1778, %v1786
        %v1803 = vsel %vm603, %v1764, %v1772
        %v1804 = vsel %vm603, %v1766, %v1774
        %v1805 = vsel %vm603, %v1768, %v1776
        %v1806 = vsel %vm603, %v1770, %v1778
        %v1807 = vsel %vm603, %v1788, %v1764
        %v1808 = vsel %vm603, %v1790, %v1766
        %v1809 = vsel %vm603, %v1792, %v1768
        %v1810 = vsel %vm603, %v1794, %v1770
        %v1811 = vsel %vm616, %v1807, 0.0
        %v1812 = vsel %vm617, %v1803, 0.0
        %v1813 = vsel %vm618, %v1799, 0.0
        %v1814 = vsel %vm619, %v1795, 0.0
        %v1815 = vsel %vm616, %v1808, 0.0
        %v1816 = vsel %vm617, %v1804, 0.0
        %v1817 = vsel %vm618, %v1800, 0.0
        %v1818 = vsel %vm619, %v1796, 0.0
        %v1819 = vsel %vm616, %v1809, 0.0
        %v1820 = vsel %vm617, %v1805, 0.0
        %v1821 = vsel %vm618, %v1801, 0.0
        %v1822 = vsel %vm619, %v1797, 0.0
        %v1823 = vsel %vm616, %v1810, 0.0
        %v1824 = vsel %vm617, %v1806, 0.0
        %v1825 = vsel %vm618, %v1802, 0.0
        %v1826 = vsel %vm619, %v1798, 0.0
        %v1827 = vpack.c.bf16 %v1812, %v1811
        %v1828 = vpack.c.bf16 %v1814, %v1813
        %v1829 = vpack.c.bf16 %v1816, %v1815
        %v1830 = vpack.c.bf16 %v1818, %v1817
        %v1831 = vpack.c.bf16 %v1820, %v1819
        %v1832 = vpack.c.bf16 %v1822, %v1821
        %v1833 = vpack.c.bf16 %v1824, %v1823
        %v1834 = vpack.c.bf16 %v1826, %v1825
        %1835 = vrot.lane.b32.xlu0 %v1667, 2
        %v1836 = vpop.permute.xlu0 %1835
        %1837 = vrot.lane.b32.xlu0 %v1671, 2
        %v1838 = vpop.permute.xlu0 %1837
        %1839 = vrot.lane.b32.xlu0 %v1675, 2
        %v1840 = vpop.permute.xlu0 %1839
        %1841 = vrot.lane.b32.xlu0 %v1679, 2
        %v1842 = vpop.permute.xlu0 %1841
        %1843 = vrot.lane.b32.xlu0 %v1668, 2
        %v1844 = vpop.permute.xlu0 %1843
        %1845 = vrot.lane.b32.xlu0 %v1672, 2
        %v1846 = vpop.permute.xlu0 %1845
        %1847 = vrot.lane.b32.xlu0 %v1676, 2
        %v1848 = vpop.permute.xlu0 %1847
        %1849 = vrot.lane.b32.xlu0 %v1680, 2
        %v1850 = vpop.permute.xlu0 %1849
        %1851 = vrot.lane.b32.xlu0 %v1669, 2
        %v1852 = vpop.permute.xlu0 %1851
        %1853 = vrot.lane.b32.xlu0 %v1673, 2
        %v1854 = vpop.permute.xlu0 %1853
        %1855 = vrot.lane.b32.xlu0 %v1677, 2
        %v1856 = vpop.permute.xlu0 %1855
        %1857 = vrot.lane.b32.xlu0 %v1681, 2
        %v1858 = vpop.permute.xlu0 %1857
        %1859 = vrot.lane.b32.xlu0 %v1670, 2
        %v1860 = vpop.permute.xlu0 %1859
        %1861 = vrot.lane.b32.xlu0 %v1674, 2
        %v1862 = vpop.permute.xlu0 %1861
        %1863 = vrot.lane.b32.xlu0 %v1678, 2
        %v1864 = vpop.permute.xlu0 %1863
        %1865 = vrot.lane.b32.xlu0 %v1682, 2
        %v1866 = vpop.permute.xlu0 %1865
        %v1867 = vsel %vm648, %v1852, %v1860
        %v1868 = vsel %vm648, %v1854, %v1862
        %v1869 = vsel %vm648, %v1856, %v1864
        %v1870 = vsel %vm648, %v1858, %v1866
        %v1871 = vsel %vm648, %v1844, %v1852
        %v1872 = vsel %vm648, %v1846, %v1854
        %v1873 = vsel %vm648, %v1848, %v1856
        %v1874 = vsel %vm648, %v1850, %v1858
        %v1875 = vsel %vm648, %v1836, %v1844
        %v1876 = vsel %vm648, %v1838, %v1846
        %v1877 = vsel %vm648, %v1840, %v1848
        %v1878 = vsel %vm648, %v1842, %v1850
        %v1879 = vsel %vm648, %v1860, %v1836
        %v1880 = vsel %vm648, %v1862, %v1838
        %v1881 = vsel %vm648, %v1864, %v1840
        %v1882 = vsel %vm648, %v1866, %v1842
        %v1883 = vsel %vm661, %v1879, 0.0
        %v1884 = vsel %vm662, %v1875, 0.0
        %v1885 = vsel %vm663, %v1871, 0.0
        %v1886 = vsel %vm664, %v1867, 0.0
        %v1887 = vsel %vm661, %v1880, 0.0
        %v1888 = vsel %vm662, %v1876, 0.0
        %v1889 = vsel %vm663, %v1872, 0.0
        %v1890 = vsel %vm664, %v1868, 0.0
        %v1891 = vsel %vm661, %v1881, 0.0
        %v1892 = vsel %vm662, %v1877, 0.0
        %v1893 = vsel %vm663, %v1873, 0.0
        %v1894 = vsel %vm664, %v1869, 0.0
        %v1895 = vsel %vm661, %v1882, 0.0
        %v1896 = vsel %vm662, %v1878, 0.0
        %v1897 = vsel %vm663, %v1874, 0.0
        %v1898 = vsel %vm664, %v1870, 0.0
        %v1899 = vpack.c.bf16 %v1884, %v1883
        %v1900 = vpack.c.bf16 %v1886, %v1885
        %v1901 = vpack.c.bf16 %v1888, %v1887
        %v1902 = vpack.c.bf16 %v1890, %v1889
        %v1903 = vpack.c.bf16 %v1892, %v1891
        %v1904 = vpack.c.bf16 %v1894, %v1893
        %v1905 = vpack.c.bf16 %v1896, %v1895
        %v1906 = vpack.c.bf16 %v1898, %v1897
        %1907 = vrot.lane.b32.xlu0 %v1667, 1
        %v1908 = vpop.permute.xlu0 %1907
        %1909 = vrot.lane.b32.xlu0 %v1671, 1
        %v1910 = vpop.permute.xlu0 %1909
        %1911 = vrot.lane.b32.xlu0 %v1675, 1
        %v1912 = vpop.permute.xlu0 %1911
        %1913 = vrot.lane.b32.xlu0 %v1679, 1
        %v1914 = vpop.permute.xlu0 %1913
        %1915 = vrot.lane.b32.xlu0 %v1668, 1
        %v1916 = vpop.permute.xlu0 %1915
        %1917 = vrot.lane.b32.xlu0 %v1672, 1
        %v1918 = vpop.permute.xlu0 %1917
        %1919 = vrot.lane.b32.xlu0 %v1676, 1
        %v1920 = vpop.permute.xlu0 %1919
        %1921 = vrot.lane.b32.xlu0 %v1680, 1
        %v1922 = vpop.permute.xlu0 %1921
        %1923 = vrot.lane.b32.xlu0 %v1669, 1
        %v1924 = vpop.permute.xlu0 %1923
        %1925 = vrot.lane.b32.xlu0 %v1673, 1
        %v1926 = vpop.permute.xlu0 %1925
        %1927 = vrot.lane.b32.xlu0 %v1677, 1
        %v1928 = vpop.permute.xlu0 %1927
        %1929 = vrot.lane.b32.xlu0 %v1681, 1
        %v1930 = vpop.permute.xlu0 %1929
        %1931 = vrot.lane.b32.xlu0 %v1670, 1
        %v1932 = vpop.permute.xlu0 %1931
        %1933 = vrot.lane.b32.xlu0 %v1674, 1
        %v1934 = vpop.permute.xlu0 %1933
        %1935 = vrot.lane.b32.xlu0 %v1678, 1
        %v1936 = vpop.permute.xlu0 %1935
        %1937 = vrot.lane.b32.xlu0 %v1682, 1
        %v1938 = vpop.permute.xlu0 %1937
        %v1939 = vsel %vm693, %v1924, %v1932
        %v1940 = vsel %vm693, %v1926, %v1934
        %v1941 = vsel %vm693, %v1928, %v1936
        %v1942 = vsel %vm693, %v1930, %v1938
        %v1943 = vsel %vm693, %v1916, %v1924
        %v1944 = vsel %vm693, %v1918, %v1926
        %v1945 = vsel %vm693, %v1920, %v1928
        %v1946 = vsel %vm693, %v1922, %v1930
        %v1947 = vsel %vm693, %v1908, %v1916
        %v1948 = vsel %vm693, %v1910, %v1918
        %v1949 = vsel %vm693, %v1912, %v1920
        %v1950 = vsel %vm693, %v1914, %v1922
        %v1951 = vsel %vm693, %v1932, %v1908
        %v1952 = vsel %vm693, %v1934, %v1910
        %v1953 = vsel %vm693, %v1936, %v1912
        %v1954 = vsel %vm693, %v1938, %v1914
        %v1955 = vsel %vm706, %v1951, 0.0
        %v1956 = vsel %vm707, %v1947, 0.0
        %v1957 = vsel %vm708, %v1943, 0.0
        %v1958 = vsel %vm709, %v1939, 0.0
        %v1959 = vsel %vm706, %v1952, 0.0
        %v1960 = vsel %vm707, %v1948, 0.0
        %v1961 = vsel %vm708, %v1944, 0.0
        %v1962 = vsel %vm709, %v1940, 0.0
        %v1963 = vsel %vm706, %v1953, 0.0
        %v1964 = vsel %vm707, %v1949, 0.0
        %v1965 = vsel %vm708, %v1945, 0.0
        %v1966 = vsel %vm709, %v1941, 0.0
        %v1967 = vsel %vm706, %v1954, 0.0
        %v1968 = vsel %vm707, %v1950, 0.0
        %v1969 = vsel %vm708, %v1946, 0.0
        %v1970 = vsel %vm709, %v1942, 0.0
        %v1971 = vpack.c.bf16 %v1956, %v1955
        %v1972 = vpack.c.bf16 %v1958, %v1957
        %v1973 = vpack.c.bf16 %v1960, %v1959
        %v1974 = vpack.c.bf16 %v1962, %v1961
        %v1975 = vpack.c.bf16 %v1964, %v1963
        %v1976 = vpack.c.bf16 %v1966, %v1965
        %v1977 = vpack.c.bf16 %v1968, %v1967
        %v1978 = vpack.c.bf16 %v1970, %v1969
        %1979 = vrot.lane.b32.xlu0 %v1667, 127
        %v1980 = vpop.permute.xlu0 %1979
        %1981 = vrot.lane.b32.xlu0 %v1671, 127
        %v1982 = vpop.permute.xlu0 %1981
        %1983 = vrot.lane.b32.xlu0 %v1675, 127
        %v1984 = vpop.permute.xlu0 %1983
        %1985 = vrot.lane.b32.xlu0 %v1679, 127
        %v1986 = vpop.permute.xlu0 %1985
        %1987 = vrot.lane.b32.xlu0 %v1668, 127
        %v1988 = vpop.permute.xlu0 %1987
        %1989 = vrot.lane.b32.xlu0 %v1672, 127
        %v1990 = vpop.permute.xlu0 %1989
        %1991 = vrot.lane.b32.xlu0 %v1676, 127
        %v1992 = vpop.permute.xlu0 %1991
        %1993 = vrot.lane.b32.xlu0 %v1680, 127
        %v1994 = vpop.permute.xlu0 %1993
        %1995 = vrot.lane.b32.xlu0 %v1669, 127
        %v1996 = vpop.permute.xlu0 %1995
        %1997 = vrot.lane.b32.xlu0 %v1673, 127
        %v1998 = vpop.permute.xlu0 %1997
        %1999 = vrot.lane.b32.xlu0 %v1677, 127
        %v2000 = vpop.permute.xlu0 %1999
        %2001 = vrot.lane.b32.xlu0 %v1681, 127
        %v2002 = vpop.permute.xlu0 %2001
        %2003 = vrot.lane.b32.xlu0 %v1670, 127
        %v2004 = vpop.permute.xlu0 %2003
        %2005 = vrot.lane.b32.xlu0 %v1674, 127
        %v2006 = vpop.permute.xlu0 %2005
        %2007 = vrot.lane.b32.xlu0 %v1678, 127
        %v2008 = vpop.permute.xlu0 %2007
        %2009 = vrot.lane.b32.xlu0 %v1682, 127
        %v2010 = vpop.permute.xlu0 %2009
        %v2011 = vsel %vm738, %v1996, %v2004
        %v2012 = vsel %vm738, %v1998, %v2006
        %v2013 = vsel %vm738, %v2000, %v2008
        %v2014 = vsel %vm738, %v2002, %v2010
        %v2015 = vsel %vm738, %v1988, %v1996
        %v2016 = vsel %vm738, %v1990, %v1998
        %v2017 = vsel %vm738, %v1992, %v2000
        %v2018 = vsel %vm738, %v1994, %v2002
        %v2019 = vsel %vm738, %v1980, %v1988
        %v2020 = vsel %vm738, %v1982, %v1990
        %v2021 = vsel %vm738, %v1984, %v1992
        %v2022 = vsel %vm738, %v1986, %v1994
        %v2023 = vsel %vm738, %v2004, %v1980
        %v2024 = vsel %vm738, %v2006, %v1982
        %v2025 = vsel %vm738, %v2008, %v1984
        %v2026 = vsel %vm738, %v2010, %v1986
        %v2027 = vsel %vm751, %v2019, 0.0
        %v2028 = vsel %vm752, %v2015, 0.0
        %v2029 = vsel %vm753, %v2011, 0.0
        %v2030 = vsel %vm754, %v2023, 0.0
        %v2031 = vsel %vm751, %v2020, 0.0
        %v2032 = vsel %vm752, %v2016, 0.0
        %v2033 = vsel %vm753, %v2012, 0.0
        %v2034 = vsel %vm754, %v2024, 0.0
        %v2035 = vsel %vm751, %v2021, 0.0
        %v2036 = vsel %vm752, %v2017, 0.0
        %v2037 = vsel %vm753, %v2013, 0.0
        %v2038 = vsel %vm754, %v2025, 0.0
        %v2039 = vsel %vm751, %v2022, 0.0
        %v2040 = vsel %vm752, %v2018, 0.0
        %v2041 = vsel %vm753, %v2014, 0.0
        %v2042 = vsel %vm754, %v2026, 0.0
        %v2043 = vpack.c.bf16 %v2028, %v2027
        %v2044 = vpack.c.bf16 %v2030, %v2029
        %v2045 = vpack.c.bf16 %v2032, %v2031
        %v2046 = vpack.c.bf16 %v2034, %v2033
        %v2047 = vpack.c.bf16 %v2036, %v2035
        %v2048 = vpack.c.bf16 %v2038, %v2037
        %v2049 = vpack.c.bf16 %v2040, %v2039
        %v2050 = vpack.c.bf16 %v2042, %v2041
        %2051 = vrot.lane.b32.xlu0 %v1667, 126
        %v2052 = vpop.permute.xlu0 %2051
        %2053 = vrot.lane.b32.xlu0 %v1671, 126
        %v2054 = vpop.permute.xlu0 %2053
        %2055 = vrot.lane.b32.xlu0 %v1675, 126
        %v2056 = vpop.permute.xlu0 %2055
        %2057 = vrot.lane.b32.xlu0 %v1679, 126
        %v2058 = vpop.permute.xlu0 %2057
        %2059 = vrot.lane.b32.xlu0 %v1668, 126
        %v2060 = vpop.permute.xlu0 %2059
        %2061 = vrot.lane.b32.xlu0 %v1672, 126
        %v2062 = vpop.permute.xlu0 %2061
        %2063 = vrot.lane.b32.xlu0 %v1676, 126
        %v2064 = vpop.permute.xlu0 %2063
        %2065 = vrot.lane.b32.xlu0 %v1680, 126
        %v2066 = vpop.permute.xlu0 %2065
        %2067 = vrot.lane.b32.xlu0 %v1669, 126
        %v2068 = vpop.permute.xlu0 %2067
        %2069 = vrot.lane.b32.xlu0 %v1673, 126
        %v2070 = vpop.permute.xlu0 %2069
        %2071 = vrot.lane.b32.xlu0 %v1677, 126
        %v2072 = vpop.permute.xlu0 %2071
        %2073 = vrot.lane.b32.xlu0 %v1681, 126
        %v2074 = vpop.permute.xlu0 %2073
        %2075 = vrot.lane.b32.xlu0 %v1670, 126
        %v2076 = vpop.permute.xlu0 %2075
        %2077 = vrot.lane.b32.xlu0 %v1674, 126
        %v2078 = vpop.permute.xlu0 %2077
        %2079 = vrot.lane.b32.xlu0 %v1678, 126
        %v2080 = vpop.permute.xlu0 %2079
        %2081 = vrot.lane.b32.xlu0 %v1682, 126
        %v2082 = vpop.permute.xlu0 %2081
        %v2083 = vsel %vm783, %v2068, %v2076
        %v2084 = vsel %vm783, %v2070, %v2078
        %v2085 = vsel %vm783, %v2072, %v2080
        %v2086 = vsel %vm783, %v2074, %v2082
        %v2087 = vsel %vm783, %v2060, %v2068
        %v2088 = vsel %vm783, %v2062, %v2070
        %v2089 = vsel %vm783, %v2064, %v2072
        %v2090 = vsel %vm783, %v2066, %v2074
        %v2091 = vsel %vm783, %v2052, %v2060
        %v2092 = vsel %vm783, %v2054, %v2062
        %v2093 = vsel %vm783, %v2056, %v2064
        %v2094 = vsel %vm783, %v2058, %v2066
        %v2095 = vsel %vm783, %v2076, %v2052
        %v2096 = vsel %vm783, %v2078, %v2054
        %v2097 = vsel %vm783, %v2080, %v2056
        %v2098 = vsel %vm783, %v2082, %v2058
        %v2099 = vsel %vm796, %v2091, 0.0
        %v2100 = vsel %vm797, %v2087, 0.0
        %v2101 = vsel %vm798, %v2083, 0.0
        %v2102 = vsel %vm799, %v2095, 0.0
        %v2103 = vsel %vm796, %v2092, 0.0
        %v2104 = vsel %vm797, %v2088, 0.0
        %v2105 = vsel %vm798, %v2084, 0.0
        %v2106 = vsel %vm799, %v2096, 0.0
        %v2107 = vsel %vm796, %v2093, 0.0
        %v2108 = vsel %vm797, %v2089, 0.0
        %v2109 = vsel %vm798, %v2085, 0.0
        %v2110 = vsel %vm799, %v2097, 0.0
        %v2111 = vsel %vm796, %v2094, 0.0
        %v2112 = vsel %vm797, %v2090, 0.0
        %v2113 = vsel %vm798, %v2086, 0.0
        %v2114 = vsel %vm799, %v2098, 0.0
        %v2115 = vpack.c.bf16 %v2100, %v2099
        %v2116 = vpack.c.bf16 %v2102, %v2101
        %v2117 = vpack.c.bf16 %v2104, %v2103
        %v2118 = vpack.c.bf16 %v2106, %v2105
        %v2119 = vpack.c.bf16 %v2108, %v2107
        %v2120 = vpack.c.bf16 %v2110, %v2109
        %v2121 = vpack.c.bf16 %v2112, %v2111
        %v2122 = vpack.c.bf16 %v2114, %v2113
        %2123 = vrot.lane.b32.xlu0 %v1667, 124
        %v2124 = vpop.permute.xlu0 %2123
        %2125 = vrot.lane.b32.xlu0 %v1671, 124
        %v2126 = vpop.permute.xlu0 %2125
        %2127 = vrot.lane.b32.xlu0 %v1675, 124
        %v2128 = vpop.permute.xlu0 %2127
        %2129 = vrot.lane.b32.xlu0 %v1679, 124
        %v2130 = vpop.permute.xlu0 %2129
        %2131 = vrot.lane.b32.xlu0 %v1668, 124
        %v2132 = vpop.permute.xlu0 %2131
        %2133 = vrot.lane.b32.xlu0 %v1672, 124
        %v2134 = vpop.permute.xlu0 %2133
        %2135 = vrot.lane.b32.xlu0 %v1676, 124
        %v2136 = vpop.permute.xlu0 %2135
        %2137 = vrot.lane.b32.xlu0 %v1680, 124
        %v2138 = vpop.permute.xlu0 %2137
        %2139 = vrot.lane.b32.xlu0 %v1669, 124
        %v2140 = vpop.permute.xlu0 %2139
        %2141 = vrot.lane.b32.xlu0 %v1673, 124
        %v2142 = vpop.permute.xlu0 %2141
        %2143 = vrot.lane.b32.xlu0 %v1677, 124
        %v2144 = vpop.permute.xlu0 %2143
        %2145 = vrot.lane.b32.xlu0 %v1681, 124
        %v2146 = vpop.permute.xlu0 %2145
        %2147 = vrot.lane.b32.xlu0 %v1670, 124
        %v2148 = vpop.permute.xlu0 %2147
        %2149 = vrot.lane.b32.xlu0 %v1674, 124
        %v2150 = vpop.permute.xlu0 %2149
        %2151 = vrot.lane.b32.xlu0 %v1678, 124
        %v2152 = vpop.permute.xlu0 %2151
        %2153 = vrot.lane.b32.xlu0 %v1682, 124
        %v2154 = vpop.permute.xlu0 %2153
        %v2155 = vsel %vm828, %v2140, %v2148
        %v2156 = vsel %vm828, %v2142, %v2150
        %v2157 = vsel %vm828, %v2144, %v2152
        %v2158 = vsel %vm828, %v2146, %v2154
        %v2159 = vsel %vm828, %v2132, %v2140
        %v2160 = vsel %vm828, %v2134, %v2142
        %v2161 = vsel %vm828, %v2136, %v2144
        %v2162 = vsel %vm828, %v2138, %v2146
        %v2163 = vsel %vm828, %v2124, %v2132
        %v2164 = vsel %vm828, %v2126, %v2134
        %v2165 = vsel %vm828, %v2128, %v2136
        %v2166 = vsel %vm828, %v2130, %v2138
        %v2167 = vsel %vm828, %v2148, %v2124
        %v2168 = vsel %vm828, %v2150, %v2126
        %v2169 = vsel %vm828, %v2152, %v2128
        %v2170 = vsel %vm828, %v2154, %v2130
        %v2171 = vsel %vm841, %v2163, 0.0
        %v2172 = vsel %vm842, %v2159, 0.0
        %v2173 = vsel %vm843, %v2155, 0.0
        %v2174 = vsel %vm844, %v2167, 0.0
        %v2175 = vsel %vm841, %v2164, 0.0
        %v2176 = vsel %vm842, %v2160, 0.0
        %v2177 = vsel %vm843, %v2156, 0.0
        %v2178 = vsel %vm844, %v2168, 0.0
        %v2179 = vsel %vm841, %v2165, 0.0
        %v2180 = vsel %vm842, %v2161, 0.0
        %v2181 = vsel %vm843, %v2157, 0.0
        %v2182 = vsel %vm844, %v2169, 0.0
        %v2183 = vsel %vm841, %v2166, 0.0
        %v2184 = vsel %vm842, %v2162, 0.0
        %v2185 = vsel %vm843, %v2158, 0.0
        %v2186 = vsel %vm844, %v2170, 0.0
        %v2187 = vpack.c.bf16 %v2172, %v2171
        %v2188 = vpack.c.bf16 %v2174, %v2173
        %v2189 = vpack.c.bf16 %v2176, %v2175
        %v2190 = vpack.c.bf16 %v2178, %v2177
        %v2191 = vpack.c.bf16 %v2180, %v2179
        %v2192 = vpack.c.bf16 %v2182, %v2181
        %v2193 = vpack.c.bf16 %v2184, %v2183
        %v2194 = vpack.c.bf16 %v2186, %v2185
        %2195 = vrot.lane.b32.xlu0 %v1667, 120
        %v2196 = vpop.permute.xlu0 %2195
        %2197 = vrot.lane.b32.xlu0 %v1671, 120
        %v2198 = vpop.permute.xlu0 %2197
        %2199 = vrot.lane.b32.xlu0 %v1675, 120
        %v2200 = vpop.permute.xlu0 %2199
        %2201 = vrot.lane.b32.xlu0 %v1679, 120
        %v2202 = vpop.permute.xlu0 %2201
        %2203 = vrot.lane.b32.xlu0 %v1668, 120
        %v2204 = vpop.permute.xlu0 %2203
        %2205 = vrot.lane.b32.xlu0 %v1672, 120
        %v2206 = vpop.permute.xlu0 %2205
        %2207 = vrot.lane.b32.xlu0 %v1676, 120
        %v2208 = vpop.permute.xlu0 %2207
        %2209 = vrot.lane.b32.xlu0 %v1680, 120
        %v2210 = vpop.permute.xlu0 %2209
        %2211 = vrot.lane.b32.xlu0 %v1669, 120
        %v2212 = vpop.permute.xlu0 %2211
        %2213 = vrot.lane.b32.xlu0 %v1673, 120
        %v2214 = vpop.permute.xlu0 %2213
        %2215 = vrot.lane.b32.xlu0 %v1677, 120
        %v2216 = vpop.permute.xlu0 %2215
        %2217 = vrot.lane.b32.xlu0 %v1681, 120
        %v2218 = vpop.permute.xlu0 %2217
        %2219 = vrot.lane.b32.xlu0 %v1670, 120
        %v2220 = vpop.permute.xlu0 %2219
        %2221 = vrot.lane.b32.xlu0 %v1674, 120
        %v2222 = vpop.permute.xlu0 %2221
        %2223 = vrot.lane.b32.xlu0 %v1678, 120
        %v2224 = vpop.permute.xlu0 %2223
        %2225 = vrot.lane.b32.xlu0 %v1682, 120
        %v2226 = vpop.permute.xlu0 %2225
        %v2227 = vsel %vm873, %v2212, %v2220
        %v2228 = vsel %vm873, %v2214, %v2222
        %v2229 = vsel %vm873, %v2216, %v2224
        %v2230 = vsel %vm873, %v2218, %v2226
        %v2231 = vsel %vm873, %v2204, %v2212
        %v2232 = vsel %vm873, %v2206, %v2214
        %v2233 = vsel %vm873, %v2208, %v2216
        %v2234 = vsel %vm873, %v2210, %v2218
        %v2235 = vsel %vm873, %v2196, %v2204
        %v2236 = vsel %vm873, %v2198, %v2206
        %v2237 = vsel %vm873, %v2200, %v2208
        %v2238 = vsel %vm873, %v2202, %v2210
        %v2239 = vsel %vm873, %v2220, %v2196
        %v2240 = vsel %vm873, %v2222, %v2198
        %v2241 = vsel %vm873, %v2224, %v2200
        %v2242 = vsel %vm873, %v2226, %v2202
        %v2243 = vsel %vm886, %v2235, 0.0
        %v2244 = vsel %vm887, %v2231, 0.0
        %v2245 = vsel %vm888, %v2227, 0.0
        %v2246 = vsel %vm889, %v2239, 0.0
        %v2247 = vsel %vm886, %v2236, 0.0
        %v2248 = vsel %vm887, %v2232, 0.0
        %v2249 = vsel %vm888, %v2228, 0.0
        %v2250 = vsel %vm889, %v2240, 0.0
        %v2251 = vsel %vm886, %v2237, 0.0
        %v2252 = vsel %vm887, %v2233, 0.0
        %v2253 = vsel %vm888, %v2229, 0.0
        %v2254 = vsel %vm889, %v2241, 0.0
        %v2255 = vsel %vm886, %v2238, 0.0
        %v2256 = vsel %vm887, %v2234, 0.0
        %v2257 = vsel %vm888, %v2230, 0.0
        %v2258 = vsel %vm889, %v2242, 0.0
        %v2259 = vpack.c.bf16 %v2244, %v2243
        %v2260 = vpack.c.bf16 %v2246, %v2245
        %v2261 = vpack.c.bf16 %v2248, %v2247
        %v2262 = vpack.c.bf16 %v2250, %v2249
        %v2263 = vpack.c.bf16 %v2252, %v2251
        %v2264 = vpack.c.bf16 %v2254, %v2253
        %v2265 = vpack.c.bf16 %v2256, %v2255
        %v2266 = vpack.c.bf16 %v2258, %v2257
        %v2275 = vunpack.c.l.b16 %v1755
        %v2276 = vunpack.c.h.b16 %v1755
        %v2277 = vunpack.c.l.b16 %v1756
        %v2278 = vunpack.c.h.b16 %v1756
        %v2279 = vunpack.c.l.b16 %v1757
        %v2280 = vunpack.c.h.b16 %v1757
        %v2281 = vunpack.c.l.b16 %v1758
        %v2282 = vunpack.c.h.b16 %v1758
        %v2283 = vunpack.c.l.b16 %v1759
        %v2284 = vunpack.c.h.b16 %v1759
        %v2285 = vunpack.c.l.b16 %v1760
        %v2286 = vunpack.c.h.b16 %v1760
        %v2287 = vunpack.c.l.b16 %v1761
        %v2288 = vunpack.c.h.b16 %v1761
        %v2289 = vunpack.c.l.b16 %v1762
        %v2290 = vunpack.c.h.b16 %v1762
        %v2291 = vpack.c.b16 %v2279, %v2275
        %v2292 = vpack.c.b16 %v2280, %v2276
        %v2293 = vpack.c.b16 %v2281, %v2277
        %v2294 = vpack.c.b16 %v2282, %v2278
        %v2295 = vpack.c.b16 %v2287, %v2283
        %v2296 = vpack.c.b16 %v2288, %v2284
        %v2297 = vpack.c.b16 %v2289, %v2285
        %v2298 = vpack.c.b16 %v2290, %v2286
        %v2315 = vunpack.c.l.b16 %v1827
        %v2316 = vunpack.c.h.b16 %v1827
        %v2317 = vunpack.c.l.b16 %v1828
        %v2318 = vunpack.c.h.b16 %v1828
        %v2319 = vunpack.c.l.b16 %v1829
        %v2320 = vunpack.c.h.b16 %v1829
        %v2321 = vunpack.c.l.b16 %v1830
        %v2322 = vunpack.c.h.b16 %v1830
        %v2323 = vunpack.c.l.b16 %v1831
        %v2324 = vunpack.c.h.b16 %v1831
        %v2325 = vunpack.c.l.b16 %v1832
        %v2326 = vunpack.c.h.b16 %v1832
        %v2327 = vunpack.c.l.b16 %v1833
        %v2328 = vunpack.c.h.b16 %v1833
        %v2329 = vunpack.c.l.b16 %v1834
        %v2330 = vunpack.c.h.b16 %v1834
        %v2331 = vpack.c.b16 %v2319, %v2315
        %v2332 = vpack.c.b16 %v2320, %v2316
        %v2333 = vpack.c.b16 %v2321, %v2317
        %v2334 = vpack.c.b16 %v2322, %v2318
        %v2335 = vpack.c.b16 %v2327, %v2323
        %v2336 = vpack.c.b16 %v2328, %v2324
        %v2337 = vpack.c.b16 %v2329, %v2325
        %v2338 = vpack.c.b16 %v2330, %v2326
        %v2355 = vunpack.c.l.b16 %v1899
        %v2356 = vunpack.c.h.b16 %v1899
        %v2357 = vunpack.c.l.b16 %v1900
        %v2358 = vunpack.c.h.b16 %v1900
        %v2359 = vunpack.c.l.b16 %v1901
        %v2360 = vunpack.c.h.b16 %v1901
        %v2361 = vunpack.c.l.b16 %v1902
        %v2362 = vunpack.c.h.b16 %v1902
        %v2363 = vunpack.c.l.b16 %v1903
        %v2364 = vunpack.c.h.b16 %v1903
        %v2365 = vunpack.c.l.b16 %v1904
        %v2366 = vunpack.c.h.b16 %v1904
        %v2367 = vunpack.c.l.b16 %v1905
        %v2368 = vunpack.c.h.b16 %v1905
        %v2369 = vunpack.c.l.b16 %v1906
        %v2370 = vunpack.c.h.b16 %v1906
        %v2371 = vpack.c.b16 %v2359, %v2355
        %v2372 = vpack.c.b16 %v2360, %v2356
        %v2373 = vpack.c.b16 %v2361, %v2357
        %v2374 = vpack.c.b16 %v2362, %v2358
        %v2375 = vpack.c.b16 %v2367, %v2363
        %v2376 = vpack.c.b16 %v2368, %v2364
        %v2377 = vpack.c.b16 %v2369, %v2365
        %v2378 = vpack.c.b16 %v2370, %v2366
        %v2395 = vunpack.c.l.b16 %v1971
        %v2396 = vunpack.c.h.b16 %v1971
        %v2397 = vunpack.c.l.b16 %v1972
        %v2398 = vunpack.c.h.b16 %v1972
        %v2399 = vunpack.c.l.b16 %v1973
        %v2400 = vunpack.c.h.b16 %v1973
        %v2401 = vunpack.c.l.b16 %v1974
        %v2402 = vunpack.c.h.b16 %v1974
        %v2403 = vunpack.c.l.b16 %v1975
        %v2404 = vunpack.c.h.b16 %v1975
        %v2405 = vunpack.c.l.b16 %v1976
        %v2406 = vunpack.c.h.b16 %v1976
        %v2407 = vunpack.c.l.b16 %v1977
        %v2408 = vunpack.c.h.b16 %v1977
        %v2409 = vunpack.c.l.b16 %v1978
        %v2410 = vunpack.c.h.b16 %v1978
        %v2411 = vpack.c.b16 %v2399, %v2395
        %v2412 = vpack.c.b16 %v2400, %v2396
        %v2413 = vpack.c.b16 %v2401, %v2397
        %v2414 = vpack.c.b16 %v2402, %v2398
        %v2415 = vpack.c.b16 %v2407, %v2403
        %v2416 = vpack.c.b16 %v2408, %v2404
        %v2417 = vpack.c.b16 %v2409, %v2405
        %v2418 = vpack.c.b16 %v2410, %v2406
        %v2435 = vunpack.c.l.b16 %v1683
        %v2436 = vunpack.c.h.b16 %v1683
        %v2437 = vunpack.c.l.b16 %v1684
        %v2438 = vunpack.c.h.b16 %v1684
        %v2439 = vunpack.c.l.b16 %v1685
        %v2440 = vunpack.c.h.b16 %v1685
        %v2441 = vunpack.c.l.b16 %v1686
        %v2442 = vunpack.c.h.b16 %v1686
        %v2443 = vunpack.c.l.b16 %v1687
        %v2444 = vunpack.c.h.b16 %v1687
        %v2445 = vunpack.c.l.b16 %v1688
        %v2446 = vunpack.c.h.b16 %v1688
        %v2447 = vunpack.c.l.b16 %v1689
        %v2448 = vunpack.c.h.b16 %v1689
        %v2449 = vunpack.c.l.b16 %v1690
        %v2450 = vunpack.c.h.b16 %v1690
        %v2451 = vpack.c.b16 %v2439, %v2435
        %v2452 = vpack.c.b16 %v2440, %v2436
        %v2453 = vpack.c.b16 %v2441, %v2437
        %v2454 = vpack.c.b16 %v2442, %v2438
        %v2455 = vpack.c.b16 %v2447, %v2443
        %v2456 = vpack.c.b16 %v2448, %v2444
        %v2457 = vpack.c.b16 %v2449, %v2445
        %v2458 = vpack.c.b16 %v2450, %v2446
        %v2475 = vunpack.c.l.b16 %v2043
        %v2476 = vunpack.c.h.b16 %v2043
        %v2477 = vunpack.c.l.b16 %v2044
        %v2478 = vunpack.c.h.b16 %v2044
        %v2479 = vunpack.c.l.b16 %v2045
        %v2480 = vunpack.c.h.b16 %v2045
        %v2481 = vunpack.c.l.b16 %v2046
        %v2482 = vunpack.c.h.b16 %v2046
        %v2483 = vunpack.c.l.b16 %v2047
        %v2484 = vunpack.c.h.b16 %v2047
        %v2485 = vunpack.c.l.b16 %v2048
        %v2486 = vunpack.c.h.b16 %v2048
        %v2487 = vunpack.c.l.b16 %v2049
        %v2488 = vunpack.c.h.b16 %v2049
        %v2489 = vunpack.c.l.b16 %v2050
        %v2490 = vunpack.c.h.b16 %v2050
        %v2491 = vpack.c.b16 %v2479, %v2475
        %v2492 = vpack.c.b16 %v2480, %v2476
        %v2493 = vpack.c.b16 %v2481, %v2477
        %v2494 = vpack.c.b16 %v2482, %v2478
        %v2495 = vpack.c.b16 %v2487, %v2483
        %v2496 = vpack.c.b16 %v2488, %v2484
        %v2497 = vpack.c.b16 %v2489, %v2485
        %v2498 = vpack.c.b16 %v2490, %v2486
        %v2515 = vunpack.c.l.b16 %v2115
        %v2516 = vunpack.c.h.b16 %v2115
        %v2517 = vunpack.c.l.b16 %v2116
        %v2518 = vunpack.c.h.b16 %v2116
        %v2519 = vunpack.c.l.b16 %v2117
        %v2520 = vunpack.c.h.b16 %v2117
        %v2521 = vunpack.c.l.b16 %v2118
        %v2522 = vunpack.c.h.b16 %v2118
        %v2523 = vunpack.c.l.b16 %v2119
        %v2524 = vunpack.c.h.b16 %v2119
        %v2525 = vunpack.c.l.b16 %v2120
        %v2526 = vunpack.c.h.b16 %v2120
        %v2527 = vunpack.c.l.b16 %v2121
        %v2528 = vunpack.c.h.b16 %v2121
        %v2529 = vunpack.c.l.b16 %v2122
        %v2530 = vunpack.c.h.b16 %v2122
        %v2531 = vpack.c.b16 %v2519, %v2515
        %v2532 = vpack.c.b16 %v2520, %v2516
        %v2533 = vpack.c.b16 %v2521, %v2517
        %v2534 = vpack.c.b16 %v2522, %v2518
        %v2535 = vpack.c.b16 %v2527, %v2523
        %v2536 = vpack.c.b16 %v2528, %v2524
        %v2537 = vpack.c.b16 %v2529, %v2525
        %v2538 = vpack.c.b16 %v2530, %v2526
        %v2555 = vunpack.c.l.b16 %v2187
        %v2556 = vunpack.c.h.b16 %v2187
        %v2557 = vunpack.c.l.b16 %v2188
        %v2558 = vunpack.c.h.b16 %v2188
        %v2559 = vunpack.c.l.b16 %v2189
        %v2560 = vunpack.c.h.b16 %v2189
        %v2561 = vunpack.c.l.b16 %v2190
        %v2562 = vunpack.c.h.b16 %v2190
        %v2563 = vunpack.c.l.b16 %v2191
        %v2564 = vunpack.c.h.b16 %v2191
        %v2565 = vunpack.c.l.b16 %v2192
        %v2566 = vunpack.c.h.b16 %v2192
        %v2567 = vunpack.c.l.b16 %v2193
        %v2568 = vunpack.c.h.b16 %v2193
        %v2569 = vunpack.c.l.b16 %v2194
        %v2570 = vunpack.c.h.b16 %v2194
        %v2571 = vpack.c.b16 %v2559, %v2555
        %v2572 = vpack.c.b16 %v2560, %v2556
        %v2573 = vpack.c.b16 %v2561, %v2557
        %v2574 = vpack.c.b16 %v2562, %v2558
        %v2575 = vpack.c.b16 %v2567, %v2563
        %v2576 = vpack.c.b16 %v2568, %v2564
        %v2577 = vpack.c.b16 %v2569, %v2565
        %v2578 = vpack.c.b16 %v2570, %v2566
        %v2595 = vunpack.c.l.b16 %v2259
        %v2596 = vunpack.c.h.b16 %v2259
        %v2597 = vunpack.c.l.b16 %v2260
        %v2598 = vunpack.c.h.b16 %v2260
        %v2599 = vunpack.c.l.b16 %v2261
        %v2600 = vunpack.c.h.b16 %v2261
        %v2601 = vunpack.c.l.b16 %v2262
        %v2602 = vunpack.c.h.b16 %v2262
        %v2603 = vunpack.c.l.b16 %v2263
        %v2604 = vunpack.c.h.b16 %v2263
        %v2605 = vunpack.c.l.b16 %v2264
        %v2606 = vunpack.c.h.b16 %v2264
        %v2607 = vunpack.c.l.b16 %v2265
        %v2608 = vunpack.c.h.b16 %v2265
        %v2609 = vunpack.c.l.b16 %v2266
        %v2610 = vunpack.c.h.b16 %v2266
        %v2611 = vpack.c.b16 %v2599, %v2595
        %v2612 = vpack.c.b16 %v2600, %v2596
        %v2613 = vpack.c.b16 %v2601, %v2597
        %v2614 = vpack.c.b16 %v2602, %v2598
        %v2615 = vpack.c.b16 %v2607, %v2603
        %v2616 = vpack.c.b16 %v2608, %v2604
        %v2617 = vpack.c.b16 %v2609, %v2605
        %v2618 = vpack.c.b16 %v2610, %v2606
        %v2627 = vld [vmem:[%s6] sm:$0xff]
        %v2628 = vld [vmem:[%s6 + $0x8] sm:$0xf]
        %v2629 = vld [vmem:[%s6 + $0xc] sm:$0xff]
        %v2630 = vld [vmem:[%s6 + $0x14] sm:$0xf]
        %v2631 = vld [vmem:[%s6 + $0x18] sm:$0xff]
        %v2632 = vld [vmem:[%s6 + $0x20] sm:$0xf]
        %v2633 = vld [vmem:[%s6 + $0x24] sm:$0xff]
        %v2634 = vld [vmem:[%s6 + $0x2c] sm:$0xf]
        %v2635 = vld [vmem:[%s6 + $0x30] sm:$0xff]
        %v2636 = vld [vmem:[%s6 + $0x38] sm:$0xf]
        %v2637 = vld [vmem:[%s6 + $0x3c] sm:$0xff]
        %v2638 = vld [vmem:[%s6 + $0x44] sm:$0xf]
        %v2639 = vld [vmem:[%s6 + $0x48] sm:$0xff]
        %v2640 = vld [vmem:[%s6 + $0x50] sm:$0xf]
        %v2641 = vld [vmem:[%s6 + $0x54] sm:$0xff]
        %v2642 = vld [vmem:[%s6 + $0x5c] sm:$0xf]
        %v2643 = vld [vmem:[%s6 + $0x60] sm:$0xff]
        %v2644 = vld [vmem:[%s6 + $0x68] sm:$0xf]
        %v2645 = vld [vmem:[%s6 + $0x6c] sm:$0xff]
        %v2646 = vld [vmem:[%s6 + $0x74] sm:$0xf]
        %v2647 = vld [vmem:[%s6 + $0x78] sm:$0xff]
        %v2648 = vld [vmem:[%s6 + $0x80] sm:$0xf]
        %v2649 = vld [vmem:[%s6 + $0x84] sm:$0xff]
        %v2650 = vld [vmem:[%s6 + $0x8c] sm:$0xf]
        %v2651 = vld [vmem:[%s6 + $0x90] sm:$0xff]
        %v2652 = vld [vmem:[%s6 + $0x98] sm:$0xf]
        %v2653 = vld [vmem:[%s6 + $0x9c] sm:$0xff]
        %v2654 = vld [vmem:[%s6 + $0xa4] sm:$0xf]
        %v2655 = vld [vmem:[%s6 + $0xa8] sm:$0xff]
        %v2656 = vld [vmem:[%s6 + $0xb0] sm:$0xf]
        %v2657 = vld [vmem:[%s6 + $0xb4] sm:$0xff]
        %v2658 = vld [vmem:[%s6 + $0xbc] sm:$0xf]
        %v2691 = vunpack.c.l.b16 %v2627
        %v2692 = vunpack.c.h.b16 %v2627
        %v2693 = vunpack.c.l.b16 %v2628
        %v2694 = vunpack.c.l.b16 %v2629
        %v2695 = vunpack.c.h.b16 %v2629
        %v2696 = vunpack.c.l.b16 %v2630
        %v2697 = vunpack.c.l.b16 %v2631
        %v2698 = vunpack.c.h.b16 %v2631
        %v2699 = vunpack.c.l.b16 %v2632
        %v2700 = vunpack.c.l.b16 %v2633
        %v2701 = vunpack.c.h.b16 %v2633
        %v2702 = vunpack.c.l.b16 %v2634
        %v2703 = vunpack.c.l.b16 %v2635
        %v2704 = vunpack.c.h.b16 %v2635
        %v2705 = vunpack.c.l.b16 %v2636
        %v2706 = vunpack.c.l.b16 %v2637
        %v2707 = vunpack.c.h.b16 %v2637
        %v2708 = vunpack.c.l.b16 %v2638
        %v2709 = vunpack.c.l.b16 %v2639
        %v2710 = vunpack.c.h.b16 %v2639
        %v2711 = vunpack.c.l.b16 %v2640
        %v2712 = vunpack.c.l.b16 %v2641
        %v2713 = vunpack.c.h.b16 %v2641
        %v2714 = vunpack.c.l.b16 %v2642
        %v2715 = vunpack.c.l.b16 %v2643
        %v2716 = vunpack.c.h.b16 %v2643
        %v2717 = vunpack.c.l.b16 %v2644
        %v2718 = vunpack.c.l.b16 %v2645
        %v2719 = vunpack.c.h.b16 %v2645
        %v2720 = vunpack.c.l.b16 %v2646
        %v2721 = vunpack.c.l.b16 %v2647
        %v2722 = vunpack.c.h.b16 %v2647
        %v2723 = vunpack.c.l.b16 %v2648
        %v2724 = vunpack.c.l.b16 %v2649
        %v2725 = vunpack.c.h.b16 %v2649
        %v2726 = vunpack.c.l.b16 %v2650
        %v2727 = vunpack.c.l.b16 %v2651
        %v2728 = vunpack.c.h.b16 %v2651
        %v2729 = vunpack.c.l.b16 %v2652
        %v2730 = vunpack.c.l.b16 %v2653
        %v2731 = vunpack.c.h.b16 %v2653
        %v2732 = vunpack.c.l.b16 %v2654
        %v2733 = vunpack.c.l.b16 %v2655
        %v2734 = vunpack.c.h.b16 %v2655
        %v2735 = vunpack.c.l.b16 %v2656
        %v2736 = vunpack.c.l.b16 %v2657
        %v2737 = vunpack.c.h.b16 %v2657
        %v2738 = vunpack.c.l.b16 %v2658
        %v2739 = vpack.c.b16 %v2694, %v2691
        %v2740 = vpack.c.b16 %v2695, %v2692
        %v2741 = vpack.c.b16 %v2696, %v2693
        %v2742 = vpack.c.b16 %v2700, %v2697
        %v2743 = vpack.c.b16 %v2701, %v2698
        %v2744 = vpack.c.b16 %v2702, %v2699
        %v2745 = vpack.c.b16 %v2706, %v2703
        %v2746 = vpack.c.b16 %v2707, %v2704
        %v2747 = vpack.c.b16 %v2708, %v2705
        %v2748 = vpack.c.b16 %v2712, %v2709
        %v2749 = vpack.c.b16 %v2713, %v2710
        %v2750 = vpack.c.b16 %v2714, %v2711
        %v2751 = vpack.c.b16 %v2718, %v2715
        %v2752 = vpack.c.b16 %v2719, %v2716
        %v2753 = vpack.c.b16 %v2720, %v2717
        %v2754 = vpack.c.b16 %v2724, %v2721
        %v2755 = vpack.c.b16 %v2725, %v2722
        %v2756 = vpack.c.b16 %v2726, %v2723
        %v2757 = vpack.c.b16 %v2730, %v2727
        %v2758 = vpack.c.b16 %v2731, %v2728
        %v2759 = vpack.c.b16 %v2732, %v2729
        %v2760 = vpack.c.b16 %v2736, %v2733
        %v2761 = vpack.c.b16 %v2737, %v2734
        %v2762 = vpack.c.b16 %v2738, %v2735
        %vm2779 = vcmask 261120
        %v2781 = vsel %vm2779, %v2741, 0
        %v2784 = vsel %vm2779, %v2744, 0
        %v2787 = vsel %vm2779, %v2747, 0
        %v2790 = vsel %vm2779, %v2750, 0
        %v2793 = vsel %vm2779, %v2753, 0
        %v2796 = vsel %vm2779, %v2756, 0
        %v2799 = vsel %vm2779, %v2759, 0
        %v2802 = vsel %vm2779, %v2762, 0
        %2804 = vmatpush.bf16.msra.mxu0 %v2415
        %2805 = vmatpush.bf16.msra.mxu0 %v2411
        %2806 = vmatpush.bf16.msra.mxu0 %v2375
        %2807 = vmatpush.bf16.msra.mxu0 %v2371
        %2808 = vmatpush.bf16.msra.mxu0 %v2335
        %2809 = vmatpush.bf16.msra.mxu0 %v2331
        %2810 = vmatpush.bf16.msra.mxu0 %v2295
        %2811 = vmatpush.bf16.msra.mxu0 %v2291
        %2812 = vmatmul.bf16.gmra.mxu0 %v2739
        %v2813 = vpop.f32.mrf.mxu0
        %v2814 = vadd.f32 0.0, %v2813
        %v2815 = vpop.f32.mrf.mxu0
        %v2816 = vadd.f32 0.0, %v2815
        %2817 = vmatmul.bf16.gmra.mxu0 %v2742
        %v2818 = vpop.f32.mrf.mxu0
        %v2819 = vadd.f32 0.0, %v2818
        %v2820 = vpop.f32.mrf.mxu0
        %v2821 = vadd.f32 0.0, %v2820
        %2822 = vmatmul.bf16.gmra.mxu0 %v2745
        %v2823 = vpop.f32.mrf.mxu0
        %v2824 = vadd.f32 0.0, %v2823
        %v2825 = vpop.f32.mrf.mxu0
        %v2826 = vadd.f32 0.0, %v2825
        %2827 = vmatmul.bf16.gmra.mxu0 %v2748
        %v2828 = vpop.f32.mrf.mxu0
        %v2829 = vadd.f32 0.0, %v2828
        %v2830 = vpop.f32.mrf.mxu0
        %v2831 = vadd.f32 0.0, %v2830
        %2832 = vmatmul.bf16.gmra.mxu0 %v2751
        %v2833 = vpop.f32.mrf.mxu0
        %v2834 = vadd.f32 0.0, %v2833
        %v2835 = vpop.f32.mrf.mxu0
        %v2836 = vadd.f32 0.0, %v2835
        %2837 = vmatmul.bf16.gmra.mxu0 %v2754
        %v2838 = vpop.f32.mrf.mxu0
        %v2839 = vadd.f32 0.0, %v2838
        %v2840 = vpop.f32.mrf.mxu0
        %v2841 = vadd.f32 0.0, %v2840
        %2842 = vmatmul.bf16.gmra.mxu0 %v2757
        %v2843 = vpop.f32.mrf.mxu0
        %v2844 = vadd.f32 0.0, %v2843
        %v2845 = vpop.f32.mrf.mxu0
        %v2846 = vadd.f32 0.0, %v2845
        %2847 = vmatmul.bf16.gmra.mxu0 %v2760
        %v2848 = vpop.f32.mrf.mxu0
        %v2849 = vadd.f32 0.0, %v2848
        %v2850 = vpop.f32.mrf.mxu0
        %v2851 = vadd.f32 0.0, %v2850
        %2852 = vdwg.mxu0
        %2853 = vmatpush.bf16.msra.mxu0 %v2575
        %2854 = vmatpush.bf16.msra.mxu0 %v2571
        %2855 = vmatpush.bf16.msra.mxu0 %v2535
        %2856 = vmatpush.bf16.msra.mxu0 %v2531
        %2857 = vmatpush.bf16.msra.mxu0 %v2495
        %2858 = vmatpush.bf16.msra.mxu0 %v2491
        %2859 = vmatpush.bf16.msra.mxu0 %v2455
        %2860 = vmatpush.bf16.msra.mxu0 %v2451
        %2861 = vmatmul.bf16.gmra.mxu0 %v2740
        %v2862 = vpop.f32.mrf.mxu0
        %v2863 = vadd.f32 %v2814, %v2862
        %v2864 = vpop.f32.mrf.mxu0
        %v2865 = vadd.f32 %v2816, %v2864
        %2866 = vmatmul.bf16.gmra.mxu0 %v2743
        %v2867 = vpop.f32.mrf.mxu0
        %v2868 = vadd.f32 %v2819, %v2867
        %v2869 = vpop.f32.mrf.mxu0
        %v2870 = vadd.f32 %v2821, %v2869
        %2871 = vmatmul.bf16.gmra.mxu0 %v2746
        %v2872 = vpop.f32.mrf.mxu0
        %v2873 = vadd.f32 %v2824, %v2872
        %v2874 = vpop.f32.mrf.mxu0
        %v2875 = vadd.f32 %v2826, %v2874
        %2876 = vmatmul.bf16.gmra.mxu0 %v2749
        %v2877 = vpop.f32.mrf.mxu0
        %v2878 = vadd.f32 %v2829, %v2877
        %v2879 = vpop.f32.mrf.mxu0
        %v2880 = vadd.f32 %v2831, %v2879
        %2881 = vmatmul.bf16.gmra.mxu0 %v2752
        %v2882 = vpop.f32.mrf.mxu0
        %v2883 = vadd.f32 %v2834, %v2882
        %v2884 = vpop.f32.mrf.mxu0
        %v2885 = vadd.f32 %v2836, %v2884
        %2886 = vmatmul.bf16.gmra.mxu0 %v2755
        %v2887 = vpop.f32.mrf.mxu0
        %v2888 = vadd.f32 %v2839, %v2887
        %v2889 = vpop.f32.mrf.mxu0
        %v2890 = vadd.f32 %v2841, %v2889
        %2891 = vmatmul.bf16.gmra.mxu0 %v2758
        %v2892 = vpop.f32.mrf.mxu0
        %v2893 = vadd.f32 %v2844, %v2892
        %v2894 = vpop.f32.mrf.mxu0
        %v2895 = vadd.f32 %v2846, %v2894
        %2896 = vmatmul.bf16.gmra.mxu0 %v2761
        %v2897 = vpop.f32.mrf.mxu0
        %v2898 = vadd.f32 %v2849, %v2897
        %v2899 = vpop.f32.mrf.mxu0
        %v2900 = vadd.f32 %v2851, %v2899
        %2901 = vdwg.mxu0
        %2902 = vmatpush.bf16.msra.mxu0 0
        %2903 = vmatpush.bf16.msra.mxu0 0
        %2904 = vmatpush.bf16.msra.mxu0 0
        %2905 = vmatpush.bf16.msra.mxu0 0
        %2906 = vmatpush.bf16.msra.mxu0 0
        %2907 = vmatpush.bf16.msra.mxu0 0
        %2908 = vmatpush.bf16.msra.mxu0 %v2615
        %2909 = vmatpush.bf16.msra.mxu0 %v2611
        %2910 = vmatmul.bf16.gmra.mxu0 %v2781
        %v2911 = vpop.f32.mrf.mxu0
        %v2912 = vadd.f32 %v2863, %v2911
        %v2913 = vpop.f32.mrf.mxu0
        %v2914 = vadd.f32 %v2865, %v2913
        %2915 = vmatmul.bf16.gmra.mxu0 %v2784
        %v2916 = vpop.f32.mrf.mxu0
        %v2917 = vadd.f32 %v2868, %v2916
        %v2918 = vpop.f32.mrf.mxu0
        %v2919 = vadd.f32 %v2870, %v2918
        %2920 = vmatmul.bf16.gmra.mxu0 %v2787
        %v2921 = vpop.f32.mrf.mxu0
        %v2922 = vadd.f32 %v2873, %v2921
        %v2923 = vpop.f32.mrf.mxu0
        %v2924 = vadd.f32 %v2875, %v2923
        %2925 = vmatmul.bf16.gmra.mxu0 %v2790
        %v2926 = vpop.f32.mrf.mxu0
        %v2927 = vadd.f32 %v2878, %v2926
        %v2928 = vpop.f32.mrf.mxu0
        %v2929 = vadd.f32 %v2880, %v2928
        %2930 = vmatmul.bf16.gmra.mxu0 %v2793
        %v2931 = vpop.f32.mrf.mxu0
        %v2932 = vadd.f32 %v2883, %v2931
        %v2933 = vpop.f32.mrf.mxu0
        %v2934 = vadd.f32 %v2885, %v2933
        %2935 = vmatmul.bf16.gmra.mxu0 %v2796
        %v2936 = vpop.f32.mrf.mxu0
        %v2937 = vadd.f32 %v2888, %v2936
        %v2938 = vpop.f32.mrf.mxu0
        %v2939 = vadd.f32 %v2890, %v2938
        %2940 = vmatmul.bf16.gmra.mxu0 %v2799
        %v2941 = vpop.f32.mrf.mxu0
        %v2942 = vadd.f32 %v2893, %v2941
        %v2943 = vpop.f32.mrf.mxu0
        %v2944 = vadd.f32 %v2895, %v2943
        %2945 = vmatmul.bf16.gmra.mxu0 %v2802
        %v2946 = vpop.f32.mrf.mxu0
        %v2947 = vadd.f32 %v2898, %v2946
        %v2948 = vpop.f32.mrf.mxu0
        %v2949 = vadd.f32 %v2900, %v2948
        %2950 = vdwg.mxu0
        %2951 = vmatpush.bf16.msra.mxu0 %v2416
        %2952 = vmatpush.bf16.msra.mxu0 %v2412
        %2953 = vmatpush.bf16.msra.mxu0 %v2376
        %2954 = vmatpush.bf16.msra.mxu0 %v2372
        %2955 = vmatpush.bf16.msra.mxu0 %v2336
        %2956 = vmatpush.bf16.msra.mxu0 %v2332
        %2957 = vmatpush.bf16.msra.mxu0 %v2296
        %2958 = vmatpush.bf16.msra.mxu0 %v2292
        %2959 = vmatmul.bf16.gmra.mxu0 %v2739
        %v2960 = vpop.f32.mrf.mxu0
        %v2961 = vadd.f32 0.0, %v2960
        %v2962 = vpop.f32.mrf.mxu0
        %v2963 = vadd.f32 0.0, %v2962
        %2964 = vmatmul.bf16.gmra.mxu0 %v2742
        %v2965 = vpop.f32.mrf.mxu0
        %v2966 = vadd.f32 0.0, %v2965
        %v2967 = vpop.f32.mrf.mxu0
        %v2968 = vadd.f32 0.0, %v2967
        %2969 = vmatmul.bf16.gmra.mxu0 %v2745
        %v2970 = vpop.f32.mrf.mxu0
        %v2971 = vadd.f32 0.0, %v2970
        %v2972 = vpop.f32.mrf.mxu0
        %v2973 = vadd.f32 0.0, %v2972
        %2974 = vmatmul.bf16.gmra.mxu0 %v2748
        %v2975 = vpop.f32.mrf.mxu0
        %v2976 = vadd.f32 0.0, %v2975
        %v2977 = vpop.f32.mrf.mxu0
        %v2978 = vadd.f32 0.0, %v2977
        %2979 = vmatmul.bf16.gmra.mxu0 %v2751
        %v2980 = vpop.f32.mrf.mxu0
        %v2981 = vadd.f32 0.0, %v2980
        %v2982 = vpop.f32.mrf.mxu0
        %v2983 = vadd.f32 0.0, %v2982
        %2984 = vmatmul.bf16.gmra.mxu0 %v2754
        %v2985 = vpop.f32.mrf.mxu0
        %v2986 = vadd.f32 0.0, %v2985
        %v2987 = vpop.f32.mrf.mxu0
        %v2988 = vadd.f32 0.0, %v2987
        %2989 = vmatmul.bf16.gmra.mxu0 %v2757
        %v2990 = vpop.f32.mrf.mxu0
        %v2991 = vadd.f32 0.0, %v2990
        %v2992 = vpop.f32.mrf.mxu0
        %v2993 = vadd.f32 0.0, %v2992
        %2994 = vmatmul.bf16.gmra.mxu0 %v2760
        %v2995 = vpop.f32.mrf.mxu0
        %v2996 = vadd.f32 0.0, %v2995
        %v2997 = vpop.f32.mrf.mxu0
        %v2998 = vadd.f32 0.0, %v2997
        %2999 = vdwg.mxu0
        %3000 = vmatpush.bf16.msra.mxu0 %v2576
        %3001 = vmatpush.bf16.msra.mxu0 %v2572
        %3002 = vmatpush.bf16.msra.mxu0 %v2536
        %3003 = vmatpush.bf16.msra.mxu0 %v2532
        %3004 = vmatpush.bf16.msra.mxu0 %v2496
        %3005 = vmatpush.bf16.msra.mxu0 %v2492
        %3006 = vmatpush.bf16.msra.mxu0 %v2456
        %3007 = vmatpush.bf16.msra.mxu0 %v2452
        %3008 = vmatmul.bf16.gmra.mxu0 %v2740
        %v3009 = vpop.f32.mrf.mxu0
        %v3010 = vadd.f32 %v2961, %v3009
        %v3011 = vpop.f32.mrf.mxu0
        %v3012 = vadd.f32 %v2963, %v3011
        %3013 = vmatmul.bf16.gmra.mxu0 %v2743
        %v3014 = vpop.f32.mrf.mxu0
        %v3015 = vadd.f32 %v2966, %v3014
        %v3016 = vpop.f32.mrf.mxu0
        %v3017 = vadd.f32 %v2968, %v3016
        %3018 = vmatmul.bf16.gmra.mxu0 %v2746
        %v3019 = vpop.f32.mrf.mxu0
        %v3020 = vadd.f32 %v2971, %v3019
        %v3021 = vpop.f32.mrf.mxu0
        %v3022 = vadd.f32 %v2973, %v3021
        %3023 = vmatmul.bf16.gmra.mxu0 %v2749
        %v3024 = vpop.f32.mrf.mxu0
        %v3025 = vadd.f32 %v2976, %v3024
        %v3026 = vpop.f32.mrf.mxu0
        %v3027 = vadd.f32 %v2978, %v3026
        %3028 = vmatmul.bf16.gmra.mxu0 %v2752
        %v3029 = vpop.f32.mrf.mxu0
        %v3030 = vadd.f32 %v2981, %v3029
        %v3031 = vpop.f32.mrf.mxu0
        %v3032 = vadd.f32 %v2983, %v3031
        %3033 = vmatmul.bf16.gmra.mxu0 %v2755
        %v3034 = vpop.f32.mrf.mxu0
        %v3035 = vadd.f32 %v2986, %v3034
        %v3036 = vpop.f32.mrf.mxu0
        %v3037 = vadd.f32 %v2988, %v3036
        %3038 = vmatmul.bf16.gmra.mxu0 %v2758
        %v3039 = vpop.f32.mrf.mxu0
        %v3040 = vadd.f32 %v2991, %v3039
        %v3041 = vpop.f32.mrf.mxu0
        %v3042 = vadd.f32 %v2993, %v3041
        %3043 = vmatmul.bf16.gmra.mxu0 %v2761
        %v3044 = vpop.f32.mrf.mxu0
        %v3045 = vadd.f32 %v2996, %v3044
        %v3046 = vpop.f32.mrf.mxu0
        %v3047 = vadd.f32 %v2998, %v3046
        %3048 = vdwg.mxu0
        %3049 = vmatpush.bf16.msra.mxu0 0
        %3050 = vmatpush.bf16.msra.mxu0 0
        %3051 = vmatpush.bf16.msra.mxu0 0
        %3052 = vmatpush.bf16.msra.mxu0 0
        %3053 = vmatpush.bf16.msra.mxu0 0
        %3054 = vmatpush.bf16.msra.mxu0 0
        %3055 = vmatpush.bf16.msra.mxu0 %v2616
        %3056 = vmatpush.bf16.msra.mxu0 %v2612
        %3057 = vmatmul.bf16.gmra.mxu0 %v2781
        %v3058 = vpop.f32.mrf.mxu0
        %v3059 = vadd.f32 %v3010, %v3058
        %v3060 = vpop.f32.mrf.mxu0
        %v3061 = vadd.f32 %v3012, %v3060
        %3062 = vmatmul.bf16.gmra.mxu0 %v2784
        %v3063 = vpop.f32.mrf.mxu0
        %v3064 = vadd.f32 %v3015, %v3063
        %v3065 = vpop.f32.mrf.mxu0
        %v3066 = vadd.f32 %v3017, %v3065
        %3067 = vmatmul.bf16.gmra.mxu0 %v2787
        %v3068 = vpop.f32.mrf.mxu0
        %v3069 = vadd.f32 %v3020, %v3068
        %v3070 = vpop.f32.mrf.mxu0
        %v3071 = vadd.f32 %v3022, %v3070
        %3072 = vmatmul.bf16.gmra.mxu0 %v2790
        %v3073 = vpop.f32.mrf.mxu0
        %v3074 = vadd.f32 %v3025, %v3073
        %v3075 = vpop.f32.mrf.mxu0
        %v3076 = vadd.f32 %v3027, %v3075
        %3077 = vmatmul.bf16.gmra.mxu0 %v2793
        %v3078 = vpop.f32.mrf.mxu0
        %v3079 = vadd.f32 %v3030, %v3078
        %v3080 = vpop.f32.mrf.mxu0
        %v3081 = vadd.f32 %v3032, %v3080
        %3082 = vmatmul.bf16.gmra.mxu0 %v2796
        %v3083 = vpop.f32.mrf.mxu0
        %v3084 = vadd.f32 %v3035, %v3083
        %v3085 = vpop.f32.mrf.mxu0
        %v3086 = vadd.f32 %v3037, %v3085
        %3087 = vmatmul.bf16.gmra.mxu0 %v2799
        %v3088 = vpop.f32.mrf.mxu0
        %v3089 = vadd.f32 %v3040, %v3088
        %v3090 = vpop.f32.mrf.mxu0
        %v3091 = vadd.f32 %v3042, %v3090
        %3092 = vmatmul.bf16.gmra.mxu0 %v2802
        %v3093 = vpop.f32.mrf.mxu0
        %v3094 = vadd.f32 %v3045, %v3093
        %v3095 = vpop.f32.mrf.mxu0
        %v3096 = vadd.f32 %v3047, %v3095
        %3097 = vdwg.mxu0
        %3098 = vmatpush.bf16.msra.mxu0 %v2417
        %3099 = vmatpush.bf16.msra.mxu0 %v2413
        %3100 = vmatpush.bf16.msra.mxu0 %v2377
        %3101 = vmatpush.bf16.msra.mxu0 %v2373
        %3102 = vmatpush.bf16.msra.mxu0 %v2337
        %3103 = vmatpush.bf16.msra.mxu0 %v2333
        %3104 = vmatpush.bf16.msra.mxu0 %v2297
        %3105 = vmatpush.bf16.msra.mxu0 %v2293
        %3106 = vmatmul.bf16.gmra.mxu0 %v2739
        %v3107 = vpop.f32.mrf.mxu0
        %v3108 = vadd.f32 0.0, %v3107
        %v3109 = vpop.f32.mrf.mxu0
        %v3110 = vadd.f32 0.0, %v3109
        %3111 = vmatmul.bf16.gmra.mxu0 %v2742
        %v3112 = vpop.f32.mrf.mxu0
        %v3113 = vadd.f32 0.0, %v3112
        %v3114 = vpop.f32.mrf.mxu0
        %v3115 = vadd.f32 0.0, %v3114
        %3116 = vmatmul.bf16.gmra.mxu0 %v2745
        %v3117 = vpop.f32.mrf.mxu0
        %v3118 = vadd.f32 0.0, %v3117
        %v3119 = vpop.f32.mrf.mxu0
        %v3120 = vadd.f32 0.0, %v3119
        %3121 = vmatmul.bf16.gmra.mxu0 %v2748
        %v3122 = vpop.f32.mrf.mxu0
        %v3123 = vadd.f32 0.0, %v3122
        %v3124 = vpop.f32.mrf.mxu0
        %v3125 = vadd.f32 0.0, %v3124
        %3126 = vmatmul.bf16.gmra.mxu0 %v2751
        %v3127 = vpop.f32.mrf.mxu0
        %v3128 = vadd.f32 0.0, %v3127
        %v3129 = vpop.f32.mrf.mxu0
        %v3130 = vadd.f32 0.0, %v3129
        %3131 = vmatmul.bf16.gmra.mxu0 %v2754
        %v3132 = vpop.f32.mrf.mxu0
        %v3133 = vadd.f32 0.0, %v3132
        %v3134 = vpop.f32.mrf.mxu0
        %v3135 = vadd.f32 0.0, %v3134
        %3136 = vmatmul.bf16.gmra.mxu0 %v2757
        %v3137 = vpop.f32.mrf.mxu0
        %v3138 = vadd.f32 0.0, %v3137
        %v3139 = vpop.f32.mrf.mxu0
        %v3140 = vadd.f32 0.0, %v3139
        %3141 = vmatmul.bf16.gmra.mxu0 %v2760
        %v3142 = vpop.f32.mrf.mxu0
        %v3143 = vadd.f32 0.0, %v3142
        %v3144 = vpop.f32.mrf.mxu0
        %v3145 = vadd.f32 0.0, %v3144
        %3146 = vdwg.mxu0
        %3147 = vmatpush.bf16.msra.mxu0 %v2577
        %3148 = vmatpush.bf16.msra.mxu0 %v2573
        %3149 = vmatpush.bf16.msra.mxu0 %v2537
        %3150 = vmatpush.bf16.msra.mxu0 %v2533
        %3151 = vmatpush.bf16.msra.mxu0 %v2497
        %3152 = vmatpush.bf16.msra.mxu0 %v2493
        %3153 = vmatpush.bf16.msra.mxu0 %v2457
        %3154 = vmatpush.bf16.msra.mxu0 %v2453
        %3155 = vmatmul.bf16.gmra.mxu0 %v2740
        %v3156 = vpop.f32.mrf.mxu0
        %v3157 = vadd.f32 %v3108, %v3156
        %v3158 = vpop.f32.mrf.mxu0
        %v3159 = vadd.f32 %v3110, %v3158
        %3160 = vmatmul.bf16.gmra.mxu0 %v2743
        %v3161 = vpop.f32.mrf.mxu0
        %v3162 = vadd.f32 %v3113, %v3161
        %v3163 = vpop.f32.mrf.mxu0
        %v3164 = vadd.f32 %v3115, %v3163
        %3165 = vmatmul.bf16.gmra.mxu0 %v2746
        %v3166 = vpop.f32.mrf.mxu0
        %v3167 = vadd.f32 %v3118, %v3166
        %v3168 = vpop.f32.mrf.mxu0
        %v3169 = vadd.f32 %v3120, %v3168
        %3170 = vmatmul.bf16.gmra.mxu0 %v2749
        %v3171 = vpop.f32.mrf.mxu0
        %v3172 = vadd.f32 %v3123, %v3171
        %v3173 = vpop.f32.mrf.mxu0
        %v3174 = vadd.f32 %v3125, %v3173
        %3175 = vmatmul.bf16.gmra.mxu0 %v2752
        %v3176 = vpop.f32.mrf.mxu0
        %v3177 = vadd.f32 %v3128, %v3176
        %v3178 = vpop.f32.mrf.mxu0
        %v3179 = vadd.f32 %v3130, %v3178
        %3180 = vmatmul.bf16.gmra.mxu0 %v2755
        %v3181 = vpop.f32.mrf.mxu0
        %v3182 = vadd.f32 %v3133, %v3181
        %v3183 = vpop.f32.mrf.mxu0
        %v3184 = vadd.f32 %v3135, %v3183
        %3185 = vmatmul.bf16.gmra.mxu0 %v2758
        %v3186 = vpop.f32.mrf.mxu0
        %v3187 = vadd.f32 %v3138, %v3186
        %v3188 = vpop.f32.mrf.mxu0
        %v3189 = vadd.f32 %v3140, %v3188
        %3190 = vmatmul.bf16.gmra.mxu0 %v2761
        %v3191 = vpop.f32.mrf.mxu0
        %v3192 = vadd.f32 %v3143, %v3191
        %v3193 = vpop.f32.mrf.mxu0
        %v3194 = vadd.f32 %v3145, %v3193
        %3195 = vdwg.mxu0
        %3196 = vmatpush.bf16.msra.mxu0 0
        %3197 = vmatpush.bf16.msra.mxu0 0
        %3198 = vmatpush.bf16.msra.mxu0 0
        %3199 = vmatpush.bf16.msra.mxu0 0
        %3200 = vmatpush.bf16.msra.mxu0 0
        %3201 = vmatpush.bf16.msra.mxu0 0
        %3202 = vmatpush.bf16.msra.mxu0 %v2617
        %3203 = vmatpush.bf16.msra.mxu0 %v2613
        %3204 = vmatmul.bf16.gmra.mxu0 %v2781
        %v3205 = vpop.f32.mrf.mxu0
        %v3206 = vadd.f32 %v3157, %v3205
        %v3207 = vpop.f32.mrf.mxu0
        %v3208 = vadd.f32 %v3159, %v3207
        %3209 = vmatmul.bf16.gmra.mxu0 %v2784
        %v3210 = vpop.f32.mrf.mxu0
        %v3211 = vadd.f32 %v3162, %v3210
        %v3212 = vpop.f32.mrf.mxu0
        %v3213 = vadd.f32 %v3164, %v3212
        %3214 = vmatmul.bf16.gmra.mxu0 %v2787
        %v3215 = vpop.f32.mrf.mxu0
        %v3216 = vadd.f32 %v3167, %v3215
        %v3217 = vpop.f32.mrf.mxu0
        %v3218 = vadd.f32 %v3169, %v3217
        %3219 = vmatmul.bf16.gmra.mxu0 %v2790
        %v3220 = vpop.f32.mrf.mxu0
        %v3221 = vadd.f32 %v3172, %v3220
        %v3222 = vpop.f32.mrf.mxu0
        %v3223 = vadd.f32 %v3174, %v3222
        %3224 = vmatmul.bf16.gmra.mxu0 %v2793
        %v3225 = vpop.f32.mrf.mxu0
        %v3226 = vadd.f32 %v3177, %v3225
        %v3227 = vpop.f32.mrf.mxu0
        %v3228 = vadd.f32 %v3179, %v3227
        %3229 = vmatmul.bf16.gmra.mxu0 %v2796
        %v3230 = vpop.f32.mrf.mxu0
        %v3231 = vadd.f32 %v3182, %v3230
        %v3232 = vpop.f32.mrf.mxu0
        %v3233 = vadd.f32 %v3184, %v3232
        %3234 = vmatmul.bf16.gmra.mxu0 %v2799
        %v3235 = vpop.f32.mrf.mxu0
        %v3236 = vadd.f32 %v3187, %v3235
        %v3237 = vpop.f32.mrf.mxu0
        %v3238 = vadd.f32 %v3189, %v3237
        %3239 = vmatmul.bf16.gmra.mxu0 %v2802
        %v3240 = vpop.f32.mrf.mxu0
        %v3241 = vadd.f32 %v3192, %v3240
        %v3242 = vpop.f32.mrf.mxu0
        %v3243 = vadd.f32 %v3194, %v3242
        %3244 = vdwg.mxu0
        %3245 = vmatpush.bf16.msra.mxu0 %v2418
        %3246 = vmatpush.bf16.msra.mxu0 %v2414
        %3247 = vmatpush.bf16.msra.mxu0 %v2378
        %3248 = vmatpush.bf16.msra.mxu0 %v2374
        %3249 = vmatpush.bf16.msra.mxu0 %v2338
        %3250 = vmatpush.bf16.msra.mxu0 %v2334
        %3251 = vmatpush.bf16.msra.mxu0 %v2298
        %3252 = vmatpush.bf16.msra.mxu0 %v2294
        %3253 = vmatmul.bf16.gmra.mxu0 %v2739
        %v3254 = vpop.f32.mrf.mxu0
        %v3255 = vadd.f32 0.0, %v3254
        %v3256 = vpop.f32.mrf.mxu0
        %v3257 = vadd.f32 0.0, %v3256
        %3258 = vmatmul.bf16.gmra.mxu0 %v2742
        %v3259 = vpop.f32.mrf.mxu0
        %v3260 = vadd.f32 0.0, %v3259
        %v3261 = vpop.f32.mrf.mxu0
        %v3262 = vadd.f32 0.0, %v3261
        %3263 = vmatmul.bf16.gmra.mxu0 %v2745
        %v3264 = vpop.f32.mrf.mxu0
        %v3265 = vadd.f32 0.0, %v3264
        %v3266 = vpop.f32.mrf.mxu0
        %v3267 = vadd.f32 0.0, %v3266
        %3268 = vmatmul.bf16.gmra.mxu0 %v2748
        %v3269 = vpop.f32.mrf.mxu0
        %v3270 = vadd.f32 0.0, %v3269
        %v3271 = vpop.f32.mrf.mxu0
        %v3272 = vadd.f32 0.0, %v3271
        %3273 = vmatmul.bf16.gmra.mxu0 %v2751
        %v3274 = vpop.f32.mrf.mxu0
        %v3275 = vadd.f32 0.0, %v3274
        %v3276 = vpop.f32.mrf.mxu0
        %v3277 = vadd.f32 0.0, %v3276
        %3278 = vmatmul.bf16.gmra.mxu0 %v2754
        %v3279 = vpop.f32.mrf.mxu0
        %v3280 = vadd.f32 0.0, %v3279
        %v3281 = vpop.f32.mrf.mxu0
        %v3282 = vadd.f32 0.0, %v3281
        %3283 = vmatmul.bf16.gmra.mxu0 %v2757
        %v3284 = vpop.f32.mrf.mxu0
        %v3285 = vadd.f32 0.0, %v3284
        %v3286 = vpop.f32.mrf.mxu0
        %v3287 = vadd.f32 0.0, %v3286
        %3288 = vmatmul.bf16.gmra.mxu0 %v2760
        %v3289 = vpop.f32.mrf.mxu0
        %v3290 = vadd.f32 0.0, %v3289
        %v3291 = vpop.f32.mrf.mxu0
        %v3292 = vadd.f32 0.0, %v3291
        %3293 = vdwg.mxu0
        %3294 = vmatpush.bf16.msra.mxu0 %v2578
        %3295 = vmatpush.bf16.msra.mxu0 %v2574
        %3296 = vmatpush.bf16.msra.mxu0 %v2538
        %3297 = vmatpush.bf16.msra.mxu0 %v2534
        %3298 = vmatpush.bf16.msra.mxu0 %v2498
        %3299 = vmatpush.bf16.msra.mxu0 %v2494
        %3300 = vmatpush.bf16.msra.mxu0 %v2458
        %3301 = vmatpush.bf16.msra.mxu0 %v2454
        %3302 = vmatmul.bf16.gmra.mxu0 %v2740
        %v3303 = vpop.f32.mrf.mxu0
        %v3304 = vadd.f32 %v3255, %v3303
        %v3305 = vpop.f32.mrf.mxu0
        %v3306 = vadd.f32 %v3257, %v3305
        %3307 = vmatmul.bf16.gmra.mxu0 %v2743
        %v3308 = vpop.f32.mrf.mxu0
        %v3309 = vadd.f32 %v3260, %v3308
        %v3310 = vpop.f32.mrf.mxu0
        %v3311 = vadd.f32 %v3262, %v3310
        %3312 = vmatmul.bf16.gmra.mxu0 %v2746
        %v3313 = vpop.f32.mrf.mxu0
        %v3314 = vadd.f32 %v3265, %v3313
        %v3315 = vpop.f32.mrf.mxu0
        %v3316 = vadd.f32 %v3267, %v3315
        %3317 = vmatmul.bf16.gmra.mxu0 %v2749
        %v3318 = vpop.f32.mrf.mxu0
        %v3319 = vadd.f32 %v3270, %v3318
        %v3320 = vpop.f32.mrf.mxu0
        %v3321 = vadd.f32 %v3272, %v3320
        %3322 = vmatmul.bf16.gmra.mxu0 %v2752
        %v3323 = vpop.f32.mrf.mxu0
        %v3324 = vadd.f32 %v3275, %v3323
        %v3325 = vpop.f32.mrf.mxu0
        %v3326 = vadd.f32 %v3277, %v3325
        %3327 = vmatmul.bf16.gmra.mxu0 %v2755
        %v3328 = vpop.f32.mrf.mxu0
        %v3329 = vadd.f32 %v3280, %v3328
        %v3330 = vpop.f32.mrf.mxu0
        %v3331 = vadd.f32 %v3282, %v3330
        %3332 = vmatmul.bf16.gmra.mxu0 %v2758
        %v3333 = vpop.f32.mrf.mxu0
        %v3334 = vadd.f32 %v3285, %v3333
        %v3335 = vpop.f32.mrf.mxu0
        %v3336 = vadd.f32 %v3287, %v3335
        %3337 = vmatmul.bf16.gmra.mxu0 %v2761
        %v3338 = vpop.f32.mrf.mxu0
        %v3339 = vadd.f32 %v3290, %v3338
        %v3340 = vpop.f32.mrf.mxu0
        %v3341 = vadd.f32 %v3292, %v3340
        %3342 = vdwg.mxu0
        %3343 = vmatpush.bf16.msra.mxu0 0
        %3344 = vmatpush.bf16.msra.mxu0 0
        %3345 = vmatpush.bf16.msra.mxu0 0
        %3346 = vmatpush.bf16.msra.mxu0 0
        %3347 = vmatpush.bf16.msra.mxu0 0
        %3348 = vmatpush.bf16.msra.mxu0 0
        %3349 = vmatpush.bf16.msra.mxu0 %v2618
        %3350 = vmatpush.bf16.msra.mxu0 %v2614
        %3351 = vmatmul.bf16.gmra.mxu0 %v2781
        %v3352 = vpop.f32.mrf.mxu0
        %v3353 = vadd.f32 %v3304, %v3352
        %v3354 = vpop.f32.mrf.mxu0
        %v3355 = vadd.f32 %v3306, %v3354
        %3356 = vmatmul.bf16.gmra.mxu0 %v2784
        %v3357 = vpop.f32.mrf.mxu0
        %v3358 = vadd.f32 %v3309, %v3357
        %v3359 = vpop.f32.mrf.mxu0
        %v3360 = vadd.f32 %v3311, %v3359
        %3361 = vmatmul.bf16.gmra.mxu0 %v2787
        %v3362 = vpop.f32.mrf.mxu0
        %v3363 = vadd.f32 %v3314, %v3362
        %v3364 = vpop.f32.mrf.mxu0
        %v3365 = vadd.f32 %v3316, %v3364
        %3366 = vmatmul.bf16.gmra.mxu0 %v2790
        %v3367 = vpop.f32.mrf.mxu0
        %v3368 = vadd.f32 %v3319, %v3367
        %v3369 = vpop.f32.mrf.mxu0
        %v3370 = vadd.f32 %v3321, %v3369
        %3371 = vmatmul.bf16.gmra.mxu0 %v2793
        %v3372 = vpop.f32.mrf.mxu0
        %v3373 = vadd.f32 %v3324, %v3372
        %v3374 = vpop.f32.mrf.mxu0
        %v3375 = vadd.f32 %v3326, %v3374
        %3376 = vmatmul.bf16.gmra.mxu0 %v2796
        %v3377 = vpop.f32.mrf.mxu0
        %v3378 = vadd.f32 %v3329, %v3377
        %v3379 = vpop.f32.mrf.mxu0
        %v3380 = vadd.f32 %v3331, %v3379
        %3381 = vmatmul.bf16.gmra.mxu0 %v2799
        %v3382 = vpop.f32.mrf.mxu0
        %v3383 = vadd.f32 %v3334, %v3382
        %v3384 = vpop.f32.mrf.mxu0
        %v3385 = vadd.f32 %v3336, %v3384
        %3386 = vmatmul.bf16.gmra.mxu0 %v2802
        %v3387 = vpop.f32.mrf.mxu0
        %v3388 = vadd.f32 %v3339, %v3387
        %v3389 = vpop.f32.mrf.mxu0
        %v3390 = vadd.f32 %v3341, %v3389
        %3391 = vdwg.mxu0
        %vm3392 = vcmp.gt.f32.partialorder %v2912, 0.0
        %vm3393 = vcmp.gt.f32.partialorder %v3059, 0.0
        %vm3394 = vcmp.gt.f32.partialorder %v3206, 0.0
        %vm3395 = vcmp.gt.f32.partialorder %v3353, 0.0
        %vm3396 = vcmp.gt.f32.partialorder %v2914, 0.0
        %vm3397 = vcmp.gt.f32.partialorder %v3061, 0.0
        %vm3398 = vcmp.gt.f32.partialorder %v3208, 0.0
        %vm3399 = vcmp.gt.f32.partialorder %v3355, 0.0
        %vm3400 = vcmp.gt.f32.partialorder %v2917, 0.0
        %vm3401 = vcmp.gt.f32.partialorder %v3064, 0.0
        %vm3402 = vcmp.gt.f32.partialorder %v3211, 0.0
        %vm3403 = vcmp.gt.f32.partialorder %v3358, 0.0
        %vm3404 = vcmp.gt.f32.partialorder %v2919, 0.0
        %vm3405 = vcmp.gt.f32.partialorder %v3066, 0.0
        %vm3406 = vcmp.gt.f32.partialorder %v3213, 0.0
        %vm3407 = vcmp.gt.f32.partialorder %v3360, 0.0
        %vm3408 = vcmp.gt.f32.partialorder %v2922, 0.0
        %vm3409 = vcmp.gt.f32.partialorder %v3069, 0.0
        %vm3410 = vcmp.gt.f32.partialorder %v3216, 0.0
        %vm3411 = vcmp.gt.f32.partialorder %v3363, 0.0
        %vm3412 = vcmp.gt.f32.partialorder %v2924, 0.0
        %vm3413 = vcmp.gt.f32.partialorder %v3071, 0.0
        %vm3414 = vcmp.gt.f32.partialorder %v3218, 0.0
        %vm3415 = vcmp.gt.f32.partialorder %v3365, 0.0
        %vm3416 = vcmp.gt.f32.partialorder %v2927, 0.0
        %vm3417 = vcmp.gt.f32.partialorder %v3074, 0.0
        %vm3418 = vcmp.gt.f32.partialorder %v3221, 0.0
        %vm3419 = vcmp.gt.f32.partialorder %v3368, 0.0
        %vm3420 = vcmp.gt.f32.partialorder %v2929, 0.0
        %vm3421 = vcmp.gt.f32.partialorder %v3076, 0.0
        %vm3422 = vcmp.gt.f32.partialorder %v3223, 0.0
        %vm3423 = vcmp.gt.f32.partialorder %v3370, 0.0
        %vm3424 = vcmp.gt.f32.partialorder %v2932, 0.0
        %vm3425 = vcmp.gt.f32.partialorder %v3079, 0.0
        %vm3426 = vcmp.gt.f32.partialorder %v3226, 0.0
        %vm3427 = vcmp.gt.f32.partialorder %v3373, 0.0
        %vm3428 = vcmp.gt.f32.partialorder %v2934, 0.0
        %vm3429 = vcmp.gt.f32.partialorder %v3081, 0.0
        %vm3430 = vcmp.gt.f32.partialorder %v3228, 0.0
        %vm3431 = vcmp.gt.f32.partialorder %v3375, 0.0
        %vm3432 = vcmp.gt.f32.partialorder %v2937, 0.0
        %vm3433 = vcmp.gt.f32.partialorder %v3084, 0.0
        %vm3434 = vcmp.gt.f32.partialorder %v3231, 0.0
        %vm3435 = vcmp.gt.f32.partialorder %v3378, 0.0
        %vm3436 = vcmp.gt.f32.partialorder %v2939, 0.0
        %vm3437 = vcmp.gt.f32.partialorder %v3086, 0.0
        %vm3438 = vcmp.gt.f32.partialorder %v3233, 0.0
        %vm3439 = vcmp.gt.f32.partialorder %v3380, 0.0
        %vm3440 = vcmp.gt.f32.partialorder %v2942, 0.0
        %vm3441 = vcmp.gt.f32.partialorder %v3089, 0.0
        %vm3442 = vcmp.gt.f32.partialorder %v3236, 0.0
        %vm3443 = vcmp.gt.f32.partialorder %v3383, 0.0
        %vm3444 = vcmp.gt.f32.partialorder %v2944, 0.0
        %vm3445 = vcmp.gt.f32.partialorder %v3091, 0.0
        %vm3446 = vcmp.gt.f32.partialorder %v3238, 0.0
        %vm3447 = vcmp.gt.f32.partialorder %v3385, 0.0
        %vm3448 = vcmp.gt.f32.partialorder %v2947, 0.0
        %vm3449 = vcmp.gt.f32.partialorder %v3094, 0.0
        %vm3450 = vcmp.gt.f32.partialorder %v3241, 0.0
        %vm3451 = vcmp.gt.f32.partialorder %v3388, 0.0
        %vm3452 = vcmp.gt.f32.partialorder %v2949, 0.0
        %vm3453 = vcmp.gt.f32.partialorder %v3096, 0.0
        %vm3454 = vcmp.gt.f32.partialorder %v3243, 0.0
        %vm3455 = vcmp.gt.f32.partialorder %v3390, 0.0
        %v3456 = vmul.f32 %v2912, 0.25
        %v3457 = vmul.f32 %v3059, 0.25
        %v3458 = vmul.f32 %v3206, 0.25
        %v3459 = vmul.f32 %v3353, 0.25
        %v3460 = vmul.f32 %v2914, 0.25
        %v3461 = vmul.f32 %v3061, 0.25
        %v3462 = vmul.f32 %v3208, 0.25
        %v3463 = vmul.f32 %v3355, 0.25
        %v3464 = vmul.f32 %v2917, 0.25
        %v3465 = vmul.f32 %v3064, 0.25
        %v3466 = vmul.f32 %v3211, 0.25
        %v3467 = vmul.f32 %v3358, 0.25
        %v3468 = vmul.f32 %v2919, 0.25
        %v3469 = vmul.f32 %v3066, 0.25
        %v3470 = vmul.f32 %v3213, 0.25
        %v3471 = vmul.f32 %v3360, 0.25
        %v3472 = vmul.f32 %v2922, 0.25
        %v3473 = vmul.f32 %v3069, 0.25
        %v3474 = vmul.f32 %v3216, 0.25
        %v3475 = vmul.f32 %v3363, 0.25
        %v3476 = vmul.f32 %v2924, 0.25
        %v3477 = vmul.f32 %v3071, 0.25
        %v3478 = vmul.f32 %v3218, 0.25
        %v3479 = vmul.f32 %v3365, 0.25
        %v3480 = vmul.f32 %v2927, 0.25
        %v3481 = vmul.f32 %v3074, 0.25
        %v3482 = vmul.f32 %v3221, 0.25
        %v3483 = vmul.f32 %v3368, 0.25
        %v3484 = vmul.f32 %v2929, 0.25
        %v3485 = vmul.f32 %v3076, 0.25
        %v3486 = vmul.f32 %v3223, 0.25
        %v3487 = vmul.f32 %v3370, 0.25
        %v3488 = vmul.f32 %v2932, 0.25
        %v3489 = vmul.f32 %v3079, 0.25
        %v3490 = vmul.f32 %v3226, 0.25
        %v3491 = vmul.f32 %v3373, 0.25
        %v3492 = vmul.f32 %v2934, 0.25
        %v3493 = vmul.f32 %v3081, 0.25
        %v3494 = vmul.f32 %v3228, 0.25
        %v3495 = vmul.f32 %v3375, 0.25
        %v3496 = vmul.f32 %v2937, 0.25
        %v3497 = vmul.f32 %v3084, 0.25
        %v3498 = vmul.f32 %v3231, 0.25
        %v3499 = vmul.f32 %v3378, 0.25
        %v3500 = vmul.f32 %v2939, 0.25
        %v3501 = vmul.f32 %v3086, 0.25
        %v3502 = vmul.f32 %v3233, 0.25
        %v3503 = vmul.f32 %v3380, 0.25
        %v3504 = vmul.f32 %v2942, 0.25
        %v3505 = vmul.f32 %v3089, 0.25
        %v3506 = vmul.f32 %v3236, 0.25
        %v3507 = vmul.f32 %v3383, 0.25
        %v3508 = vmul.f32 %v2944, 0.25
        %v3509 = vmul.f32 %v3091, 0.25
        %v3510 = vmul.f32 %v3238, 0.25
        %v3511 = vmul.f32 %v3385, 0.25
        %v3512 = vmul.f32 %v2947, 0.25
        %v3513 = vmul.f32 %v3094, 0.25
        %v3514 = vmul.f32 %v3241, 0.25
        %v3515 = vmul.f32 %v3388, 0.25
        %v3516 = vmul.f32 %v2949, 0.25
        %v3517 = vmul.f32 %v3096, 0.25
        %v3518 = vmul.f32 %v3243, 0.25
        %v3519 = vmul.f32 %v3390, 0.25
        %v3520 = vsel %vm3392, %v2912, %v3456
        %v3521 = vsel %vm3393, %v3059, %v3457
        %v3522 = vsel %vm3394, %v3206, %v3458
        %v3523 = vsel %vm3395, %v3353, %v3459
        %v3524 = vsel %vm3396, %v2914, %v3460
        %v3525 = vsel %vm3397, %v3061, %v3461
        %v3526 = vsel %vm3398, %v3208, %v3462
        %v3527 = vsel %vm3399, %v3355, %v3463
        %v3528 = vsel %vm3400, %v2917, %v3464
        %v3529 = vsel %vm3401, %v3064, %v3465
        %v3530 = vsel %vm3402, %v3211, %v3466
        %v3531 = vsel %vm3403, %v3358, %v3467
        %v3532 = vsel %vm3404, %v2919, %v3468
        %v3533 = vsel %vm3405, %v3066, %v3469
        %v3534 = vsel %vm3406, %v3213, %v3470
        %v3535 = vsel %vm3407, %v3360, %v3471
        %v3536 = vsel %vm3408, %v2922, %v3472
        %v3537 = vsel %vm3409, %v3069, %v3473
        %v3538 = vsel %vm3410, %v3216, %v3474
        %v3539 = vsel %vm3411, %v3363, %v3475
        %v3540 = vsel %vm3412, %v2924, %v3476
        %v3541 = vsel %vm3413, %v3071, %v3477
        %v3542 = vsel %vm3414, %v3218, %v3478
        %v3543 = vsel %vm3415, %v3365, %v3479
        %v3544 = vsel %vm3416, %v2927, %v3480
        %v3545 = vsel %vm3417, %v3074, %v3481
        %v3546 = vsel %vm3418, %v3221, %v3482
        %v3547 = vsel %vm3419, %v3368, %v3483
        %v3548 = vsel %vm3420, %v2929, %v3484
        %v3549 = vsel %vm3421, %v3076, %v3485
        %v3550 = vsel %vm3422, %v3223, %v3486
        %v3551 = vsel %vm3423, %v3370, %v3487
        %v3552 = vsel %vm3424, %v2932, %v3488
        %v3553 = vsel %vm3425, %v3079, %v3489
        %v3554 = vsel %vm3426, %v3226, %v3490
        %v3555 = vsel %vm3427, %v3373, %v3491
        %v3556 = vsel %vm3428, %v2934, %v3492
        %v3557 = vsel %vm3429, %v3081, %v3493
        %v3558 = vsel %vm3430, %v3228, %v3494
        %v3559 = vsel %vm3431, %v3375, %v3495
        %v3560 = vsel %vm3432, %v2937, %v3496
        %v3561 = vsel %vm3433, %v3084, %v3497
        %v3562 = vsel %vm3434, %v3231, %v3498
        %v3563 = vsel %vm3435, %v3378, %v3499
        %v3564 = vsel %vm3436, %v2939, %v3500
        %v3565 = vsel %vm3437, %v3086, %v3501
        %v3566 = vsel %vm3438, %v3233, %v3502
        %v3567 = vsel %vm3439, %v3380, %v3503
        %v3568 = vsel %vm3440, %v2942, %v3504
        %v3569 = vsel %vm3441, %v3089, %v3505
        %v3570 = vsel %vm3442, %v3236, %v3506
        %v3571 = vsel %vm3443, %v3383, %v3507
        %v3572 = vsel %vm3444, %v2944, %v3508
        %v3573 = vsel %vm3445, %v3091, %v3509
        %v3574 = vsel %vm3446, %v3238, %v3510
        %v3575 = vsel %vm3447, %v3385, %v3511
        %v3576 = vsel %vm3448, %v2947, %v3512
        %v3577 = vsel %vm3449, %v3094, %v3513
        %v3578 = vsel %vm3450, %v3241, %v3514
        %v3579 = vsel %vm3451, %v3388, %v3515
        %v3580 = vsel %vm3452, %v2949, %v3516
        %v3581 = vsel %vm3453, %v3096, %v3517
        %v3582 = vsel %vm3454, %v3243, %v3518
        %v3583 = vsel %vm3455, %v3390, %v3519
        %3584 = vst [vmem:[%s298] sm:$0xff] %v3520
        %3585 = vst [vmem:[%s298 + $0x8] sm:$0xff] %v3521
        %3586 = vst [vmem:[%s298 + $0x10] sm:$0xff] %v3522
        %3587 = vst [vmem:[%s298 + $0x18] sm:$0xff] %v3523
        %3588 = vst [vmem:[%s298 + $0x20] sm:$0xff] %v3524
        %3589 = vst [vmem:[%s298 + $0x28] sm:$0xff] %v3525
        %3590 = vst [vmem:[%s298 + $0x30] sm:$0xff] %v3526
        %3591 = vst [vmem:[%s298 + $0x38] sm:$0xff] %v3527
        %3592 = vst [vmem:[%s298 + $0x40] sm:$0xff] %v3528
        %3593 = vst [vmem:[%s298 + $0x48] sm:$0xff] %v3529
        %3594 = vst [vmem:[%s298 + $0x50] sm:$0xff] %v3530
        %3595 = vst [vmem:[%s298 + $0x58] sm:$0xff] %v3531
        %3596 = vst [vmem:[%s298 + $0x60] sm:$0xff] %v3532
        %3597 = vst [vmem:[%s298 + $0x68] sm:$0xff] %v3533
        %3598 = vst [vmem:[%s298 + $0x70] sm:$0xff] %v3534
        %3599 = vst [vmem:[%s298 + $0x78] sm:$0xff] %v3535
        %3600 = vst [vmem:[%s298 + $0x80] sm:$0xff] %v3536
        %3601 = vst [vmem:[%s298 + $0x88] sm:$0xff] %v3537
        %3602 = vst [vmem:[%s298 + $0x90] sm:$0xff] %v3538
        %3603 = vst [vmem:[%s298 + $0x98] sm:$0xff] %v3539
        %3604 = vst [vmem:[%s298 + $0xa0] sm:$0xff] %v3540
        %3605 = vst [vmem:[%s298 + $0xa8] sm:$0xff] %v3541
        %3606 = vst [vmem:[%s298 + $0xb0] sm:$0xff] %v3542
        %3607 = vst [vmem:[%s298 + $0xb8] sm:$0xff] %v3543
        %3608 = vst [vmem:[%s298 + $0xc0] sm:$0xff] %v3544
        %3609 = vst [vmem:[%s298 + $0xc8] sm:$0xff] %v3545
        %3610 = vst [vmem:[%s298 + $0xd0] sm:$0xff] %v3546
        %3611 = vst [vmem:[%s298 + $0xd8] sm:$0xff] %v3547
        %3612 = vst [vmem:[%s298 + $0xe0] sm:$0xff] %v3548
        %3613 = vst [vmem:[%s298 + $0xe8] sm:$0xff] %v3549
        %3614 = vst [vmem:[%s298 + $0xf0] sm:$0xff] %v3550
        %3615 = vst [vmem:[%s298 + $0xf8] sm:$0xff] %v3551
        %3616 = vst [vmem:[%s298 + $0x100] sm:$0xff] %v3552
        %3617 = vst [vmem:[%s298 + $0x108] sm:$0xff] %v3553
        %3618 = vst [vmem:[%s298 + $0x110] sm:$0xff] %v3554
        %3619 = vst [vmem:[%s298 + $0x118] sm:$0xff] %v3555
        %3620 = vst [vmem:[%s298 + $0x120] sm:$0xff] %v3556
        %3621 = vst [vmem:[%s298 + $0x128] sm:$0xff] %v3557
        %3622 = vst [vmem:[%s298 + $0x130] sm:$0xff] %v3558
        %3623 = vst [vmem:[%s298 + $0x138] sm:$0xff] %v3559
        %3624 = vst [vmem:[%s298 + $0x140] sm:$0xff] %v3560
        %3625 = vst [vmem:[%s298 + $0x148] sm:$0xff] %v3561
        %3626 = vst [vmem:[%s298 + $0x150] sm:$0xff] %v3562
        %3627 = vst [vmem:[%s298 + $0x158] sm:$0xff] %v3563
        %3628 = vst [vmem:[%s298 + $0x160] sm:$0xff] %v3564
        %3629 = vst [vmem:[%s298 + $0x168] sm:$0xff] %v3565
        %3630 = vst [vmem:[%s298 + $0x170] sm:$0xff] %v3566
        %3631 = vst [vmem:[%s298 + $0x178] sm:$0xff] %v3567
        %3632 = vst [vmem:[%s298 + $0x180] sm:$0xff] %v3568
        %3633 = vst [vmem:[%s298 + $0x188] sm:$0xff] %v3569
        %3634 = vst [vmem:[%s298 + $0x190] sm:$0xff] %v3570
        %3635 = vst [vmem:[%s298 + $0x198] sm:$0xff] %v3571
        %3636 = vst [vmem:[%s298 + $0x1a0] sm:$0xff] %v3572
        %3637 = vst [vmem:[%s298 + $0x1a8] sm:$0xff] %v3573
        %3638 = vst [vmem:[%s298 + $0x1b0] sm:$0xff] %v3574
        %3639 = vst [vmem:[%s298 + $0x1b8] sm:$0xff] %v3575
        %3640 = vst [vmem:[%s298 + $0x1c0] sm:$0xff] %v3576
        %3641 = vst [vmem:[%s298 + $0x1c8] sm:$0xff] %v3577
        %3642 = vst [vmem:[%s298 + $0x1d0] sm:$0xff] %v3578
        %3643 = vst [vmem:[%s298 + $0x1d8] sm:$0xff] %v3579
        %3644 = vst [vmem:[%s298 + $0x1e0] sm:$0xff] %v3580
        %3645 = vst [vmem:[%s298 + $0x1e8] sm:$0xff] %v3581
        %3646 = vst [vmem:[%s298 + $0x1f0] sm:$0xff] %v3582
        %3647 = vst [vmem:[%s298 + $0x1f8] sm:$0xff] %v3583
        %s3648 = sand.u32 %s184, 1
        %s3649 = scalar_lea.sflag [#allocation4], %s3648
        %s3650 = sand.u32 %s184, 1
        %s3651 = smul.addr %s3650, 512
        %s3652 = scalar_lea.vmem [#allocation5], %s3651
        // Predicated region
        $region53: #{tpu_custom_call.1} parent=47 // pred_check
          %p3653 = pneg %p194
        $region54: #{tpu_custom_call.1} parent=47 // pred_check_branch
          %3655 = sbr.rel (%p3653) target = $region56
        $region55: #{tpu_custom_call.1} parent=47 // pred_region
          %s3656 = smul.u32 4, %s24
          %3658 = vsyncadd %s3649, 0
          %s3659 = smul.addr %s3656, 8
          %s3660 = scalar_lea.hbm %s7, %s3659
          %s3661 = sshll.u32 %s3652, 4
          %s3662 = int_to_ptr.vmem [resolvable:$true] %s3661
          %s3663 = sshll.u32 %s3660, 4
          %s3664 = int_to_ptr.hbm [resolvable:$true] %s3663
          %3669 = dma.vmem_to_hbm [thread:$0]  %s3662, 8192, %s3664, %s3649, 512, 1024, 32
        $region56: #{tpu_custom_call.1} parent=47 // pred_fallthru
          _
      $region48: #{tpu_custom_call.1} parent=5 // pred_fallthru
        _
      %p3670 = scmp.le.s32.totalorder 2, %s19
      // Predicated region
      $region57: #{tpu_custom_call.1} parent=5 // pred_check
        %p3671 = pneg %p3670
      $region58: #{tpu_custom_call.1} parent=5 // pred_check_branch
        %3673 = sbr.rel (%p3671) target = $region60
      $region59: #{tpu_custom_call.1} parent=5 // pred_region
        %s3674 = ssub.s32 %s19, 2
        // Predicated region
        $region61: #{tpu_custom_call.1} parent=59 // pred_check
          %p3675 = pneg %p200
        $region62: #{tpu_custom_call.1} parent=59 // pred_check_branch
          %3677 = sbr.rel (%p3675) target = $region64
        $region63: #{tpu_custom_call.1} parent=59 // pred_region
          %s3678 = sand.u32 %s185, 1
          %s3679 = scalar_lea.sflag [#allocation4], %s3678
          %s3680 = sand.u32 %s185, 1
          %s3681 = smul.addr %s3680, 512
          %s3682 = scalar_lea.vmem [#allocation5], %s3681
          %3684 = dma.done %s3679, 8192
        $region64: #{tpu_custom_call.1} parent=59 // pred_fallthru
          _
      $region60: #{tpu_custom_call.1} parent=5 // pred_fallthru
        _
    $region6: #{tpu_custom_call.1} parent=1 // loop_footer
      %s23 = sadd.s32 1, %s19
    $region7: #{tpu_custom_call.1} parent=1 // loop_footer_branch
      %18 = sbr.rel target = $region3
    $region8: #{tpu_custom_call.1} parent=1 // loop_exit
      _
    %3685 = vsyncpa [#allocation3], 1
    %s3686 = scalar_lea.sflag [#allocation3], 1
    %3687 = vsyncpa %s3686, 1
    %3688 = vsyncpa [#allocation4], 1
    %s3689 = scalar_lea.sflag [#allocation4], 1
    %3690 = vsyncpa %s3689, 1

</llo_original>
